<compile_context>
chip_gen: v6e
topology: v6e:2x2x1
jax: 0.10.0
libtpu: 0.0.40
codegen_flags: <defaults>
</compile_context>

<pallas_src>
import functools

import numpy as np

import jax
import jax.numpy as jnp
from jax.experimental import pallas as pl
from jax.experimental.pallas import tpu as pltpu

LANE = 128


def _round_up(x, m):
    return ((x + m - 1) // m) * m


# ----------------------------------------------------------------------------
# Fused kernel: h = x; for each layer: h = relu(h @ W_l + b_l); store last (f32)
# Weights/biases are full VMEM-resident blocks; only the batch dim is gridded.
# ----------------------------------------------------------------------------
def _fused_net_kernel(*refs, n_layers):
    x_ref, o_ref = refs[0], refs[-1]
    h = x_ref[...]                                    # bf16 (tm, K0)
    for l in range(n_layers):
        w = refs[1 + 2 * l][...]                      # bf16 (K_l, N_l), resident
        b = refs[2 + 2 * l][...]                      # f32  (1,  N_l)
        z = jnp.dot(h, w, preferred_element_type=jnp.float32) + b
        z = jnp.maximum(z, 0.0)                       # every layer is ReLU here
        h = z.astype(jnp.bfloat16) if l + 1 < n_layers else z
    o_ref[...] = h                                    # final layer kept in f32


def fused_net(x_bf16, layers):
    """x: (B, K0) bf16; layers: tuple of (W bf16 (K,N), b f32 (1,N)) -> (Bp, N_last) f32."""
    B, K0 = x_bf16.shape
    K0p = layers[0][0].shape[0]
    n_out = layers[-1][0].shape[1]

    tm = min(128, _round_up(B, 8))                    # sublane-aligned batch tile
    Bp = _round_up(B, tm)
    x_p = jnp.pad(x_bf16, ((0, Bp - B), (0, K0p - K0)))

    in_specs = [pl.BlockSpec((tm, K0p), lambda i: (i, 0))]
    args = [x_p]
    for (w, b) in layers:
        in_specs.append(pl.BlockSpec(w.shape, lambda i: (0, 0)))   # resident weights
        in_specs.append(pl.BlockSpec(b.shape, lambda i: (0, 0)))
        args += [w, b]

    # VMEM budget: blocks (double-buffered) + headroom, capped well below v7x's 64 MiB.
    block_bytes = (tm * K0p * 2 + tm * n_out * 4
                   + sum(w.size * 2 + b.size * 4 for (w, b) in layers))
    vmem_limit = int(min(32 * 1024 * 1024,
                         max(8 * 1024 * 1024, 2 * block_bytes + (8 << 20))))

    return pl.pallas_call(
        functools.partial(_fused_net_kernel, n_layers=len(layers)),
        out_shape=jax.ShapeDtypeStruct((Bp, n_out), jnp.float32),
        grid=(Bp // tm,),
        in_specs=in_specs,
        out_specs=pl.BlockSpec((tm, n_out), lambda i: (i, 0)),
        compiler_params=pltpu.CompilerParams(
            dimension_semantics=("parallel",),
            vmem_limit_bytes=vmem_limit,
        ),
    )(*args)


# ----------------------------------------------------------------------------
# Parameters: PyTorch-layout init + one-time lowering to a chain of dense matmuls
# ----------------------------------------------------------------------------
def init_params(key, in_channels, layer_channels, filter_width, spatial, dimH):
    """PyTorch layouts: conv weight (O, C, kh, kw); fc weight stored as (flat, dimH)
    with `flat` in NCHW flatten order (i.e. torch Linear weight transposed)."""
    params = {"convs": []}
    c_in, s = in_channels, spatial
    keys = jax.random.split(key, 2 * len(layer_channels) + 2)
    for i, c_out in enumerate(layer_channels):
        w = jax.random.normal(
            keys[2 * i], (c_out, c_in, filter_width, filter_width), jnp.float32) * 0.1
        b = jax.random.normal(keys[2 * i + 1], (c_out,), jnp.float32) * 0.1
        params["convs"].append((w, b))
        c_in = c_out
        s = (s + 2 * 2 - filter_width) // 2 + 1       # stride 2, pad 2
    flat_dim = c_in * s * s
    w_fc = jax.random.normal(keys[-2], (flat_dim, dimH), jnp.float32) * 0.05
    b_fc = jax.random.normal(keys[-1], (dimH,), jnp.float32) * 0.05
    params["fc"] = (w_fc, b_fc)
    return params


def _conv_as_dense(w, b, in_index, s_out, out_index, n_in, n_out, stride=2, pad=2):
    """Lower a (Cout,Cin,kh,kw) stride-2 pad-2 conv to a dense (n_in, n_out) matrix
    + (n_out,) bias over flat activation vectors.  Output slots not covered by
    out_index (the zero-padding border of the next layer's input) keep zero
    columns and zero bias, so ReLU leaves them exactly 0."""
    c_out, c_in, kh, kw = w.shape
    M = np.zeros((n_in, n_out), np.float32)
    bias = np.zeros((n_out,), np.float32)
    for ho in range(s_out):
        for wo in range(s_out):
            cols = np.array([out_index(ho, wo, co) for co in range(c_out)])
            bias[cols] = b
            for i in range(kh):
                for j in range(kw):
                    hi = ho * stride + i - pad
                    wi = wo * stride + j - pad
                    rows = [in_index(hi, wi, ci) for ci in range(c_in)]
                    if rows[0] is None:               # tap lands in the implicit zero pad
                        continue
                    M[np.ix_(np.array(rows), cols)] += w[:, :, i, j].T
    return M, bias


def prepare_params(params, in_channels, spatial):
    """One-time lowering of the whole net to a chain of dense matmuls (bf16, lane-padded).

    Flat-vector layouts (chosen here, consistent layer to layer):
      * net input   : raw PyTorch NCHW flatten of x (forward just reshapes x)
      * conv l<L-1  : zero-PADDED NHWC map of the layer output, (S+4, S+4, C)
                      -> the next layer's 5x5 taps become plain row lookups
      * conv  L-1   : NCHW flatten (matches torch .view(B,-1)) so the FC weight
                      is used as-is, no permutation
    Every matrix is cast to bf16 and zero-padded to lane (128) multiples; the
    padded rows/cols are zeros, so the math is exact.  Returns ONLY jnp arrays.
    """
    convs = params["convs"]
    n_conv = len(convs)
    mats = []
    c_in, s_in = in_channels, spatial
    for l, (w, b) in enumerate(convs):
        w = np.asarray(w, np.float32)
        b = np.asarray(b, np.float32)
        c_out, _, kh, _ = w.shape
        s_out = (s_in + 2 * 2 - kh) // 2 + 1
        if l == 0:
            def in_index(hi, wi, ci, s=s_in):                      # raw NCHW input
                if 0 <= hi < s and 0 <= wi < s:
                    return (ci * s + hi) * s + wi
                return None
            n_in = c_in * s_in * s_in
        else:
            def in_index(hi, wi, ci, sp=s_in + 4, c=c_in):         # padded NHWC input
                return ((hi + 2) * sp + (wi + 2)) * c + ci
            n_in = (s_in + 4) * (s_in + 4) * c_in
        if l + 1 < n_conv:
            def out_index(ho, wo, co, sp=s_out + 4, c=c_out):      # padded NHWC output
                return ((ho + 2) * sp + (wo + 2)) * c + co
            n_out = (s_out + 4) * (s_out + 4) * c_out
        else:
            def out_index(ho, wo, co, s=s_out):                    # NCHW flatten output
                return (co * s + ho) * s + wo
            n_out = c_out * s_out * s_out
        mats.append(_conv_as_dense(w, b, in_index, s_out, out_index, n_in, n_out))
        c_in, s_in = c_out, s_out

    w_fc, b_fc = params["fc"]
    mats.append((np.asarray(w_fc, np.float32), np.asarray(b_fc, np.float32)))

    prepared = []
    k_in = _round_up(mats[0][0].shape[0], LANE)
    for (M, bias) in mats:
        n_in, n_out = M.shape
        k_out = _round_up(n_out, LANE)
        Mp = np.zeros((k_in, k_out), np.float32)
        Mp[:n_in, :n_out] = M
        bp = np.zeros((1, k_out), np.float32)
        bp[0, :n_out] = bias
        prepared.append((jnp.asarray(Mp, dtype=jnp.bfloat16),
                         jnp.asarray(bp, dtype=jnp.float32)))
        k_in = k_out
    return tuple(prepared)


# ----------------------------------------------------------------------------
# ConvEncoder forward (== enc_conv(x)); input x is NCHW (PyTorch convention)
# ----------------------------------------------------------------------------
def conv_encoder_forward(x_nchw, prepared, dimH):
    B = x_nchw.shape[0]
    x_flat = x_nchw.reshape(B, -1).astype(jnp.bfloat16)   # PyTorch NCHW flatten (free)
    out = fused_net(x_flat, prepared)                      # one pallas_call, whole net
    return out[:B, :dimH]


# ----------------------------------------------------------------------------
# Plain-JAX reference (f32, NCHW, PyTorch semantics) for a sanity check
# ----------------------------------------------------------------------------
def reference_forward(x, params):
    h = x
    for (w, b) in params["convs"]:
        h = jax.lax.conv_general_dilated(
            h, w, window_strides=(2, 2), padding=((2, 2), (2, 2)),
            dimension_numbers=("NCHW", "OIHW", "NCHW"))
        h = jax.nn.relu(h + b.reshape(1, -1, 1, 1))
    h_flat = h.reshape(h.shape[0], -1)                     # NCHW flatten, PyTorch order
    w_fc, b_fc = params["fc"]
    return jax.nn.relu(h_flat @ w_fc + b_fc)


if __name__ == "__main__":
    # Small CIFAR-10-like config: input (3, 16, 16), n_channel=4 -> [4, 8, 16], dimH=32
    key = jax.random.PRNGKey(0)
    k_x, k_p = jax.random.split(key)

    batch, in_c, spatial = 2, 3, 16
    n_channel, dimH = 4, 32
    layer_channels = [n_channel, n_channel * 2, n_channel * 4]
    filter_width = 5

    x = jax.random.normal(k_x, (batch, in_c, spatial, spatial), jnp.float32)
    params = init_params(k_p, in_c, layer_channels, filter_width, spatial, dimH)
    prepared = prepare_params(params, in_c, spatial)        # jnp arrays only (jit-safe)

    fwd = jax.jit(conv_encoder_forward, static_argnums=(2,))
    out = jax.block_until_ready(fwd(x, prepared, dimH))
    assert out.shape == (batch, dimH), out.shape

    # Numerical sanity check vs f32 reference (bf16 MXU operands -> relaxed tol).
    ref = jax.block_until_ready(reference_forward(x, params))
    max_err = float(jnp.max(jnp.abs(out - ref)))
    assert max_err < 1e-1, f"max abs err {max_err}"

    print("KERNEL_OK")
</pallas_src>

<mosaic_0001>
module attributes {stable_mosaic.version = 11 : i64} {
  func.func @_fused_net_kernel(%arg0: i32, %arg1: memref<8x768xbf16, #tpu.memory_space<vmem>>, %arg2: memref<768x640xbf16, #tpu.memory_space<vmem>>, %arg3: memref<1x640xf32, #tpu.memory_space<vmem>>, %arg4: memref<640x512xbf16, #tpu.memory_space<vmem>>, %arg5: memref<1x512xf32, #tpu.memory_space<vmem>>, %arg6: memref<512x128xbf16, #tpu.memory_space<vmem>>, %arg7: memref<1x128xf32, #tpu.memory_space<vmem>>, %arg8: memref<128x128xbf16, #tpu.memory_space<vmem>>, %arg9: memref<1x128xf32, #tpu.memory_space<vmem>>, %arg10: memref<8x128xf32, #tpu.memory_space<vmem>>) attributes {dimension_semantics = [#tpu.dimension_semantics<parallel>], iteration_bounds = array<i64: 1>, scalar_prefetch = 0 : i64, scratch_operands = 0 : i64, tpu.core_type = #tpu.core_type<tc>, window_params = [{transform_indices = @transform_0, window_bounds = array<i64: 8, 768>}, {pipeline_mode = #tpu.pipeline_mode<synchronous>, transform_indices = @transform_1, window_bounds = array<i64: 768, 640>}, {pipeline_mode = #tpu.pipeline_mode<synchronous>, transform_indices = @transform_2, window_bounds = array<i64: 1, 640>}, {pipeline_mode = #tpu.pipeline_mode<synchronous>, transform_indices = @transform_3, window_bounds = array<i64: 640, 512>}, {pipeline_mode = #tpu.pipeline_mode<synchronous>, transform_indices = @transform_4, window_bounds = array<i64: 1, 512>}, {pipeline_mode = #tpu.pipeline_mode<synchronous>, transform_indices = @transform_5, window_bounds = array<i64: 512, 128>}, {pipeline_mode = #tpu.pipeline_mode<synchronous>, transform_indices = @transform_6, window_bounds = array<i64: 1, 128>}, {pipeline_mode = #tpu.pipeline_mode<synchronous>, transform_indices = @transform_7, window_bounds = array<i64: 128, 128>}, {pipeline_mode = #tpu.pipeline_mode<synchronous>, transform_indices = @transform_8, window_bounds = array<i64: 1, 128>}, {transform_indices = @transform_9, window_bounds = array<i64: 8, 128>}]} {
    %c0 = arith.constant 0 : index
    %c0_0 = arith.constant 0 : index
    %0 = vector.load %arg1[%c0, %c0_0] : memref<8x768xbf16, #tpu.memory_space<vmem>>, vector<8x768xbf16>
    %c0_1 = arith.constant 0 : index
    %c0_2 = arith.constant 0 : index
    %1 = vector.load %arg2[%c0_1, %c0_2] : memref<768x640xbf16, #tpu.memory_space<vmem>>, vector<768x640xbf16>
    %c0_3 = arith.constant 0 : index
    %c0_4 = arith.constant 0 : index
    %2 = vector.load %arg3[%c0_3, %c0_4] : memref<1x640xf32, #tpu.memory_space<vmem>>, vector<1x640xf32>
    %cst = arith.constant dense<0.000000e+00> : vector<8x640xf32>
    %3 = tpu.matmul %0, %1, %cst {dimension_numbers = #tpu.dot_dimension_numbers<[1], [0], [0], [1], [0, 0, 1, 1], [], []>} : vector<8x768xbf16>, vector<768x640xbf16>, vector<8x640xf32> -> vector<8x640xf32>
    %4 = vector.broadcast %2 : vector<1x640xf32> to vector<8x640xf32>
    %5 = arith.addf %3, %4 : vector<8x640xf32>
    %cst_5 = arith.constant 0.000000e+00 : f32
    %6 = vector.broadcast %cst_5 : f32 to vector<8x640xf32>
    %7 = arith.maximumf %5, %6 : vector<8x640xf32>
    %8 = arith.truncf %7 : vector<8x640xf32> to vector<8x640xbf16>
    %c0_6 = arith.constant 0 : index
    %c0_7 = arith.constant 0 : index
    %9 = vector.load %arg4[%c0_6, %c0_7] : memref<640x512xbf16, #tpu.memory_space<vmem>>, vector<640x512xbf16>
    %c0_8 = arith.constant 0 : index
    %c0_9 = arith.constant 0 : index
    %10 = vector.load %arg5[%c0_8, %c0_9] : memref<1x512xf32, #tpu.memory_space<vmem>>, vector<1x512xf32>
    %cst_10 = arith.constant dense<0.000000e+00> : vector<8x512xf32>
    %11 = tpu.matmul %8, %9, %cst_10 {dimension_numbers = #tpu.dot_dimension_numbers<[1], [0], [0], [1], [0, 0, 1, 1], [], []>} : vector<8x640xbf16>, vector<640x512xbf16>, vector<8x512xf32> -> vector<8x512xf32>
    %12 = vector.broadcast %10 : vector<1x512xf32> to vector<8x512xf32>
    %13 = arith.addf %11, %12 : vector<8x512xf32>
    %cst_11 = arith.constant 0.000000e+00 : f32
    %14 = vector.broadcast %cst_11 : f32 to vector<8x512xf32>
    %15 = arith.maximumf %13, %14 : vector<8x512xf32>
    %16 = arith.truncf %15 : vector<8x512xf32> to vector<8x512xbf16>
    %c0_12 = arith.constant 0 : index
    %c0_13 = arith.constant 0 : index
    %17 = vector.load %arg6[%c0_12, %c0_13] : memref<512x128xbf16, #tpu.memory_space<vmem>>, vector<512x128xbf16>
    %c0_14 = arith.constant 0 : index
    %c0_15 = arith.constant 0 : index
    %18 = vector.load %arg7[%c0_14, %c0_15] : memref<1x128xf32, #tpu.memory_space<vmem>>, vector<1x128xf32>
    %cst_16 = arith.constant dense<0.000000e+00> : vector<8x128xf32>
    %19 = tpu.matmul %16, %17, %cst_16 {dimension_numbers = #tpu.dot_dimension_numbers<[1], [0], [0], [1], [0, 0, 1, 1], [], []>} : vector<8x512xbf16>, vector<512x128xbf16>, vector<8x128xf32> -> vector<8x128xf32>
    %20 = vector.broadcast %18 : vector<1x128xf32> to vector<8x128xf32>
    %21 = arith.addf %19, %20 : vector<8x128xf32>
    %cst_17 = arith.constant 0.000000e+00 : f32
    %22 = vector.broadcast %cst_17 : f32 to vector<8x128xf32>
    %23 = arith.maximumf %21, %22 : vector<8x128xf32>
    %24 = arith.truncf %23 : vector<8x128xf32> to vector<8x128xbf16>
    %c0_18 = arith.constant 0 : index
    %c0_19 = arith.constant 0 : index
    %25 = vector.load %arg8[%c0_18, %c0_19] : memref<128x128xbf16, #tpu.memory_space<vmem>>, vector<128x128xbf16>
    %c0_20 = arith.constant 0 : index
    %c0_21 = arith.constant 0 : index
    %26 = vector.load %arg9[%c0_20, %c0_21] : memref<1x128xf32, #tpu.memory_space<vmem>>, vector<1x128xf32>
    %cst_22 = arith.constant dense<0.000000e+00> : vector<8x128xf32>
    %27 = tpu.matmul %24, %25, %cst_22 {dimension_numbers = #tpu.dot_dimension_numbers<[1], [0], [0], [1], [0, 0, 1, 1], [], []>} : vector<8x128xbf16>, vector<128x128xbf16>, vector<8x128xf32> -> vector<8x128xf32>
    %28 = vector.broadcast %26 : vector<1x128xf32> to vector<8x128xf32>
    %29 = arith.addf %27, %28 : vector<8x128xf32>
    %cst_23 = arith.constant 0.000000e+00 : f32
    %30 = vector.broadcast %cst_23 : f32 to vector<8x128xf32>
    %31 = arith.maximumf %29, %30 : vector<8x128xf32>
    %c0_24 = arith.constant 0 : index
    %c0_25 = arith.constant 0 : index
    %32 = vector.load %arg10[%c0_24, %c0_25] : memref<8x128xf32, #tpu.memory_space<vmem>>, vector<8x128xf32>
    tpu.vector_store %arg10[%c0_24, %c0_25], %31 {strides = array<i32>} : memref<8x128xf32, #tpu.memory_space<vmem>>, vector<8x128xf32>,
    return
  }
  func.func @transform_0(%arg0: i32) -> (i32, i32) {
    %c0_i32 = arith.constant 0 : i32
    %c0_i32_0 = arith.constant 0 : i32
    return %arg0, %c0_i32 : i32, i32
  }
  func.func @transform_1(%arg0: i32) -> (i32, i32) {
    %c0_i32 = arith.constant 0 : i32
    %c0_i32_0 = arith.constant 0 : i32
    %c0_i32_1 = arith.constant 0 : i32
    return %c0_i32, %c0_i32_0 : i32, i32
  }
  func.func @transform_2(%arg0: i32) -> (i32, i32) {
    %c0_i32 = arith.constant 0 : i32
    %c0_i32_0 = arith.constant 0 : i32
    %c0_i32_1 = arith.constant 0 : i32
    return %c0_i32, %c0_i32_0 : i32, i32
  }
  func.func @transform_3(%arg0: i32) -> (i32, i32) {
    %c0_i32 = arith.constant 0 : i32
    %c0_i32_0 = arith.constant 0 : i32
    %c0_i32_1 = arith.constant 0 : i32
    return %c0_i32, %c0_i32_0 : i32, i32
  }
  func.func @transform_4(%arg0: i32) -> (i32, i32) {
    %c0_i32 = arith.constant 0 : i32
    %c0_i32_0 = arith.constant 0 : i32
    %c0_i32_1 = arith.constant 0 : i32
    return %c0_i32, %c0_i32_0 : i32, i32
  }
  func.func @transform_5(%arg0: i32) -> (i32, i32) {
    %c0_i32 = arith.constant 0 : i32
    %c0_i32_0 = arith.constant 0 : i32
    %c0_i32_1 = arith.constant 0 : i32
    return %c0_i32, %c0_i32_0 : i32, i32
  }
  func.func @transform_6(%arg0: i32) -> (i32, i32) {
    %c0_i32 = arith.constant 0 : i32
    %c0_i32_0 = arith.constant 0 : i32
    %c0_i32_1 = arith.constant 0 : i32
    return %c0_i32, %c0_i32_0 : i32, i32
  }
  func.func @transform_7(%arg0: i32) -> (i32, i32) {
    %c0_i32 = arith.constant 0 : i32
    %c0_i32_0 = arith.constant 0 : i32
    %c0_i32_1 = arith.constant 0 : i32
    return %c0_i32, %c0_i32_0 : i32, i32
  }
  func.func @transform_8(%arg0: i32) -> (i32, i32) {
    %c0_i32 = arith.constant 0 : i32
    %c0_i32_0 = arith.constant 0 : i32
    %c0_i32_1 = arith.constant 0 : i32
    return %c0_i32, %c0_i32_0 : i32, i32
  }
  func.func @transform_9(%arg0: i32) -> (i32, i32) {
    %c0_i32 = arith.constant 0 : i32
    %c0_i32_0 = arith.constant 0 : i32
    return %arg0, %c0_i32 : i32, i32
  }
}

</mosaic_0001>

<llo_original>
// kernel: conv_encoder_forward.1
$region0: #{conv_encoder_forward.1}
  #allocation0 [shape = 'u32[]', space=smem, size = 0x4, offset = 0x4, fixed_abs, tag = 'smem constant byte address 0x4 - core index']
  #allocation1 [shape = 'u32[144,128]{1,0:T(1,128)}', space=vmem, size = 0x12000, scoped, tag = 'internal scratch']
  %s0 = inlined_call_operand.vmem [shape: bf16[8,768], index: 0, kind: input, shape index: {}]
  %s1 = inlined_call_operand.hbm [shape: bf16[768,640], index: 1, kind: input, shape index: {}]
  %s2 = inlined_call_operand.vmem [shape: f32[1,640], index: 2, kind: input, shape index: {}]
  %s3 = inlined_call_operand.hbm [shape: bf16[640,512], index: 3, kind: input, shape index: {}]
  %s4 = inlined_call_operand.vmem [shape: f32[1,512], index: 4, kind: input, shape index: {}]
  %s5 = inlined_call_operand.hbm [shape: bf16[512,128], index: 5, kind: input, shape index: {}]
  %s6 = inlined_call_operand.vmem [shape: f32[1,128], index: 6, kind: input, shape index: {}]
  %s7 = inlined_call_operand.vmem [shape: bf16[128,128], index: 7, kind: input, shape index: {}]
  %s8 = inlined_call_operand.vmem [shape: f32[1,128], index: 8, kind: input, shape index: {}]
  %s9 = inlined_call_operand.vmem [shape: f32[8,128], index: 9, kind: output, shape index: {}]
  %s10 = sld [smem:[#allocation0]]
  $region58: #{conv_encoder_forward.1} parent=0
    _
  %s12 = ssub.s32 1, %s10
  %s13 = scalar_select 0, %s12, %s10
  $region1: #{conv_encoder_forward.1} parent=0
    #allocation2 [shape = 'u8[983040]{0}', space=vmem, size = 0xf0000, scoped, tag = 'input window, operand 1, single buffered']
    #allocation3 [shape = 's32[1]{0}', space=sflag, size = 0x4, scoped, tag = 'scoped memory for conv_encoder_forward.1']
    #allocation4 [shape = 'u8[655360]{0}', space=vmem, size = 0xa0000, scoped, tag = 'input window, operand 3, single buffered']
    #allocation5 [shape = 's32[1]{0}', space=sflag, size = 0x4, scoped, tag = 'scoped memory for conv_encoder_forward.1']
    #allocation6 [shape = 'u8[131072]{0}', space=vmem, size = 0x20000, scoped, tag = 'input window, operand 5, single buffered']
    %14 = vsyncpa [#allocation3], 0
    %15 = vsyncpa [#allocation5], 0
    // Predicated region
    $region2: #{conv_encoder_forward.1} parent=1 // pred_check
      _
    $region3: #{conv_encoder_forward.1} parent=1 // pred_check_branch
      %17 = sbr.rel (0) target = $region5
    $region4: #{conv_encoder_forward.1} parent=1 // pred_region
      _
    $region5: #{conv_encoder_forward.1} parent=1 // pred_fallthru
      _
    // Predicated region
    $region6: #{conv_encoder_forward.1} parent=1 // pred_check
      _
    $region7: #{conv_encoder_forward.1} parent=1 // pred_check_branch
      %19 = sbr.rel (0) target = $region9
    $region8: #{conv_encoder_forward.1} parent=1 // pred_region
      %s21 = ssub.s32 30720, 30720
      %22 = vsyncadd [#allocation3], %s21
      %s23 = sshll.u32 [#allocation2], 4
      %s24 = int_to_ptr.vmem [resolvable:$true] %s23
      %29 = dma.hbm_to_vmem [thread:$0]  %s1, 30720, %s24, [#allocation3], 320, 320, 20
    $region9: #{conv_encoder_forward.1} parent=1 // pred_fallthru
      _
    // Predicated region
    $region10: #{conv_encoder_forward.1} parent=1 // pred_check
      _
    $region11: #{conv_encoder_forward.1} parent=1 // pred_check_branch
      %31 = sbr.rel (0) target = $region13
    $region12: #{conv_encoder_forward.1} parent=1 // pred_region
      _
    $region13: #{conv_encoder_forward.1} parent=1 // pred_fallthru
      _
    // Predicated region
    $region14: #{conv_encoder_forward.1} parent=1 // pred_check
      _
    $region15: #{conv_encoder_forward.1} parent=1 // pred_check_branch
      %33 = sbr.rel (0) target = $region17
    $region16: #{conv_encoder_forward.1} parent=1 // pred_region
      %s35 = ssub.s32 20480, 20480
      %36 = vsyncadd [#allocation5], %s35
      %s37 = sshll.u32 [#allocation4], 4
      %s38 = int_to_ptr.vmem [resolvable:$true] %s37
      %43 = dma.hbm_to_vmem [thread:$0]  %s3, 20480, %s38, [#allocation5], 256, 256, 16
    $region17: #{conv_encoder_forward.1} parent=1 // pred_fallthru
      _
    // Predicated region
    $region18: #{conv_encoder_forward.1} parent=1 // pred_check
      _
    $region19: #{conv_encoder_forward.1} parent=1 // pred_check_branch
      %45 = sbr.rel (0) target = $region21
    $region20: #{conv_encoder_forward.1} parent=1 // pred_region
      _
    $region21: #{conv_encoder_forward.1} parent=1 // pred_fallthru
      _
    // Predicated region
    $region22: #{conv_encoder_forward.1} parent=1 // pred_check
      _
    $region23: #{conv_encoder_forward.1} parent=1 // pred_check_branch
      %47 = sbr.rel (0) target = $region25
    $region24: #{conv_encoder_forward.1} parent=1 // pred_region
      %s49 = ssub.s32 4096, 4096
      %50 = vsyncadd [#allocation5], %s49
      %s51 = sshll.u32 [#allocation6], 4
      %s52 = int_to_ptr.vmem [resolvable:$true] %s51
      %57 = dma.hbm_to_vmem [thread:$0]  %s5, 4096, %s52, [#allocation5], 64, 64, 4
    $region25: #{conv_encoder_forward.1} parent=1 // pred_fallthru
      _
    // Predicated region
    $region26: #{conv_encoder_forward.1} parent=1 // pred_check
      _
    $region27: #{conv_encoder_forward.1} parent=1 // pred_check_branch
      %59 = sbr.rel (0) target = $region29
    $region28: #{conv_encoder_forward.1} parent=1 // pred_region
      _
    $region29: #{conv_encoder_forward.1} parent=1 // pred_fallthru
      _
    // Predicated region
    $region30: #{conv_encoder_forward.1} parent=1 // pred_check
      _
    $region31: #{conv_encoder_forward.1} parent=1 // pred_check_branch
      %61 = sbr.rel (0) target = $region33
    $region32: #{conv_encoder_forward.1} parent=1 // pred_region
      _
    $region33: #{conv_encoder_forward.1} parent=1 // pred_fallthru
      _
    // Predicated region
    $region34: #{conv_encoder_forward.1} parent=1 // pred_check
      _
    $region35: #{conv_encoder_forward.1} parent=1 // pred_check_branch
      %63 = sbr.rel (0) target = $region37
    $region36: #{conv_encoder_forward.1} parent=1 // pred_region
      _
    $region37: #{conv_encoder_forward.1} parent=1 // pred_fallthru
      _
    // Predicated region
    $region38: #{conv_encoder_forward.1} parent=1 // pred_check
      _
    $region39: #{conv_encoder_forward.1} parent=1 // pred_check_branch
      %65 = sbr.rel (0) target = $region41
    $region40: #{conv_encoder_forward.1} parent=1 // pred_region
      %66 = dma.done [#allocation3], 30720
    $region41: #{conv_encoder_forward.1} parent=1 // pred_fallthru
      _
    // Predicated region
    $region42: #{conv_encoder_forward.1} parent=1 // pred_check
      _
    $region43: #{conv_encoder_forward.1} parent=1 // pred_check_branch
      %68 = sbr.rel (0) target = $region45
    $region44: #{conv_encoder_forward.1} parent=1 // pred_region
      %69 = dma.done [#allocation5], 20480
    $region45: #{conv_encoder_forward.1} parent=1 // pred_fallthru
      _
    // Predicated region
    $region46: #{conv_encoder_forward.1} parent=1 // pred_check
      _
    $region47: #{conv_encoder_forward.1} parent=1 // pred_check_branch
      %71 = sbr.rel (0) target = $region49
    $region48: #{conv_encoder_forward.1} parent=1 // pred_region
      %72 = dma.done [#allocation5], 4096
    $region49: #{conv_encoder_forward.1} parent=1 // pred_fallthru
      _
    %v74 = vld [vmem:[%s0] sm:$0xff]
    %v75 = vld [vmem:[%s0 + $0x8] sm:$0xff]
    %v76 = vld [vmem:[%s0 + $0x10] sm:$0xff]
    %v77 = vld [vmem:[#allocation2] sm:$0xff]
    %v78 = vld [vmem:[#allocation2 + $0x8] sm:$0xff]
    %v79 = vld [vmem:[#allocation2 + $0x10] sm:$0xf]
    %v80 = vld [vmem:[#allocation2 + $0x14] sm:$0xff]
    %v81 = vld [vmem:[#allocation2 + $0x1c] sm:$0xff]
    %v82 = vld [vmem:[#allocation2 + $0x24] sm:$0xf]
    %v83 = vld [vmem:[#allocation2 + $0x28] sm:$0xff]
    %v84 = vld [vmem:[#allocation2 + $0x30] sm:$0xff]
    %v85 = vld [vmem:[#allocation2 + $0x38] sm:$0xf]
    %v86 = vld [vmem:[#allocation2 + $0x3c] sm:$0xff]
    %v87 = vld [vmem:[#allocation2 + $0x44] sm:$0xff]
    %v88 = vld [vmem:[#allocation2 + $0x4c] sm:$0xf]
    %v89 = vld [vmem:[#allocation2 + $0x50] sm:$0xff]
    %v90 = vld [vmem:[#allocation2 + $0x58] sm:$0xff]
    %v91 = vld [vmem:[#allocation2 + $0x60] sm:$0xf]
    %v92 = vld [vmem:[#allocation2 + $0x64] sm:$0xff]
    %v93 = vld [vmem:[#allocation2 + $0x6c] sm:$0xff]
    %v94 = vld [vmem:[#allocation2 + $0x74] sm:$0xf]
    %v95 = vld [vmem:[#allocation2 + $0x78] sm:$0xff]
    %v96 = vld [vmem:[#allocation2 + $0x80] sm:$0xff]
    %v97 = vld [vmem:[#allocation2 + $0x88] sm:$0xf]
    %v98 = vld [vmem:[#allocation2 + $0x8c] sm:$0xff]
    %v99 = vld [vmem:[#allocation2 + $0x94] sm:$0xff]
    %v100 = vld [vmem:[#allocation2 + $0x9c] sm:$0xf]
    %v101 = vld [vmem:[#allocation2 + $0xa0] sm:$0xff]
    %v102 = vld [vmem:[#allocation2 + $0xa8] sm:$0xff]
    %v103 = vld [vmem:[#allocation2 + $0xb0] sm:$0xf]
    %v104 = vld [vmem:[#allocation2 + $0xb4] sm:$0xff]
    %v105 = vld [vmem:[#allocation2 + $0xbc] sm:$0xff]
    %v106 = vld [vmem:[#allocation2 + $0xc4] sm:$0xf]
    %v107 = vld [vmem:[#allocation2 + $0xc8] sm:$0xff]
    %v108 = vld [vmem:[#allocation2 + $0xd0] sm:$0xff]
    %v109 = vld [vmem:[#allocation2 + $0xd8] sm:$0xf]
    %v110 = vld [vmem:[#allocation2 + $0xdc] sm:$0xff]
    %v111 = vld [vmem:[#allocation2 + $0xe4] sm:$0xff]
    %v112 = vld [vmem:[#allocation2 + $0xec] sm:$0xf]
    %v113 = vld [vmem:[#allocation2 + $0xf0] sm:$0xff]
    %v114 = vld [vmem:[#allocation2 + $0xf8] sm:$0xff]
    %v115 = vld [vmem:[#allocation2 + $0x100] sm:$0xf]
    %v116 = vld [vmem:[#allocation2 + $0x104] sm:$0xff]
    %v117 = vld [vmem:[#allocation2 + $0x10c] sm:$0xff]
    %v118 = vld [vmem:[#allocation2 + $0x114] sm:$0xf]
    %v119 = vld [vmem:[#allocation2 + $0x118] sm:$0xff]
    %v120 = vld [vmem:[#allocation2 + $0x120] sm:$0xff]
    %v121 = vld [vmem:[#allocation2 + $0x128] sm:$0xf]
    %v122 = vld [vmem:[#allocation2 + $0x12c] sm:$0xff]
    %v123 = vld [vmem:[#allocation2 + $0x134] sm:$0xff]
    %v124 = vld [vmem:[#allocation2 + $0x13c] sm:$0xf]
    %v125 = vld [vmem:[#allocation2 + $0x140] sm:$0xff]
    %v126 = vld [vmem:[#allocation2 + $0x148] sm:$0xff]
    %v127 = vld [vmem:[#allocation2 + $0x150] sm:$0xf]
    %v128 = vld [vmem:[#allocation2 + $0x154] sm:$0xff]
    %v129 = vld [vmem:[#allocation2 + $0x15c] sm:$0xff]
    %v130 = vld [vmem:[#allocation2 + $0x164] sm:$0xf]
    %v131 = vld [vmem:[#allocation2 + $0x168] sm:$0xff]
    %v132 = vld [vmem:[#allocation2 + $0x170] sm:$0xff]
    %v133 = vld [vmem:[#allocation2 + $0x178] sm:$0xf]
    %v134 = vld [vmem:[#allocation2 + $0x17c] sm:$0xff]
    %v135 = vld [vmem:[#allocation2 + $0x184] sm:$0xff]
    %v136 = vld [vmem:[#allocation2 + $0x18c] sm:$0xf]
    %v137 = vld [vmem:[#allocation2 + $0x190] sm:$0xff]
    %v138 = vld [vmem:[#allocation2 + $0x198] sm:$0xff]
    %v139 = vld [vmem:[#allocation2 + $0x1a0] sm:$0xf]
    %v140 = vld [vmem:[#allocation2 + $0x1a4] sm:$0xff]
    %v141 = vld [vmem:[#allocation2 + $0x1ac] sm:$0xff]
    %v142 = vld [vmem:[#allocation2 + $0x1b4] sm:$0xf]
    %v143 = vld [vmem:[#allocation2 + $0x1b8] sm:$0xff]
    %v144 = vld [vmem:[#allocation2 + $0x1c0] sm:$0xff]
    %v145 = vld [vmem:[#allocation2 + $0x1c8] sm:$0xf]
    %v146 = vld [vmem:[#allocation2 + $0x1cc] sm:$0xff]
    %v147 = vld [vmem:[#allocation2 + $0x1d4] sm:$0xff]
    %v148 = vld [vmem:[#allocation2 + $0x1dc] sm:$0xf]
    %v149 = vld [vmem:[#allocation2 + $0x1e0] sm:$0xff]
    %v150 = vld [vmem:[#allocation2 + $0x1e8] sm:$0xff]
    %v151 = vld [vmem:[#allocation2 + $0x1f0] sm:$0xf]
    %v152 = vld [vmem:[#allocation2 + $0x1f4] sm:$0xff]
    %v153 = vld [vmem:[#allocation2 + $0x1fc] sm:$0xff]
    %v154 = vld [vmem:[#allocation2 + $0x204] sm:$0xf]
    %v155 = vld [vmem:[#allocation2 + $0x208] sm:$0xff]
    %v156 = vld [vmem:[#allocation2 + $0x210] sm:$0xff]
    %v157 = vld [vmem:[#allocation2 + $0x218] sm:$0xf]
    %v158 = vld [vmem:[#allocation2 + $0x21c] sm:$0xff]
    %v159 = vld [vmem:[#allocation2 + $0x224] sm:$0xff]
    %v160 = vld [vmem:[#allocation2 + $0x22c] sm:$0xf]
    %v161 = vld [vmem:[#allocation2 + $0x230] sm:$0xff]
    %v162 = vld [vmem:[#allocation2 + $0x238] sm:$0xff]
    %v163 = vld [vmem:[#allocation2 + $0x240] sm:$0xf]
    %v164 = vld [vmem:[#allocation2 + $0x244] sm:$0xff]
    %v165 = vld [vmem:[#allocation2 + $0x24c] sm:$0xff]
    %v166 = vld [vmem:[#allocation2 + $0x254] sm:$0xf]
    %v167 = vld [vmem:[#allocation2 + $0x258] sm:$0xff]
    %v168 = vld [vmem:[#allocation2 + $0x260] sm:$0xff]
    %v169 = vld [vmem:[#allocation2 + $0x268] sm:$0xf]
    %v170 = vld [vmem:[#allocation2 + $0x26c] sm:$0xff]
    %v171 = vld [vmem:[#allocation2 + $0x274] sm:$0xff]
    %v172 = vld [vmem:[#allocation2 + $0x27c] sm:$0xf]
    %v173 = vld [vmem:[#allocation2 + $0x280] sm:$0xff]
    %v174 = vld [vmem:[#allocation2 + $0x288] sm:$0xff]
    %v175 = vld [vmem:[#allocation2 + $0x290] sm:$0xf]
    %v176 = vld [vmem:[#allocation2 + $0x294] sm:$0xff]
    %v177 = vld [vmem:[#allocation2 + $0x29c] sm:$0xff]
    %v178 = vld [vmem:[#allocation2 + $0x2a4] sm:$0xf]
    %v179 = vld [vmem:[#allocation2 + $0x2a8] sm:$0xff]
    %v180 = vld [vmem:[#allocation2 + $0x2b0] sm:$0xff]
    %v181 = vld [vmem:[#allocation2 + $0x2b8] sm:$0xf]
    %v182 = vld [vmem:[#allocation2 + $0x2bc] sm:$0xff]
    %v183 = vld [vmem:[#allocation2 + $0x2c4] sm:$0xff]
    %v184 = vld [vmem:[#allocation2 + $0x2cc] sm:$0xf]
    %v185 = vld [vmem:[#allocation2 + $0x2d0] sm:$0xff]
    %v186 = vld [vmem:[#allocation2 + $0x2d8] sm:$0xff]
    %v187 = vld [vmem:[#allocation2 + $0x2e0] sm:$0xf]
    %v188 = vld [vmem:[#allocation2 + $0x2e4] sm:$0xff]
    %v189 = vld [vmem:[#allocation2 + $0x2ec] sm:$0xff]
    %v190 = vld [vmem:[#allocation2 + $0x2f4] sm:$0xf]
    %v191 = vld [vmem:[#allocation2 + $0x2f8] sm:$0xff]
    %v192 = vld [vmem:[#allocation2 + $0x300] sm:$0xff]
    %v193 = vld [vmem:[#allocation2 + $0x308] sm:$0xf]
    %v194 = vld [vmem:[#allocation2 + $0x30c] sm:$0xff]
    %v195 = vld [vmem:[#allocation2 + $0x314] sm:$0xff]
    %v196 = vld [vmem:[#allocation2 + $0x31c] sm:$0xf]
    %v197 = vld [vmem:[#allocation2 + $0x320] sm:$0xff]
    %v198 = vld [vmem:[#allocation2 + $0x328] sm:$0xff]
    %v199 = vld [vmem:[#allocation2 + $0x330] sm:$0xf]
    %v200 = vld [vmem:[#allocation2 + $0x334] sm:$0xff]
    %v201 = vld [vmem:[#allocation2 + $0x33c] sm:$0xff]
    %v202 = vld [vmem:[#allocation2 + $0x344] sm:$0xf]
    %v203 = vld [vmem:[#allocation2 + $0x348] sm:$0xff]
    %v204 = vld [vmem:[#allocation2 + $0x350] sm:$0xff]
    %v205 = vld [vmem:[#allocation2 + $0x358] sm:$0xf]
    %v206 = vld [vmem:[#allocation2 + $0x35c] sm:$0xff]
    %v207 = vld [vmem:[#allocation2 + $0x364] sm:$0xff]
    %v208 = vld [vmem:[#allocation2 + $0x36c] sm:$0xf]
    %v209 = vld [vmem:[#allocation2 + $0x370] sm:$0xff]
    %v210 = vld [vmem:[#allocation2 + $0x378] sm:$0xff]
    %v211 = vld [vmem:[#allocation2 + $0x380] sm:$0xf]
    %v212 = vld [vmem:[#allocation2 + $0x384] sm:$0xff]
    %v213 = vld [vmem:[#allocation2 + $0x38c] sm:$0xff]
    %v214 = vld [vmem:[#allocation2 + $0x394] sm:$0xf]
    %v215 = vld [vmem:[#allocation2 + $0x398] sm:$0xff]
    %v216 = vld [vmem:[#allocation2 + $0x3a0] sm:$0xff]
    %v217 = vld [vmem:[#allocation2 + $0x3a8] sm:$0xf]
    %v218 = vld [vmem:[#allocation2 + $0x3ac] sm:$0xff]
    %v219 = vld [vmem:[#allocation2 + $0x3b4] sm:$0xff]
    %v220 = vld [vmem:[#allocation2 + $0x3bc] sm:$0xf]
    %v221 = vld [vmem:[#allocation2 + $0x3c0] sm:$0xff]
    %v222 = vld [vmem:[#allocation2 + $0x3c8] sm:$0xff]
    %v223 = vld [vmem:[#allocation2 + $0x3d0] sm:$0xf]
    %v224 = vld [vmem:[#allocation2 + $0x3d4] sm:$0xff]
    %v225 = vld [vmem:[#allocation2 + $0x3dc] sm:$0xff]
    %v226 = vld [vmem:[#allocation2 + $0x3e4] sm:$0xf]
    %v227 = vld [vmem:[#allocation2 + $0x3e8] sm:$0xff]
    %v228 = vld [vmem:[#allocation2 + $0x3f0] sm:$0xff]
    %v229 = vld [vmem:[#allocation2 + $0x3f8] sm:$0xf]
    %v230 = vld [vmem:[#allocation2 + $0x3fc] sm:$0xff]
    %v231 = vld [vmem:[#allocation2 + $0x404] sm:$0xff]
    %v232 = vld [vmem:[#allocation2 + $0x40c] sm:$0xf]
    %v233 = vld [vmem:[#allocation2 + $0x410] sm:$0xff]
    %v234 = vld [vmem:[#allocation2 + $0x418] sm:$0xff]
    %v235 = vld [vmem:[#allocation2 + $0x420] sm:$0xf]
    %v236 = vld [vmem:[#allocation2 + $0x424] sm:$0xff]
    %v237 = vld [vmem:[#allocation2 + $0x42c] sm:$0xff]
    %v238 = vld [vmem:[#allocation2 + $0x434] sm:$0xf]
    %v239 = vld [vmem:[#allocation2 + $0x438] sm:$0xff]
    %v240 = vld [vmem:[#allocation2 + $0x440] sm:$0xff]
    %v241 = vld [vmem:[#allocation2 + $0x448] sm:$0xf]
    %v242 = vld [vmem:[#allocation2 + $0x44c] sm:$0xff]
    %v243 = vld [vmem:[#allocation2 + $0x454] sm:$0xff]
    %v244 = vld [vmem:[#allocation2 + $0x45c] sm:$0xf]
    %v245 = vld [vmem:[#allocation2 + $0x460] sm:$0xff]
    %v246 = vld [vmem:[#allocation2 + $0x468] sm:$0xff]
    %v247 = vld [vmem:[#allocation2 + $0x470] sm:$0xf]
    %v248 = vld [vmem:[#allocation2 + $0x474] sm:$0xff]
    %v249 = vld [vmem:[#allocation2 + $0x47c] sm:$0xff]
    %v250 = vld [vmem:[#allocation2 + $0x484] sm:$0xf]
    %v251 = vld [vmem:[#allocation2 + $0x488] sm:$0xff]
    %v252 = vld [vmem:[#allocation2 + $0x490] sm:$0xff]
    %v253 = vld [vmem:[#allocation2 + $0x498] sm:$0xf]
    %v254 = vld [vmem:[#allocation2 + $0x49c] sm:$0xff]
    %v255 = vld [vmem:[#allocation2 + $0x4a4] sm:$0xff]
    %v256 = vld [vmem:[#allocation2 + $0x4ac] sm:$0xf]
    %v257 = vld [vmem:[#allocation2 + $0x4b0] sm:$0xff]
    %v258 = vld [vmem:[#allocation2 + $0x4b8] sm:$0xff]
    %v259 = vld [vmem:[#allocation2 + $0x4c0] sm:$0xf]
    %v260 = vld [vmem:[#allocation2 + $0x4c4] sm:$0xff]
    %v261 = vld [vmem:[#allocation2 + $0x4cc] sm:$0xff]
    %v262 = vld [vmem:[#allocation2 + $0x4d4] sm:$0xf]
    %v263 = vld [vmem:[#allocation2 + $0x4d8] sm:$0xff]
    %v264 = vld [vmem:[#allocation2 + $0x4e0] sm:$0xff]
    %v265 = vld [vmem:[#allocation2 + $0x4e8] sm:$0xf]
    %v266 = vld [vmem:[#allocation2 + $0x4ec] sm:$0xff]
    %v267 = vld [vmem:[#allocation2 + $0x4f4] sm:$0xff]
    %v268 = vld [vmem:[#allocation2 + $0x4fc] sm:$0xf]
    %v269 = vld [vmem:[#allocation2 + $0x500] sm:$0xff]
    %v270 = vld [vmem:[#allocation2 + $0x508] sm:$0xff]
    %v271 = vld [vmem:[#allocation2 + $0x510] sm:$0xf]
    %v272 = vld [vmem:[#allocation2 + $0x514] sm:$0xff]
    %v273 = vld [vmem:[#allocation2 + $0x51c] sm:$0xff]
    %v274 = vld [vmem:[#allocation2 + $0x524] sm:$0xf]
    %v275 = vld [vmem:[#allocation2 + $0x528] sm:$0xff]
    %v276 = vld [vmem:[#allocation2 + $0x530] sm:$0xff]
    %v277 = vld [vmem:[#allocation2 + $0x538] sm:$0xf]
    %v278 = vld [vmem:[#allocation2 + $0x53c] sm:$0xff]
    %v279 = vld [vmem:[#allocation2 + $0x544] sm:$0xff]
    %v280 = vld [vmem:[#allocation2 + $0x54c] sm:$0xf]
    %v281 = vld [vmem:[#allocation2 + $0x550] sm:$0xff]
    %v282 = vld [vmem:[#allocation2 + $0x558] sm:$0xff]
    %v283 = vld [vmem:[#allocation2 + $0x560] sm:$0xf]
    %v284 = vld [vmem:[#allocation2 + $0x564] sm:$0xff]
    %v285 = vld [vmem:[#allocation2 + $0x56c] sm:$0xff]
    %v286 = vld [vmem:[#allocation2 + $0x574] sm:$0xf]
    %v287 = vld [vmem:[#allocation2 + $0x578] sm:$0xff]
    %v288 = vld [vmem:[#allocation2 + $0x580] sm:$0xff]
    %v289 = vld [vmem:[#allocation2 + $0x588] sm:$0xf]
    %v290 = vld [vmem:[#allocation2 + $0x58c] sm:$0xff]
    %v291 = vld [vmem:[#allocation2 + $0x594] sm:$0xff]
    %v292 = vld [vmem:[#allocation2 + $0x59c] sm:$0xf]
    %v293 = vld [vmem:[#allocation2 + $0x5a0] sm:$0xff]
    %v294 = vld [vmem:[#allocation2 + $0x5a8] sm:$0xff]
    %v295 = vld [vmem:[#allocation2 + $0x5b0] sm:$0xf]
    %v296 = vld [vmem:[#allocation2 + $0x5b4] sm:$0xff]
    %v297 = vld [vmem:[#allocation2 + $0x5bc] sm:$0xff]
    %v298 = vld [vmem:[#allocation2 + $0x5c4] sm:$0xf]
    %v299 = vld [vmem:[#allocation2 + $0x5c8] sm:$0xff]
    %v300 = vld [vmem:[#allocation2 + $0x5d0] sm:$0xff]
    %v301 = vld [vmem:[#allocation2 + $0x5d8] sm:$0xf]
    %v302 = vld [vmem:[#allocation2 + $0x5dc] sm:$0xff]
    %v303 = vld [vmem:[#allocation2 + $0x5e4] sm:$0xff]
    %v304 = vld [vmem:[#allocation2 + $0x5ec] sm:$0xf]
    %v305 = vld [vmem:[#allocation2 + $0x5f0] sm:$0xff]
    %v306 = vld [vmem:[#allocation2 + $0x5f8] sm:$0xff]
    %v307 = vld [vmem:[#allocation2 + $0x600] sm:$0xf]
    %v308 = vld [vmem:[#allocation2 + $0x604] sm:$0xff]
    %v309 = vld [vmem:[#allocation2 + $0x60c] sm:$0xff]
    %v310 = vld [vmem:[#allocation2 + $0x614] sm:$0xf]
    %v311 = vld [vmem:[#allocation2 + $0x618] sm:$0xff]
    %v312 = vld [vmem:[#allocation2 + $0x620] sm:$0xff]
    %v313 = vld [vmem:[#allocation2 + $0x628] sm:$0xf]
    %v314 = vld [vmem:[#allocation2 + $0x62c] sm:$0xff]
    %v315 = vld [vmem:[#allocation2 + $0x634] sm:$0xff]
    %v316 = vld [vmem:[#allocation2 + $0x63c] sm:$0xf]
    %v317 = vld [vmem:[#allocation2 + $0x640] sm:$0xff]
    %v318 = vld [vmem:[#allocation2 + $0x648] sm:$0xff]
    %v319 = vld [vmem:[#allocation2 + $0x650] sm:$0xf]
    %v320 = vld [vmem:[#allocation2 + $0x654] sm:$0xff]
    %v321 = vld [vmem:[#allocation2 + $0x65c] sm:$0xff]
    %v322 = vld [vmem:[#allocation2 + $0x664] sm:$0xf]
    %v323 = vld [vmem:[#allocation2 + $0x668] sm:$0xff]
    %v324 = vld [vmem:[#allocation2 + $0x670] sm:$0xff]
    %v325 = vld [vmem:[#allocation2 + $0x678] sm:$0xf]
    %v326 = vld [vmem:[#allocation2 + $0x67c] sm:$0xff]
    %v327 = vld [vmem:[#allocation2 + $0x684] sm:$0xff]
    %v328 = vld [vmem:[#allocation2 + $0x68c] sm:$0xf]
    %v329 = vld [vmem:[#allocation2 + $0x690] sm:$0xff]
    %v330 = vld [vmem:[#allocation2 + $0x698] sm:$0xff]
    %v331 = vld [vmem:[#allocation2 + $0x6a0] sm:$0xf]
    %v332 = vld [vmem:[#allocation2 + $0x6a4] sm:$0xff]
    %v333 = vld [vmem:[#allocation2 + $0x6ac] sm:$0xff]
    %v334 = vld [vmem:[#allocation2 + $0x6b4] sm:$0xf]
    %v335 = vld [vmem:[#allocation2 + $0x6b8] sm:$0xff]
    %v336 = vld [vmem:[#allocation2 + $0x6c0] sm:$0xff]
    %v337 = vld [vmem:[#allocation2 + $0x6c8] sm:$0xf]
    %v338 = vld [vmem:[#allocation2 + $0x6cc] sm:$0xff]
    %v339 = vld [vmem:[#allocation2 + $0x6d4] sm:$0xff]
    %v340 = vld [vmem:[#allocation2 + $0x6dc] sm:$0xf]
    %v341 = vld [vmem:[#allocation2 + $0x6e0] sm:$0xff]
    %v342 = vld [vmem:[#allocation2 + $0x6e8] sm:$0xff]
    %v343 = vld [vmem:[#allocation2 + $0x6f0] sm:$0xf]
    %v344 = vld [vmem:[#allocation2 + $0x6f4] sm:$0xff]
    %v345 = vld [vmem:[#allocation2 + $0x6fc] sm:$0xff]
    %v346 = vld [vmem:[#allocation2 + $0x704] sm:$0xf]
    %v347 = vld [vmem:[#allocation2 + $0x708] sm:$0xff]
    %v348 = vld [vmem:[#allocation2 + $0x710] sm:$0xff]
    %v349 = vld [vmem:[#allocation2 + $0x718] sm:$0xf]
    %v350 = vld [vmem:[#allocation2 + $0x71c] sm:$0xff]
    %v351 = vld [vmem:[#allocation2 + $0x724] sm:$0xff]
    %v352 = vld [vmem:[#allocation2 + $0x72c] sm:$0xf]
    %v353 = vld [vmem:[#allocation2 + $0x730] sm:$0xff]
    %v354 = vld [vmem:[#allocation2 + $0x738] sm:$0xff]
    %v355 = vld [vmem:[#allocation2 + $0x740] sm:$0xf]
    %v356 = vld [vmem:[#allocation2 + $0x744] sm:$0xff]
    %v357 = vld [vmem:[#allocation2 + $0x74c] sm:$0xff]
    %v358 = vld [vmem:[#allocation2 + $0x754] sm:$0xf]
    %v359 = vld [vmem:[#allocation2 + $0x758] sm:$0xff]
    %v360 = vld [vmem:[#allocation2 + $0x760] sm:$0xff]
    %v361 = vld [vmem:[#allocation2 + $0x768] sm:$0xf]
    %v362 = vld [vmem:[#allocation2 + $0x76c] sm:$0xff]
    %v363 = vld [vmem:[#allocation2 + $0x774] sm:$0xff]
    %v364 = vld [vmem:[#allocation2 + $0x77c] sm:$0xf]
    %v365 = vld [vmem:[%s2] sm:$0x1f]
    %v367 = vlaneseq
    %v368 = vshrl.u32 %v367, 7
    %v369 = vsub.s32 0, %v368
    %v370 = vrot.slane %v365, %v369
    %v371 = vlaneseq
    %v372 = vshrl.u32 %v371, 7
    %v373 = vsub.s32 1, %v372
    %v374 = vrot.slane %v365, %v373
    %v375 = vlaneseq
    %v376 = vshrl.u32 %v375, 7
    %v377 = vsub.s32 2, %v376
    %v378 = vrot.slane %v365, %v377
    %v379 = vlaneseq
    %v380 = vshrl.u32 %v379, 7
    %v381 = vsub.s32 3, %v380
    %v382 = vrot.slane %v365, %v381
    %v383 = vlaneseq
    %v384 = vshrl.u32 %v383, 7
    %v385 = vsub.s32 4, %v384
    %v386 = vrot.slane %v365, %v385
    %v395 = vunpack.c.l.b16 %v74
    %v396 = vunpack.c.h.b16 %v74
    %v397 = vunpack.c.l.b16 %v75
    %v398 = vunpack.c.h.b16 %v75
    %v399 = vunpack.c.l.b16 %v76
    %v400 = vunpack.c.h.b16 %v76
    %v401 = vpack.c.b16 %v395, %v395
    %v402 = vpack.c.b16 %v396, %v396
    %v403 = vpack.c.b16 %v397, %v397
    %v404 = vpack.c.b16 %v398, %v398
    %v405 = vpack.c.b16 %v399, %v399
    %v406 = vpack.c.b16 %v400, %v400
    %v701 = vunpack.c.l.b16 %v77
    %v702 = vunpack.c.h.b16 %v77
    %v703 = vunpack.c.l.b16 %v78
    %v704 = vunpack.c.h.b16 %v78
    %v705 = vunpack.c.l.b16 %v79
    %v706 = vunpack.c.l.b16 %v80
    %v707 = vunpack.c.h.b16 %v80
    %v708 = vunpack.c.l.b16 %v81
    %v709 = vunpack.c.h.b16 %v81
    %v710 = vunpack.c.l.b16 %v82
    %v711 = vunpack.c.l.b16 %v83
    %v712 = vunpack.c.h.b16 %v83
    %v713 = vunpack.c.l.b16 %v84
    %v714 = vunpack.c.h.b16 %v84
    %v715 = vunpack.c.l.b16 %v85
    %v716 = vunpack.c.l.b16 %v86
    %v717 = vunpack.c.h.b16 %v86
    %v718 = vunpack.c.l.b16 %v87
    %v719 = vunpack.c.h.b16 %v87
    %v720 = vunpack.c.l.b16 %v88
    %v721 = vunpack.c.l.b16 %v89
    %v722 = vunpack.c.h.b16 %v89
    %v723 = vunpack.c.l.b16 %v90
    %v724 = vunpack.c.h.b16 %v90
    %v725 = vunpack.c.l.b16 %v91
    %v726 = vunpack.c.l.b16 %v92
    %v727 = vunpack.c.h.b16 %v92
    %v728 = vunpack.c.l.b16 %v93
    %v729 = vunpack.c.h.b16 %v93
    %v730 = vunpack.c.l.b16 %v94
    %v731 = vunpack.c.l.b16 %v95
    %v732 = vunpack.c.h.b16 %v95
    %v733 = vunpack.c.l.b16 %v96
    %v734 = vunpack.c.h.b16 %v96
    %v735 = vunpack.c.l.b16 %v97
    %v736 = vunpack.c.l.b16 %v98
    %v737 = vunpack.c.h.b16 %v98
    %v738 = vunpack.c.l.b16 %v99
    %v739 = vunpack.c.h.b16 %v99
    %v740 = vunpack.c.l.b16 %v100
    %v741 = vunpack.c.l.b16 %v101
    %v742 = vunpack.c.h.b16 %v101
    %v743 = vunpack.c.l.b16 %v102
    %v744 = vunpack.c.h.b16 %v102
    %v745 = vunpack.c.l.b16 %v103
    %v746 = vunpack.c.l.b16 %v104
    %v747 = vunpack.c.h.b16 %v104
    %v748 = vunpack.c.l.b16 %v105
    %v749 = vunpack.c.h.b16 %v105
    %v750 = vunpack.c.l.b16 %v106
    %v751 = vunpack.c.l.b16 %v107
    %v752 = vunpack.c.h.b16 %v107
    %v753 = vunpack.c.l.b16 %v108
    %v754 = vunpack.c.h.b16 %v108
    %v755 = vunpack.c.l.b16 %v109
    %v756 = vunpack.c.l.b16 %v110
    %v757 = vunpack.c.h.b16 %v110
    %v758 = vunpack.c.l.b16 %v111
    %v759 = vunpack.c.h.b16 %v111
    %v760 = vunpack.c.l.b16 %v112
    %v761 = vunpack.c.l.b16 %v113
    %v762 = vunpack.c.h.b16 %v113
    %v763 = vunpack.c.l.b16 %v114
    %v764 = vunpack.c.h.b16 %v114
    %v765 = vunpack.c.l.b16 %v115
    %v766 = vunpack.c.l.b16 %v116
    %v767 = vunpack.c.h.b16 %v116
    %v768 = vunpack.c.l.b16 %v117
    %v769 = vunpack.c.h.b16 %v117
    %v770 = vunpack.c.l.b16 %v118
    %v771 = vunpack.c.l.b16 %v119
    %v772 = vunpack.c.h.b16 %v119
    %v773 = vunpack.c.l.b16 %v120
    %v774 = vunpack.c.h.b16 %v120
    %v775 = vunpack.c.l.b16 %v121
    %v776 = vunpack.c.l.b16 %v122
    %v777 = vunpack.c.h.b16 %v122
    %v778 = vunpack.c.l.b16 %v123
    %v779 = vunpack.c.h.b16 %v123
    %v780 = vunpack.c.l.b16 %v124
    %v781 = vunpack.c.l.b16 %v125
    %v782 = vunpack.c.h.b16 %v125
    %v783 = vunpack.c.l.b16 %v126
    %v784 = vunpack.c.h.b16 %v126
    %v785 = vunpack.c.l.b16 %v127
    %v786 = vunpack.c.l.b16 %v128
    %v787 = vunpack.c.h.b16 %v128
    %v788 = vunpack.c.l.b16 %v129
    %v789 = vunpack.c.h.b16 %v129
    %v790 = vunpack.c.l.b16 %v130
    %v791 = vunpack.c.l.b16 %v131
    %v792 = vunpack.c.h.b16 %v131
    %v793 = vunpack.c.l.b16 %v132
    %v794 = vunpack.c.h.b16 %v132
    %v795 = vunpack.c.l.b16 %v133
    %v796 = vunpack.c.l.b16 %v134
    %v797 = vunpack.c.h.b16 %v134
    %v798 = vunpack.c.l.b16 %v135
    %v799 = vunpack.c.h.b16 %v135
    %v800 = vunpack.c.l.b16 %v136
    %v801 = vunpack.c.l.b16 %v137
    %v802 = vunpack.c.h.b16 %v137
    %v803 = vunpack.c.l.b16 %v138
    %v804 = vunpack.c.h.b16 %v138
    %v805 = vunpack.c.l.b16 %v139
    %v806 = vunpack.c.l.b16 %v140
    %v807 = vunpack.c.h.b16 %v140
    %v808 = vunpack.c.l.b16 %v141
    %v809 = vunpack.c.h.b16 %v141
    %v810 = vunpack.c.l.b16 %v142
    %v811 = vunpack.c.l.b16 %v143
    %v812 = vunpack.c.h.b16 %v143
    %v813 = vunpack.c.l.b16 %v144
    %v814 = vunpack.c.h.b16 %v144
    %v815 = vunpack.c.l.b16 %v145
    %v816 = vunpack.c.l.b16 %v146
    %v817 = vunpack.c.h.b16 %v146
    %v818 = vunpack.c.l.b16 %v147
    %v819 = vunpack.c.h.b16 %v147
    %v820 = vunpack.c.l.b16 %v148
    %v821 = vunpack.c.l.b16 %v149
    %v822 = vunpack.c.h.b16 %v149
    %v823 = vunpack.c.l.b16 %v150
    %v824 = vunpack.c.h.b16 %v150
    %v825 = vunpack.c.l.b16 %v151
    %v826 = vunpack.c.l.b16 %v152
    %v827 = vunpack.c.h.b16 %v152
    %v828 = vunpack.c.l.b16 %v153
    %v829 = vunpack.c.h.b16 %v153
    %v830 = vunpack.c.l.b16 %v154
    %v831 = vunpack.c.l.b16 %v155
    %v832 = vunpack.c.h.b16 %v155
    %v833 = vunpack.c.l.b16 %v156
    %v834 = vunpack.c.h.b16 %v156
    %v835 = vunpack.c.l.b16 %v157
    %v836 = vunpack.c.l.b16 %v158
    %v837 = vunpack.c.h.b16 %v158
    %v838 = vunpack.c.l.b16 %v159
    %v839 = vunpack.c.h.b16 %v159
    %v840 = vunpack.c.l.b16 %v160
    %v841 = vunpack.c.l.b16 %v161
    %v842 = vunpack.c.h.b16 %v161
    %v843 = vunpack.c.l.b16 %v162
    %v844 = vunpack.c.h.b16 %v162
    %v845 = vunpack.c.l.b16 %v163
    %v846 = vunpack.c.l.b16 %v164
    %v847 = vunpack.c.h.b16 %v164
    %v848 = vunpack.c.l.b16 %v165
    %v849 = vunpack.c.h.b16 %v165
    %v850 = vunpack.c.l.b16 %v166
    %v851 = vunpack.c.l.b16 %v167
    %v852 = vunpack.c.h.b16 %v167
    %v853 = vunpack.c.l.b16 %v168
    %v854 = vunpack.c.h.b16 %v168
    %v855 = vunpack.c.l.b16 %v169
    %v856 = vunpack.c.l.b16 %v170
    %v857 = vunpack.c.h.b16 %v170
    %v858 = vunpack.c.l.b16 %v171
    %v859 = vunpack.c.h.b16 %v171
    %v860 = vunpack.c.l.b16 %v172
    %v861 = vunpack.c.l.b16 %v173
    %v862 = vunpack.c.h.b16 %v173
    %v863 = vunpack.c.l.b16 %v174
    %v864 = vunpack.c.h.b16 %v174
    %v865 = vunpack.c.l.b16 %v175
    %v866 = vunpack.c.l.b16 %v176
    %v867 = vunpack.c.h.b16 %v176
    %v868 = vunpack.c.l.b16 %v177
    %v869 = vunpack.c.h.b16 %v177
    %v870 = vunpack.c.l.b16 %v178
    %v871 = vunpack.c.l.b16 %v179
    %v872 = vunpack.c.h.b16 %v179
    %v873 = vunpack.c.l.b16 %v180
    %v874 = vunpack.c.h.b16 %v180
    %v875 = vunpack.c.l.b16 %v181
    %v876 = vunpack.c.l.b16 %v182
    %v877 = vunpack.c.h.b16 %v182
    %v878 = vunpack.c.l.b16 %v183
    %v879 = vunpack.c.h.b16 %v183
    %v880 = vunpack.c.l.b16 %v184
    %v881 = vunpack.c.l.b16 %v185
    %v882 = vunpack.c.h.b16 %v185
    %v883 = vunpack.c.l.b16 %v186
    %v884 = vunpack.c.h.b16 %v186
    %v885 = vunpack.c.l.b16 %v187
    %v886 = vunpack.c.l.b16 %v188
    %v887 = vunpack.c.h.b16 %v188
    %v888 = vunpack.c.l.b16 %v189
    %v889 = vunpack.c.h.b16 %v189
    %v890 = vunpack.c.l.b16 %v190
    %v891 = vunpack.c.l.b16 %v191
    %v892 = vunpack.c.h.b16 %v191
    %v893 = vunpack.c.l.b16 %v192
    %v894 = vunpack.c.h.b16 %v192
    %v895 = vunpack.c.l.b16 %v193
    %v896 = vunpack.c.l.b16 %v194
    %v897 = vunpack.c.h.b16 %v194
    %v898 = vunpack.c.l.b16 %v195
    %v899 = vunpack.c.h.b16 %v195
    %v900 = vunpack.c.l.b16 %v196
    %v901 = vunpack.c.l.b16 %v197
    %v902 = vunpack.c.h.b16 %v197
    %v903 = vunpack.c.l.b16 %v198
    %v904 = vunpack.c.h.b16 %v198
    %v905 = vunpack.c.l.b16 %v199
    %v906 = vunpack.c.l.b16 %v200
    %v907 = vunpack.c.h.b16 %v200
    %v908 = vunpack.c.l.b16 %v201
    %v909 = vunpack.c.h.b16 %v201
    %v910 = vunpack.c.l.b16 %v202
    %v911 = vunpack.c.l.b16 %v203
    %v912 = vunpack.c.h.b16 %v203
    %v913 = vunpack.c.l.b16 %v204
    %v914 = vunpack.c.h.b16 %v204
    %v915 = vunpack.c.l.b16 %v205
    %v916 = vunpack.c.l.b16 %v206
    %v917 = vunpack.c.h.b16 %v206
    %v918 = vunpack.c.l.b16 %v207
    %v919 = vunpack.c.h.b16 %v207
    %v920 = vunpack.c.l.b16 %v208
    %v921 = vunpack.c.l.b16 %v209
    %v922 = vunpack.c.h.b16 %v209
    %v923 = vunpack.c.l.b16 %v210
    %v924 = vunpack.c.h.b16 %v210
    %v925 = vunpack.c.l.b16 %v211
    %v926 = vunpack.c.l.b16 %v212
    %v927 = vunpack.c.h.b16 %v212
    %v928 = vunpack.c.l.b16 %v213
    %v929 = vunpack.c.h.b16 %v213
    %v930 = vunpack.c.l.b16 %v214
    %v931 = vunpack.c.l.b16 %v215
    %v932 = vunpack.c.h.b16 %v215
    %v933 = vunpack.c.l.b16 %v216
    %v934 = vunpack.c.h.b16 %v216
    %v935 = vunpack.c.l.b16 %v217
    %v936 = vunpack.c.l.b16 %v218
    %v937 = vunpack.c.h.b16 %v218
    %v938 = vunpack.c.l.b16 %v219
    %v939 = vunpack.c.h.b16 %v219
    %v940 = vunpack.c.l.b16 %v220
    %v941 = vunpack.c.l.b16 %v221
    %v942 = vunpack.c.h.b16 %v221
    %v943 = vunpack.c.l.b16 %v222
    %v944 = vunpack.c.h.b16 %v222
    %v945 = vunpack.c.l.b16 %v223
    %v946 = vunpack.c.l.b16 %v224
    %v947 = vunpack.c.h.b16 %v224
    %v948 = vunpack.c.l.b16 %v225
    %v949 = vunpack.c.h.b16 %v225
    %v950 = vunpack.c.l.b16 %v226
    %v951 = vunpack.c.l.b16 %v227
    %v952 = vunpack.c.h.b16 %v227
    %v953 = vunpack.c.l.b16 %v228
    %v954 = vunpack.c.h.b16 %v228
    %v955 = vunpack.c.l.b16 %v229
    %v956 = vunpack.c.l.b16 %v230
    %v957 = vunpack.c.h.b16 %v230
    %v958 = vunpack.c.l.b16 %v231
    %v959 = vunpack.c.h.b16 %v231
    %v960 = vunpack.c.l.b16 %v232
    %v961 = vunpack.c.l.b16 %v233
    %v962 = vunpack.c.h.b16 %v233
    %v963 = vunpack.c.l.b16 %v234
    %v964 = vunpack.c.h.b16 %v234
    %v965 = vunpack.c.l.b16 %v235
    %v966 = vunpack.c.l.b16 %v236
    %v967 = vunpack.c.h.b16 %v236
    %v968 = vunpack.c.l.b16 %v237
    %v969 = vunpack.c.h.b16 %v237
    %v970 = vunpack.c.l.b16 %v238
    %v971 = vunpack.c.l.b16 %v239
    %v972 = vunpack.c.h.b16 %v239
    %v973 = vunpack.c.l.b16 %v240
    %v974 = vunpack.c.h.b16 %v240
    %v975 = vunpack.c.l.b16 %v241
    %v976 = vunpack.c.l.b16 %v242
    %v977 = vunpack.c.h.b16 %v242
    %v978 = vunpack.c.l.b16 %v243
    %v979 = vunpack.c.h.b16 %v243
    %v980 = vunpack.c.l.b16 %v244
    %v981 = vunpack.c.l.b16 %v245
    %v982 = vunpack.c.h.b16 %v245
    %v983 = vunpack.c.l.b16 %v246
    %v984 = vunpack.c.h.b16 %v246
    %v985 = vunpack.c.l.b16 %v247
    %v986 = vunpack.c.l.b16 %v248
    %v987 = vunpack.c.h.b16 %v248
    %v988 = vunpack.c.l.b16 %v249
    %v989 = vunpack.c.h.b16 %v249
    %v990 = vunpack.c.l.b16 %v250
    %v991 = vunpack.c.l.b16 %v251
    %v992 = vunpack.c.h.b16 %v251
    %v993 = vunpack.c.l.b16 %v252
    %v994 = vunpack.c.h.b16 %v252
    %v995 = vunpack.c.l.b16 %v253
    %v996 = vunpack.c.l.b16 %v254
    %v997 = vunpack.c.h.b16 %v254
    %v998 = vunpack.c.l.b16 %v255
    %v999 = vunpack.c.h.b16 %v255
    %v1000 = vunpack.c.l.b16 %v256
    %v1001 = vunpack.c.l.b16 %v257
    %v1002 = vunpack.c.h.b16 %v257
    %v1003 = vunpack.c.l.b16 %v258
    %v1004 = vunpack.c.h.b16 %v258
    %v1005 = vunpack.c.l.b16 %v259
    %v1006 = vunpack.c.l.b16 %v260
    %v1007 = vunpack.c.h.b16 %v260
    %v1008 = vunpack.c.l.b16 %v261
    %v1009 = vunpack.c.h.b16 %v261
    %v1010 = vunpack.c.l.b16 %v262
    %v1011 = vunpack.c.l.b16 %v263
    %v1012 = vunpack.c.h.b16 %v263
    %v1013 = vunpack.c.l.b16 %v264
    %v1014 = vunpack.c.h.b16 %v264
    %v1015 = vunpack.c.l.b16 %v265
    %v1016 = vunpack.c.l.b16 %v266
    %v1017 = vunpack.c.h.b16 %v266
    %v1018 = vunpack.c.l.b16 %v267
    %v1019 = vunpack.c.h.b16 %v267
    %v1020 = vunpack.c.l.b16 %v268
    %v1021 = vunpack.c.l.b16 %v269
    %v1022 = vunpack.c.h.b16 %v269
    %v1023 = vunpack.c.l.b16 %v270
    %v1024 = vunpack.c.h.b16 %v270
    %v1025 = vunpack.c.l.b16 %v271
    %v1026 = vunpack.c.l.b16 %v272
    %v1027 = vunpack.c.h.b16 %v272
    %v1028 = vunpack.c.l.b16 %v273
    %v1029 = vunpack.c.h.b16 %v273
    %v1030 = vunpack.c.l.b16 %v274
    %v1031 = vunpack.c.l.b16 %v275
    %v1032 = vunpack.c.h.b16 %v275
    %v1033 = vunpack.c.l.b16 %v276
    %v1034 = vunpack.c.h.b16 %v276
    %v1035 = vunpack.c.l.b16 %v277
    %v1036 = vunpack.c.l.b16 %v278
    %v1037 = vunpack.c.h.b16 %v278
    %v1038 = vunpack.c.l.b16 %v279
    %v1039 = vunpack.c.h.b16 %v279
    %v1040 = vunpack.c.l.b16 %v280
    %v1041 = vunpack.c.l.b16 %v281
    %v1042 = vunpack.c.h.b16 %v281
    %v1043 = vunpack.c.l.b16 %v282
    %v1044 = vunpack.c.h.b16 %v282
    %v1045 = vunpack.c.l.b16 %v283
    %v1046 = vunpack.c.l.b16 %v284
    %v1047 = vunpack.c.h.b16 %v284
    %v1048 = vunpack.c.l.b16 %v285
    %v1049 = vunpack.c.h.b16 %v285
    %v1050 = vunpack.c.l.b16 %v286
    %v1051 = vunpack.c.l.b16 %v287
    %v1052 = vunpack.c.h.b16 %v287
    %v1053 = vunpack.c.l.b16 %v288
    %v1054 = vunpack.c.h.b16 %v288
    %v1055 = vunpack.c.l.b16 %v289
    %v1056 = vunpack.c.l.b16 %v290
    %v1057 = vunpack.c.h.b16 %v290
    %v1058 = vunpack.c.l.b16 %v291
    %v1059 = vunpack.c.h.b16 %v291
    %v1060 = vunpack.c.l.b16 %v292
    %v1061 = vunpack.c.l.b16 %v293
    %v1062 = vunpack.c.h.b16 %v293
    %v1063 = vunpack.c.l.b16 %v294
    %v1064 = vunpack.c.h.b16 %v294
    %v1065 = vunpack.c.l.b16 %v295
    %v1066 = vunpack.c.l.b16 %v296
    %v1067 = vunpack.c.h.b16 %v296
    %v1068 = vunpack.c.l.b16 %v297
    %v1069 = vunpack.c.h.b16 %v297
    %v1070 = vunpack.c.l.b16 %v298
    %v1071 = vunpack.c.l.b16 %v299
    %v1072 = vunpack.c.h.b16 %v299
    %v1073 = vunpack.c.l.b16 %v300
    %v1074 = vunpack.c.h.b16 %v300
    %v1075 = vunpack.c.l.b16 %v301
    %v1076 = vunpack.c.l.b16 %v302
    %v1077 = vunpack.c.h.b16 %v302
    %v1078 = vunpack.c.l.b16 %v303
    %v1079 = vunpack.c.h.b16 %v303
    %v1080 = vunpack.c.l.b16 %v304
    %v1081 = vunpack.c.l.b16 %v305
    %v1082 = vunpack.c.h.b16 %v305
    %v1083 = vunpack.c.l.b16 %v306
    %v1084 = vunpack.c.h.b16 %v306
    %v1085 = vunpack.c.l.b16 %v307
    %v1086 = vunpack.c.l.b16 %v308
    %v1087 = vunpack.c.h.b16 %v308
    %v1088 = vunpack.c.l.b16 %v309
    %v1089 = vunpack.c.h.b16 %v309
    %v1090 = vunpack.c.l.b16 %v310
    %v1091 = vunpack.c.l.b16 %v311
    %v1092 = vunpack.c.h.b16 %v311
    %v1093 = vunpack.c.l.b16 %v312
    %v1094 = vunpack.c.h.b16 %v312
    %v1095 = vunpack.c.l.b16 %v313
    %v1096 = vunpack.c.l.b16 %v314
    %v1097 = vunpack.c.h.b16 %v314
    %v1098 = vunpack.c.l.b16 %v315
    %v1099 = vunpack.c.h.b16 %v315
    %v1100 = vunpack.c.l.b16 %v316
    %v1101 = vunpack.c.l.b16 %v317
    %v1102 = vunpack.c.h.b16 %v317
    %v1103 = vunpack.c.l.b16 %v318
    %v1104 = vunpack.c.h.b16 %v318
    %v1105 = vunpack.c.l.b16 %v319
    %v1106 = vunpack.c.l.b16 %v320
    %v1107 = vunpack.c.h.b16 %v320
    %v1108 = vunpack.c.l.b16 %v321
    %v1109 = vunpack.c.h.b16 %v321
    %v1110 = vunpack.c.l.b16 %v322
    %v1111 = vunpack.c.l.b16 %v323
    %v1112 = vunpack.c.h.b16 %v323
    %v1113 = vunpack.c.l.b16 %v324
    %v1114 = vunpack.c.h.b16 %v324
    %v1115 = vunpack.c.l.b16 %v325
    %v1116 = vunpack.c.l.b16 %v326
    %v1117 = vunpack.c.h.b16 %v326
    %v1118 = vunpack.c.l.b16 %v327
    %v1119 = vunpack.c.h.b16 %v327
    %v1120 = vunpack.c.l.b16 %v328
    %v1121 = vunpack.c.l.b16 %v329
    %v1122 = vunpack.c.h.b16 %v329
    %v1123 = vunpack.c.l.b16 %v330
    %v1124 = vunpack.c.h.b16 %v330
    %v1125 = vunpack.c.l.b16 %v331
    %v1126 = vunpack.c.l.b16 %v332
    %v1127 = vunpack.c.h.b16 %v332
    %v1128 = vunpack.c.l.b16 %v333
    %v1129 = vunpack.c.h.b16 %v333
    %v1130 = vunpack.c.l.b16 %v334
    %v1131 = vunpack.c.l.b16 %v335
    %v1132 = vunpack.c.h.b16 %v335
    %v1133 = vunpack.c.l.b16 %v336
    %v1134 = vunpack.c.h.b16 %v336
    %v1135 = vunpack.c.l.b16 %v337
    %v1136 = vunpack.c.l.b16 %v338
    %v1137 = vunpack.c.h.b16 %v338
    %v1138 = vunpack.c.l.b16 %v339
    %v1139 = vunpack.c.h.b16 %v339
    %v1140 = vunpack.c.l.b16 %v340
    %v1141 = vunpack.c.l.b16 %v341
    %v1142 = vunpack.c.h.b16 %v341
    %v1143 = vunpack.c.l.b16 %v342
    %v1144 = vunpack.c.h.b16 %v342
    %v1145 = vunpack.c.l.b16 %v343
    %v1146 = vunpack.c.l.b16 %v344
    %v1147 = vunpack.c.h.b16 %v344
    %v1148 = vunpack.c.l.b16 %v345
    %v1149 = vunpack.c.h.b16 %v345
    %v1150 = vunpack.c.l.b16 %v346
    %v1151 = vunpack.c.l.b16 %v347
    %v1152 = vunpack.c.h.b16 %v347
    %v1153 = vunpack.c.l.b16 %v348
    %v1154 = vunpack.c.h.b16 %v348
    %v1155 = vunpack.c.l.b16 %v349
    %v1156 = vunpack.c.l.b16 %v350
    %v1157 = vunpack.c.h.b16 %v350
    %v1158 = vunpack.c.l.b16 %v351
    %v1159 = vunpack.c.h.b16 %v351
    %v1160 = vunpack.c.l.b16 %v352
    %v1161 = vunpack.c.l.b16 %v353
    %v1162 = vunpack.c.h.b16 %v353
    %v1163 = vunpack.c.l.b16 %v354
    %v1164 = vunpack.c.h.b16 %v354
    %v1165 = vunpack.c.l.b16 %v355
    %v1166 = vunpack.c.l.b16 %v356
    %v1167 = vunpack.c.h.b16 %v356
    %v1168 = vunpack.c.l.b16 %v357
    %v1169 = vunpack.c.h.b16 %v357
    %v1170 = vunpack.c.l.b16 %v358
    %v1171 = vunpack.c.l.b16 %v359
    %v1172 = vunpack.c.h.b16 %v359
    %v1173 = vunpack.c.l.b16 %v360
    %v1174 = vunpack.c.h.b16 %v360
    %v1175 = vunpack.c.l.b16 %v361
    %v1176 = vunpack.c.l.b16 %v362
    %v1177 = vunpack.c.h.b16 %v362
    %v1178 = vunpack.c.l.b16 %v363
    %v1179 = vunpack.c.h.b16 %v363
    %v1180 = vunpack.c.l.b16 %v364
    %v1181 = vpack.c.b16 %v706, %v701
    %v1182 = vpack.c.b16 %v707, %v702
    %v1183 = vpack.c.b16 %v708, %v703
    %v1184 = vpack.c.b16 %v709, %v704
    %v1185 = vpack.c.b16 %v710, %v705
    %v1186 = vpack.c.b16 %v716, %v711
    %v1187 = vpack.c.b16 %v717, %v712
    %v1188 = vpack.c.b16 %v718, %v713
    %v1189 = vpack.c.b16 %v719, %v714
    %v1190 = vpack.c.b16 %v720, %v715
    %v1191 = vpack.c.b16 %v726, %v721
    %v1192 = vpack.c.b16 %v727, %v722
    %v1193 = vpack.c.b16 %v728, %v723
    %v1194 = vpack.c.b16 %v729, %v724
    %v1195 = vpack.c.b16 %v730, %v725
    %v1196 = vpack.c.b16 %v736, %v731
    %v1197 = vpack.c.b16 %v737, %v732
    %v1198 = vpack.c.b16 %v738, %v733
    %v1199 = vpack.c.b16 %v739, %v734
    %v1200 = vpack.c.b16 %v740, %v735
    %v1201 = vpack.c.b16 %v746, %v741
    %v1202 = vpack.c.b16 %v747, %v742
    %v1203 = vpack.c.b16 %v748, %v743
    %v1204 = vpack.c.b16 %v749, %v744
    %v1205 = vpack.c.b16 %v750, %v745
    %v1206 = vpack.c.b16 %v756, %v751
    %v1207 = vpack.c.b16 %v757, %v752
    %v1208 = vpack.c.b16 %v758, %v753
    %v1209 = vpack.c.b16 %v759, %v754
    %v1210 = vpack.c.b16 %v760, %v755
    %v1211 = vpack.c.b16 %v766, %v761
    %v1212 = vpack.c.b16 %v767, %v762
    %v1213 = vpack.c.b16 %v768, %v763
    %v1214 = vpack.c.b16 %v769, %v764
    %v1215 = vpack.c.b16 %v770, %v765
    %v1216 = vpack.c.b16 %v776, %v771
    %v1217 = vpack.c.b16 %v777, %v772
    %v1218 = vpack.c.b16 %v778, %v773
    %v1219 = vpack.c.b16 %v779, %v774
    %v1220 = vpack.c.b16 %v780, %v775
    %v1221 = vpack.c.b16 %v786, %v781
    %v1222 = vpack.c.b16 %v787, %v782
    %v1223 = vpack.c.b16 %v788, %v783
    %v1224 = vpack.c.b16 %v789, %v784
    %v1225 = vpack.c.b16 %v790, %v785
    %v1226 = vpack.c.b16 %v796, %v791
    %v1227 = vpack.c.b16 %v797, %v792
    %v1228 = vpack.c.b16 %v798, %v793
    %v1229 = vpack.c.b16 %v799, %v794
    %v1230 = vpack.c.b16 %v800, %v795
    %v1231 = vpack.c.b16 %v806, %v801
    %v1232 = vpack.c.b16 %v807, %v802
    %v1233 = vpack.c.b16 %v808, %v803
    %v1234 = vpack.c.b16 %v809, %v804
    %v1235 = vpack.c.b16 %v810, %v805
    %v1236 = vpack.c.b16 %v816, %v811
    %v1237 = vpack.c.b16 %v817, %v812
    %v1238 = vpack.c.b16 %v818, %v813
    %v1239 = vpack.c.b16 %v819, %v814
    %v1240 = vpack.c.b16 %v820, %v815
    %v1241 = vpack.c.b16 %v826, %v821
    %v1242 = vpack.c.b16 %v827, %v822
    %v1243 = vpack.c.b16 %v828, %v823
    %v1244 = vpack.c.b16 %v829, %v824
    %v1245 = vpack.c.b16 %v830, %v825
    %v1246 = vpack.c.b16 %v836, %v831
    %v1247 = vpack.c.b16 %v837, %v832
    %v1248 = vpack.c.b16 %v838, %v833
    %v1249 = vpack.c.b16 %v839, %v834
    %v1250 = vpack.c.b16 %v840, %v835
    %v1251 = vpack.c.b16 %v846, %v841
    %v1252 = vpack.c.b16 %v847, %v842
    %v1253 = vpack.c.b16 %v848, %v843
    %v1254 = vpack.c.b16 %v849, %v844
    %v1255 = vpack.c.b16 %v850, %v845
    %v1256 = vpack.c.b16 %v856, %v851
    %v1257 = vpack.c.b16 %v857, %v852
    %v1258 = vpack.c.b16 %v858, %v853
    %v1259 = vpack.c.b16 %v859, %v854
    %v1260 = vpack.c.b16 %v860, %v855
    %v1261 = vpack.c.b16 %v866, %v861
    %v1262 = vpack.c.b16 %v867, %v862
    %v1263 = vpack.c.b16 %v868, %v863
    %v1264 = vpack.c.b16 %v869, %v864
    %v1265 = vpack.c.b16 %v870, %v865
    %v1266 = vpack.c.b16 %v876, %v871
    %v1267 = vpack.c.b16 %v877, %v872
    %v1268 = vpack.c.b16 %v878, %v873
    %v1269 = vpack.c.b16 %v879, %v874
    %v1270 = vpack.c.b16 %v880, %v875
    %v1271 = vpack.c.b16 %v886, %v881
    %v1272 = vpack.c.b16 %v887, %v882
    %v1273 = vpack.c.b16 %v888, %v883
    %v1274 = vpack.c.b16 %v889, %v884
    %v1275 = vpack.c.b16 %v890, %v885
    %v1276 = vpack.c.b16 %v896, %v891
    %v1277 = vpack.c.b16 %v897, %v892
    %v1278 = vpack.c.b16 %v898, %v893
    %v1279 = vpack.c.b16 %v899, %v894
    %v1280 = vpack.c.b16 %v900, %v895
    %v1281 = vpack.c.b16 %v906, %v901
    %v1282 = vpack.c.b16 %v907, %v902
    %v1283 = vpack.c.b16 %v908, %v903
    %v1284 = vpack.c.b16 %v909, %v904
    %v1285 = vpack.c.b16 %v910, %v905
    %v1286 = vpack.c.b16 %v916, %v911
    %v1287 = vpack.c.b16 %v917, %v912
    %v1288 = vpack.c.b16 %v918, %v913
    %v1289 = vpack.c.b16 %v919, %v914
    %v1290 = vpack.c.b16 %v920, %v915
    %v1291 = vpack.c.b16 %v926, %v921
    %v1292 = vpack.c.b16 %v927, %v922
    %v1293 = vpack.c.b16 %v928, %v923
    %v1294 = vpack.c.b16 %v929, %v924
    %v1295 = vpack.c.b16 %v930, %v925
    %v1296 = vpack.c.b16 %v936, %v931
    %v1297 = vpack.c.b16 %v937, %v932
    %v1298 = vpack.c.b16 %v938, %v933
    %v1299 = vpack.c.b16 %v939, %v934
    %v1300 = vpack.c.b16 %v940, %v935
    %v1301 = vpack.c.b16 %v946, %v941
    %v1302 = vpack.c.b16 %v947, %v942
    %v1303 = vpack.c.b16 %v948, %v943
    %v1304 = vpack.c.b16 %v949, %v944
    %v1305 = vpack.c.b16 %v950, %v945
    %v1306 = vpack.c.b16 %v956, %v951
    %v1307 = vpack.c.b16 %v957, %v952
    %v1308 = vpack.c.b16 %v958, %v953
    %v1309 = vpack.c.b16 %v959, %v954
    %v1310 = vpack.c.b16 %v960, %v955
    %v1311 = vpack.c.b16 %v966, %v961
    %v1312 = vpack.c.b16 %v967, %v962
    %v1313 = vpack.c.b16 %v968, %v963
    %v1314 = vpack.c.b16 %v969, %v964
    %v1315 = vpack.c.b16 %v970, %v965
    %v1316 = vpack.c.b16 %v976, %v971
    %v1317 = vpack.c.b16 %v977, %v972
    %v1318 = vpack.c.b16 %v978, %v973
    %v1319 = vpack.c.b16 %v979, %v974
    %v1320 = vpack.c.b16 %v980, %v975
    %v1321 = vpack.c.b16 %v986, %v981
    %v1322 = vpack.c.b16 %v987, %v982
    %v1323 = vpack.c.b16 %v988, %v983
    %v1324 = vpack.c.b16 %v989, %v984
    %v1325 = vpack.c.b16 %v990, %v985
    %v1326 = vpack.c.b16 %v996, %v991
    %v1327 = vpack.c.b16 %v997, %v992
    %v1328 = vpack.c.b16 %v998, %v993
    %v1329 = vpack.c.b16 %v999, %v994
    %v1330 = vpack.c.b16 %v1000, %v995
    %v1331 = vpack.c.b16 %v1006, %v1001
    %v1332 = vpack.c.b16 %v1007, %v1002
    %v1333 = vpack.c.b16 %v1008, %v1003
    %v1334 = vpack.c.b16 %v1009, %v1004
    %v1335 = vpack.c.b16 %v1010, %v1005
    %v1336 = vpack.c.b16 %v1016, %v1011
    %v1337 = vpack.c.b16 %v1017, %v1012
    %v1338 = vpack.c.b16 %v1018, %v1013
    %v1339 = vpack.c.b16 %v1019, %v1014
    %v1340 = vpack.c.b16 %v1020, %v1015
    %v1341 = vpack.c.b16 %v1026, %v1021
    %v1342 = vpack.c.b16 %v1027, %v1022
    %v1343 = vpack.c.b16 %v1028, %v1023
    %v1344 = vpack.c.b16 %v1029, %v1024
    %v1345 = vpack.c.b16 %v1030, %v1025
    %v1346 = vpack.c.b16 %v1036, %v1031
    %v1347 = vpack.c.b16 %v1037, %v1032
    %v1348 = vpack.c.b16 %v1038, %v1033
    %v1349 = vpack.c.b16 %v1039, %v1034
    %v1350 = vpack.c.b16 %v1040, %v1035
    %v1351 = vpack.c.b16 %v1046, %v1041
    %v1352 = vpack.c.b16 %v1047, %v1042
    %v1353 = vpack.c.b16 %v1048, %v1043
    %v1354 = vpack.c.b16 %v1049, %v1044
    %v1355 = vpack.c.b16 %v1050, %v1045
    %v1356 = vpack.c.b16 %v1056, %v1051
    %v1357 = vpack.c.b16 %v1057, %v1052
    %v1358 = vpack.c.b16 %v1058, %v1053
    %v1359 = vpack.c.b16 %v1059, %v1054
    %v1360 = vpack.c.b16 %v1060, %v1055
    %v1361 = vpack.c.b16 %v1066, %v1061
    %v1362 = vpack.c.b16 %v1067, %v1062
    %v1363 = vpack.c.b16 %v1068, %v1063
    %v1364 = vpack.c.b16 %v1069, %v1064
    %v1365 = vpack.c.b16 %v1070, %v1065
    %v1366 = vpack.c.b16 %v1076, %v1071
    %v1367 = vpack.c.b16 %v1077, %v1072
    %v1368 = vpack.c.b16 %v1078, %v1073
    %v1369 = vpack.c.b16 %v1079, %v1074
    %v1370 = vpack.c.b16 %v1080, %v1075
    %v1371 = vpack.c.b16 %v1086, %v1081
    %v1372 = vpack.c.b16 %v1087, %v1082
    %v1373 = vpack.c.b16 %v1088, %v1083
    %v1374 = vpack.c.b16 %v1089, %v1084
    %v1375 = vpack.c.b16 %v1090, %v1085
    %v1376 = vpack.c.b16 %v1096, %v1091
    %v1377 = vpack.c.b16 %v1097, %v1092
    %v1378 = vpack.c.b16 %v1098, %v1093
    %v1379 = vpack.c.b16 %v1099, %v1094
    %v1380 = vpack.c.b16 %v1100, %v1095
    %v1381 = vpack.c.b16 %v1106, %v1101
    %v1382 = vpack.c.b16 %v1107, %v1102
    %v1383 = vpack.c.b16 %v1108, %v1103
    %v1384 = vpack.c.b16 %v1109, %v1104
    %v1385 = vpack.c.b16 %v1110, %v1105
    %v1386 = vpack.c.b16 %v1116, %v1111
    %v1387 = vpack.c.b16 %v1117, %v1112
    %v1388 = vpack.c.b16 %v1118, %v1113
    %v1389 = vpack.c.b16 %v1119, %v1114
    %v1390 = vpack.c.b16 %v1120, %v1115
    %v1391 = vpack.c.b16 %v1126, %v1121
    %v1392 = vpack.c.b16 %v1127, %v1122
    %v1393 = vpack.c.b16 %v1128, %v1123
    %v1394 = vpack.c.b16 %v1129, %v1124
    %v1395 = vpack.c.b16 %v1130, %v1125
    %v1396 = vpack.c.b16 %v1136, %v1131
    %v1397 = vpack.c.b16 %v1137, %v1132
    %v1398 = vpack.c.b16 %v1138, %v1133
    %v1399 = vpack.c.b16 %v1139, %v1134
    %v1400 = vpack.c.b16 %v1140, %v1135
    %v1401 = vpack.c.b16 %v1146, %v1141
    %v1402 = vpack.c.b16 %v1147, %v1142
    %v1403 = vpack.c.b16 %v1148, %v1143
    %v1404 = vpack.c.b16 %v1149, %v1144
    %v1405 = vpack.c.b16 %v1150, %v1145
    %v1406 = vpack.c.b16 %v1156, %v1151
    %v1407 = vpack.c.b16 %v1157, %v1152
    %v1408 = vpack.c.b16 %v1158, %v1153
    %v1409 = vpack.c.b16 %v1159, %v1154
    %v1410 = vpack.c.b16 %v1160, %v1155
    %v1411 = vpack.c.b16 %v1166, %v1161
    %v1412 = vpack.c.b16 %v1167, %v1162
    %v1413 = vpack.c.b16 %v1168, %v1163
    %v1414 = vpack.c.b16 %v1169, %v1164
    %v1415 = vpack.c.b16 %v1170, %v1165
    %v1416 = vpack.c.b16 %v1176, %v1171
    %v1417 = vpack.c.b16 %v1177, %v1172
    %v1418 = vpack.c.b16 %v1178, %v1173
    %v1419 = vpack.c.b16 %v1179, %v1174
    %v1420 = vpack.c.b16 %v1180, %v1175
    %1661 = vmatprep.subr.bf16.mxu0 %v1217
    %1662 = vmatpush1.bf16.msra.mxu0 %v1216
    %1663 = vmatprep.subr.bf16.mxu0 %v1212
    %1664 = vmatpush1.bf16.msra.mxu0 %v1211
    %1665 = vmatprep.subr.bf16.mxu0 %v1207
    %1666 = vmatpush1.bf16.msra.mxu0 %v1206
    %1667 = vmatprep.subr.bf16.mxu0 %v1202
    %1668 = vmatpush1.bf16.msra.mxu0 %v1201
    %1669 = vmatprep.subr.bf16.mxu0 %v1197
    %1670 = vmatpush1.bf16.msra.mxu0 %v1196
    %1671 = vmatprep.subr.bf16.mxu0 %v1192
    %1672 = vmatpush1.bf16.msra.mxu0 %v1191
    %1673 = vmatprep.subr.bf16.mxu0 %v1187
    %1674 = vmatpush1.bf16.msra.mxu0 %v1186
    %1675 = vmatprep.subr.bf16.mxu0 %v1182
    %1676 = vmatpush1.bf16.msra.mxu0 %v1181
    %1677 = vmatprep.subr.bf16.mxu0 %v1257
    %1678 = vmatpush2.bf16.msra.mxu0 %v1256
    %1679 = vmatprep.subr.bf16.mxu0 %v1252
    %1680 = vmatpush2.bf16.msra.mxu0 %v1251
    %1681 = vmatprep.subr.bf16.mxu0 %v1247
    %1682 = vmatpush2.bf16.msra.mxu0 %v1246
    %1683 = vmatprep.subr.bf16.mxu0 %v1242
    %1684 = vmatpush2.bf16.msra.mxu0 %v1241
    %1685 = vmatprep.subr.bf16.mxu0 %v1237
    %1686 = vmatpush2.bf16.msra.mxu0 %v1236
    %1687 = vmatprep.subr.bf16.mxu0 %v1232
    %1688 = vmatpush2.bf16.msra.mxu0 %v1231
    %1689 = vmatprep.subr.bf16.mxu0 %v1227
    %1690 = vmatpush2.bf16.msra.mxu0 %v1226
    %1691 = vmatprep.subr.bf16.mxu0 %v1222
    %1692 = vmatpush2.bf16.msra.mxu0 %v1221
    %1693 = vmatprep.mubr.bf16.mxu0 %v402
    %1694 = vmatmul.mubr.bf16.gmra.mxu0 %v401
    %v1695 = vpop.f32.mrf.mxu0
    %v1696 = vadd.f32 %v370, %v1695
    %v1697 = vpop.f32.mrf.mxu0
    %v1698 = vadd.f32 %v374, %v1697
    %v1699 = vpop.f32.mrf.mxu0
    %v1700 = vpop.f32.mrf.mxu0
    %1701 = vdwg.mxu0
    %1702 = vmatprep.subr.bf16.mxu0 %v1297
    %1703 = vmatpush1.bf16.msra.mxu0 %v1296
    %1704 = vmatprep.subr.bf16.mxu0 %v1292
    %1705 = vmatpush1.bf16.msra.mxu0 %v1291
    %1706 = vmatprep.subr.bf16.mxu0 %v1287
    %1707 = vmatpush1.bf16.msra.mxu0 %v1286
    %1708 = vmatprep.subr.bf16.mxu0 %v1282
    %1709 = vmatpush1.bf16.msra.mxu0 %v1281
    %1710 = vmatprep.subr.bf16.mxu0 %v1277
    %1711 = vmatpush1.bf16.msra.mxu0 %v1276
    %1712 = vmatprep.subr.bf16.mxu0 %v1272
    %1713 = vmatpush1.bf16.msra.mxu0 %v1271
    %1714 = vmatprep.subr.bf16.mxu0 %v1267
    %1715 = vmatpush1.bf16.msra.mxu0 %v1266
    %1716 = vmatprep.subr.bf16.mxu0 %v1262
    %1717 = vmatpush1.bf16.msra.mxu0 %v1261
    %1718 = vmatprep.subr.bf16.mxu0 %v1337
    %1719 = vmatpush2.bf16.msra.mxu0 %v1336
    %1720 = vmatprep.subr.bf16.mxu0 %v1332
    %1721 = vmatpush2.bf16.msra.mxu0 %v1331
    %1722 = vmatprep.subr.bf16.mxu0 %v1327
    %1723 = vmatpush2.bf16.msra.mxu0 %v1326
    %1724 = vmatprep.subr.bf16.mxu0 %v1322
    %1725 = vmatpush2.bf16.msra.mxu0 %v1321
    %1726 = vmatprep.subr.bf16.mxu0 %v1317
    %1727 = vmatpush2.bf16.msra.mxu0 %v1316
    %1728 = vmatprep.subr.bf16.mxu0 %v1312
    %1729 = vmatpush2.bf16.msra.mxu0 %v1311
    %1730 = vmatprep.subr.bf16.mxu0 %v1307
    %1731 = vmatpush2.bf16.msra.mxu0 %v1306
    %1732 = vmatprep.subr.bf16.mxu0 %v1302
    %1733 = vmatpush2.bf16.msra.mxu0 %v1301
    %1734 = vmatprep.mubr.bf16.mxu0 %v404
    %1735 = vmatmul.mubr.bf16.gmra.mxu0 %v403
    %v1736 = vpop.f32.mrf.mxu0
    %v1737 = vadd.f32 %v1696, %v1736
    %v1738 = vpop.f32.mrf.mxu0
    %v1739 = vadd.f32 %v1698, %v1738
    %v1740 = vpop.f32.mrf.mxu0
    %v1741 = vpop.f32.mrf.mxu0
    %1742 = vdwg.mxu0
    %1743 = vmatprep.subr.bf16.mxu0 %v1377
    %1744 = vmatpush1.bf16.msra.mxu0 %v1376
    %1745 = vmatprep.subr.bf16.mxu0 %v1372
    %1746 = vmatpush1.bf16.msra.mxu0 %v1371
    %1747 = vmatprep.subr.bf16.mxu0 %v1367
    %1748 = vmatpush1.bf16.msra.mxu0 %v1366
    %1749 = vmatprep.subr.bf16.mxu0 %v1362
    %1750 = vmatpush1.bf16.msra.mxu0 %v1361
    %1751 = vmatprep.subr.bf16.mxu0 %v1357
    %1752 = vmatpush1.bf16.msra.mxu0 %v1356
    %1753 = vmatprep.subr.bf16.mxu0 %v1352
    %1754 = vmatpush1.bf16.msra.mxu0 %v1351
    %1755 = vmatprep.subr.bf16.mxu0 %v1347
    %1756 = vmatpush1.bf16.msra.mxu0 %v1346
    %1757 = vmatprep.subr.bf16.mxu0 %v1342
    %1758 = vmatpush1.bf16.msra.mxu0 %v1341
    %1759 = vmatprep.subr.bf16.mxu0 %v1417
    %1760 = vmatpush2.bf16.msra.mxu0 %v1416
    %1761 = vmatprep.subr.bf16.mxu0 %v1412
    %1762 = vmatpush2.bf16.msra.mxu0 %v1411
    %1763 = vmatprep.subr.bf16.mxu0 %v1407
    %1764 = vmatpush2.bf16.msra.mxu0 %v1406
    %1765 = vmatprep.subr.bf16.mxu0 %v1402
    %1766 = vmatpush2.bf16.msra.mxu0 %v1401
    %1767 = vmatprep.subr.bf16.mxu0 %v1397
    %1768 = vmatpush2.bf16.msra.mxu0 %v1396
    %1769 = vmatprep.subr.bf16.mxu0 %v1392
    %1770 = vmatpush2.bf16.msra.mxu0 %v1391
    %1771 = vmatprep.subr.bf16.mxu0 %v1387
    %1772 = vmatpush2.bf16.msra.mxu0 %v1386
    %1773 = vmatprep.subr.bf16.mxu0 %v1382
    %1774 = vmatpush2.bf16.msra.mxu0 %v1381
    %1775 = vmatprep.mubr.bf16.mxu0 %v406
    %1776 = vmatmul.mubr.bf16.gmra.mxu0 %v405
    %v1777 = vpop.f32.mrf.mxu0
    %v1778 = vadd.f32 %v1737, %v1777
    %v1779 = vpop.f32.mrf.mxu0
    %v1780 = vadd.f32 %v1739, %v1779
    %v1781 = vpop.f32.mrf.mxu0
    %v1782 = vpop.f32.mrf.mxu0
    %1783 = vdwg.mxu0
    %1784 = vmatprep.subr.bf16.mxu0 %v1219
    %1785 = vmatpush1.bf16.msra.mxu0 %v1218
    %1786 = vmatprep.subr.bf16.mxu0 %v1214
    %1787 = vmatpush1.bf16.msra.mxu0 %v1213
    %1788 = vmatprep.subr.bf16.mxu0 %v1209
    %1789 = vmatpush1.bf16.msra.mxu0 %v1208
    %1790 = vmatprep.subr.bf16.mxu0 %v1204
    %1791 = vmatpush1.bf16.msra.mxu0 %v1203
    %1792 = vmatprep.subr.bf16.mxu0 %v1199
    %1793 = vmatpush1.bf16.msra.mxu0 %v1198
    %1794 = vmatprep.subr.bf16.mxu0 %v1194
    %1795 = vmatpush1.bf16.msra.mxu0 %v1193
    %1796 = vmatprep.subr.bf16.mxu0 %v1189
    %1797 = vmatpush1.bf16.msra.mxu0 %v1188
    %1798 = vmatprep.subr.bf16.mxu0 %v1184
    %1799 = vmatpush1.bf16.msra.mxu0 %v1183
    %1800 = vmatprep.subr.bf16.mxu0 %v1259
    %1801 = vmatpush2.bf16.msra.mxu0 %v1258
    %1802 = vmatprep.subr.bf16.mxu0 %v1254
    %1803 = vmatpush2.bf16.msra.mxu0 %v1253
    %1804 = vmatprep.subr.bf16.mxu0 %v1249
    %1805 = vmatpush2.bf16.msra.mxu0 %v1248
    %1806 = vmatprep.subr.bf16.mxu0 %v1244
    %1807 = vmatpush2.bf16.msra.mxu0 %v1243
    %1808 = vmatprep.subr.bf16.mxu0 %v1239
    %1809 = vmatpush2.bf16.msra.mxu0 %v1238
    %1810 = vmatprep.subr.bf16.mxu0 %v1234
    %1811 = vmatpush2.bf16.msra.mxu0 %v1233
    %1812 = vmatprep.subr.bf16.mxu0 %v1229
    %1813 = vmatpush2.bf16.msra.mxu0 %v1228
    %1814 = vmatprep.subr.bf16.mxu0 %v1224
    %1815 = vmatpush2.bf16.msra.mxu0 %v1223
    %1816 = vmatprep.mubr.bf16.mxu0 %v402
    %1817 = vmatmul.mubr.bf16.gmra.mxu0 %v401
    %v1818 = vpop.f32.mrf.mxu0
    %v1819 = vadd.f32 %v378, %v1818
    %v1820 = vpop.f32.mrf.mxu0
    %v1821 = vadd.f32 %v382, %v1820
    %v1822 = vpop.f32.mrf.mxu0
    %v1823 = vpop.f32.mrf.mxu0
    %1824 = vdwg.mxu0
    %1825 = vmatprep.subr.bf16.mxu0 %v1299
    %1826 = vmatpush1.bf16.msra.mxu0 %v1298
    %1827 = vmatprep.subr.bf16.mxu0 %v1294
    %1828 = vmatpush1.bf16.msra.mxu0 %v1293
    %1829 = vmatprep.subr.bf16.mxu0 %v1289
    %1830 = vmatpush1.bf16.msra.mxu0 %v1288
    %1831 = vmatprep.subr.bf16.mxu0 %v1284
    %1832 = vmatpush1.bf16.msra.mxu0 %v1283
    %1833 = vmatprep.subr.bf16.mxu0 %v1279
    %1834 = vmatpush1.bf16.msra.mxu0 %v1278
    %1835 = vmatprep.subr.bf16.mxu0 %v1274
    %1836 = vmatpush1.bf16.msra.mxu0 %v1273
    %1837 = vmatprep.subr.bf16.mxu0 %v1269
    %1838 = vmatpush1.bf16.msra.mxu0 %v1268
    %1839 = vmatprep.subr.bf16.mxu0 %v1264
    %1840 = vmatpush1.bf16.msra.mxu0 %v1263
    %1841 = vmatprep.subr.bf16.mxu0 %v1339
    %1842 = vmatpush2.bf16.msra.mxu0 %v1338
    %1843 = vmatprep.subr.bf16.mxu0 %v1334
    %1844 = vmatpush2.bf16.msra.mxu0 %v1333
    %1845 = vmatprep.subr.bf16.mxu0 %v1329
    %1846 = vmatpush2.bf16.msra.mxu0 %v1328
    %1847 = vmatprep.subr.bf16.mxu0 %v1324
    %1848 = vmatpush2.bf16.msra.mxu0 %v1323
    %1849 = vmatprep.subr.bf16.mxu0 %v1319
    %1850 = vmatpush2.bf16.msra.mxu0 %v1318
    %1851 = vmatprep.subr.bf16.mxu0 %v1314
    %1852 = vmatpush2.bf16.msra.mxu0 %v1313
    %1853 = vmatprep.subr.bf16.mxu0 %v1309
    %1854 = vmatpush2.bf16.msra.mxu0 %v1308
    %1855 = vmatprep.subr.bf16.mxu0 %v1304
    %1856 = vmatpush2.bf16.msra.mxu0 %v1303
    %1857 = vmatprep.mubr.bf16.mxu0 %v404
    %1858 = vmatmul.mubr.bf16.gmra.mxu0 %v403
    %v1859 = vpop.f32.mrf.mxu0
    %v1860 = vadd.f32 %v1819, %v1859
    %v1861 = vpop.f32.mrf.mxu0
    %v1862 = vadd.f32 %v1821, %v1861
    %v1863 = vpop.f32.mrf.mxu0
    %v1864 = vpop.f32.mrf.mxu0
    %1865 = vdwg.mxu0
    %1866 = vmatprep.subr.bf16.mxu0 %v1379
    %1867 = vmatpush1.bf16.msra.mxu0 %v1378
    %1868 = vmatprep.subr.bf16.mxu0 %v1374
    %1869 = vmatpush1.bf16.msra.mxu0 %v1373
    %1870 = vmatprep.subr.bf16.mxu0 %v1369
    %1871 = vmatpush1.bf16.msra.mxu0 %v1368
    %1872 = vmatprep.subr.bf16.mxu0 %v1364
    %1873 = vmatpush1.bf16.msra.mxu0 %v1363
    %1874 = vmatprep.subr.bf16.mxu0 %v1359
    %1875 = vmatpush1.bf16.msra.mxu0 %v1358
    %1876 = vmatprep.subr.bf16.mxu0 %v1354
    %1877 = vmatpush1.bf16.msra.mxu0 %v1353
    %1878 = vmatprep.subr.bf16.mxu0 %v1349
    %1879 = vmatpush1.bf16.msra.mxu0 %v1348
    %1880 = vmatprep.subr.bf16.mxu0 %v1344
    %1881 = vmatpush1.bf16.msra.mxu0 %v1343
    %1882 = vmatprep.subr.bf16.mxu0 %v1419
    %1883 = vmatpush2.bf16.msra.mxu0 %v1418
    %1884 = vmatprep.subr.bf16.mxu0 %v1414
    %1885 = vmatpush2.bf16.msra.mxu0 %v1413
    %1886 = vmatprep.subr.bf16.mxu0 %v1409
    %1887 = vmatpush2.bf16.msra.mxu0 %v1408
    %1888 = vmatprep.subr.bf16.mxu0 %v1404
    %1889 = vmatpush2.bf16.msra.mxu0 %v1403
    %1890 = vmatprep.subr.bf16.mxu0 %v1399
    %1891 = vmatpush2.bf16.msra.mxu0 %v1398
    %1892 = vmatprep.subr.bf16.mxu0 %v1394
    %1893 = vmatpush2.bf16.msra.mxu0 %v1393
    %1894 = vmatprep.subr.bf16.mxu0 %v1389
    %1895 = vmatpush2.bf16.msra.mxu0 %v1388
    %1896 = vmatprep.subr.bf16.mxu0 %v1384
    %1897 = vmatpush2.bf16.msra.mxu0 %v1383
    %1898 = vmatprep.mubr.bf16.mxu0 %v406
    %1899 = vmatmul.mubr.bf16.gmra.mxu0 %v405
    %v1900 = vpop.f32.mrf.mxu0
    %v1901 = vadd.f32 %v1860, %v1900
    %v1902 = vpop.f32.mrf.mxu0
    %v1903 = vadd.f32 %v1862, %v1902
    %v1904 = vpop.f32.mrf.mxu0
    %v1905 = vpop.f32.mrf.mxu0
    %1906 = vdwg.mxu0
    %1907 = vmatprep.subr.bf16.mxu0 0
    %1908 = vmatpush1.bf16.msra.mxu0 %v1220
    %1909 = vmatprep.subr.bf16.mxu0 0
    %1910 = vmatpush1.bf16.msra.mxu0 %v1215
    %1911 = vmatprep.subr.bf16.mxu0 0
    %1912 = vmatpush1.bf16.msra.mxu0 %v1210
    %1913 = vmatprep.subr.bf16.mxu0 0
    %1914 = vmatpush1.bf16.msra.mxu0 %v1205
    %1915 = vmatprep.subr.bf16.mxu0 0
    %1916 = vmatpush1.bf16.msra.mxu0 %v1200
    %1917 = vmatprep.subr.bf16.mxu0 0
    %1918 = vmatpush1.bf16.msra.mxu0 %v1195
    %1919 = vmatprep.subr.bf16.mxu0 0
    %1920 = vmatpush1.bf16.msra.mxu0 %v1190
    %1921 = vmatprep.subr.bf16.mxu0 0
    %1922 = vmatpush1.bf16.msra.mxu0 %v1185
    %1923 = vmatprep.subr.bf16.mxu0 0
    %1924 = vmatpush2.bf16.msra.mxu0 %v1260
    %1925 = vmatprep.subr.bf16.mxu0 0
    %1926 = vmatpush2.bf16.msra.mxu0 %v1255
    %1927 = vmatprep.subr.bf16.mxu0 0
    %1928 = vmatpush2.bf16.msra.mxu0 %v1250
    %1929 = vmatprep.subr.bf16.mxu0 0
    %1930 = vmatpush2.bf16.msra.mxu0 %v1245
    %1931 = vmatprep.subr.bf16.mxu0 0
    %1932 = vmatpush2.bf16.msra.mxu0 %v1240
    %1933 = vmatprep.subr.bf16.mxu0 0
    %1934 = vmatpush2.bf16.msra.mxu0 %v1235
    %1935 = vmatprep.subr.bf16.mxu0 0
    %1936 = vmatpush2.bf16.msra.mxu0 %v1230
    %1937 = vmatprep.subr.bf16.mxu0 0
    %1938 = vmatpush2.bf16.msra.mxu0 %v1225
    %1939 = vmatprep.mubr.bf16.mxu0 %v402
    %1940 = vmatmul.mubr.bf16.gmra.mxu0 %v401
    %v1941 = vpop.f32.mrf.mxu0
    %v1942 = vadd.f32 %v386, %v1941
    %v1943 = vpop.f32.mrf.mxu0
    %v1944 = vpop.f32.mrf.mxu0
    %v1945 = vpop.f32.mrf.mxu0
    %1946 = vdwg.mxu0
    %1947 = vmatprep.subr.bf16.mxu0 0
    %1948 = vmatpush1.bf16.msra.mxu0 %v1300
    %1949 = vmatprep.subr.bf16.mxu0 0
    %1950 = vmatpush1.bf16.msra.mxu0 %v1295
    %1951 = vmatprep.subr.bf16.mxu0 0
    %1952 = vmatpush1.bf16.msra.mxu0 %v1290
    %1953 = vmatprep.subr.bf16.mxu0 0
    %1954 = vmatpush1.bf16.msra.mxu0 %v1285
    %1955 = vmatprep.subr.bf16.mxu0 0
    %1956 = vmatpush1.bf16.msra.mxu0 %v1280
    %1957 = vmatprep.subr.bf16.mxu0 0
    %1958 = vmatpush1.bf16.msra.mxu0 %v1275
    %1959 = vmatprep.subr.bf16.mxu0 0
    %1960 = vmatpush1.bf16.msra.mxu0 %v1270
    %1961 = vmatprep.subr.bf16.mxu0 0
    %1962 = vmatpush1.bf16.msra.mxu0 %v1265
    %1963 = vmatprep.subr.bf16.mxu0 0
    %1964 = vmatpush2.bf16.msra.mxu0 %v1340
    %1965 = vmatprep.subr.bf16.mxu0 0
    %1966 = vmatpush2.bf16.msra.mxu0 %v1335
    %1967 = vmatprep.subr.bf16.mxu0 0
    %1968 = vmatpush2.bf16.msra.mxu0 %v1330
    %1969 = vmatprep.subr.bf16.mxu0 0
    %1970 = vmatpush2.bf16.msra.mxu0 %v1325
    %1971 = vmatprep.subr.bf16.mxu0 0
    %1972 = vmatpush2.bf16.msra.mxu0 %v1320
    %1973 = vmatprep.subr.bf16.mxu0 0
    %1974 = vmatpush2.bf16.msra.mxu0 %v1315
    %1975 = vmatprep.subr.bf16.mxu0 0
    %1976 = vmatpush2.bf16.msra.mxu0 %v1310
    %1977 = vmatprep.subr.bf16.mxu0 0
    %1978 = vmatpush2.bf16.msra.mxu0 %v1305
    %1979 = vmatprep.mubr.bf16.mxu0 %v404
    %1980 = vmatmul.mubr.bf16.gmra.mxu0 %v403
    %v1981 = vpop.f32.mrf.mxu0
    %v1982 = vadd.f32 %v1942, %v1981
    %v1983 = vpop.f32.mrf.mxu0
    %v1984 = vpop.f32.mrf.mxu0
    %v1985 = vpop.f32.mrf.mxu0
    %1986 = vdwg.mxu0
    %1987 = vmatprep.subr.bf16.mxu0 0
    %1988 = vmatpush1.bf16.msra.mxu0 %v1380
    %1989 = vmatprep.subr.bf16.mxu0 0
    %1990 = vmatpush1.bf16.msra.mxu0 %v1375
    %1991 = vmatprep.subr.bf16.mxu0 0
    %1992 = vmatpush1.bf16.msra.mxu0 %v1370
    %1993 = vmatprep.subr.bf16.mxu0 0
    %1994 = vmatpush1.bf16.msra.mxu0 %v1365
    %1995 = vmatprep.subr.bf16.mxu0 0
    %1996 = vmatpush1.bf16.msra.mxu0 %v1360
    %1997 = vmatprep.subr.bf16.mxu0 0
    %1998 = vmatpush1.bf16.msra.mxu0 %v1355
    %1999 = vmatprep.subr.bf16.mxu0 0
    %2000 = vmatpush1.bf16.msra.mxu0 %v1350
    %2001 = vmatprep.subr.bf16.mxu0 0
    %2002 = vmatpush1.bf16.msra.mxu0 %v1345
    %2003 = vmatprep.subr.bf16.mxu0 0
    %2004 = vmatpush2.bf16.msra.mxu0 %v1420
    %2005 = vmatprep.subr.bf16.mxu0 0
    %2006 = vmatpush2.bf16.msra.mxu0 %v1415
    %2007 = vmatprep.subr.bf16.mxu0 0
    %2008 = vmatpush2.bf16.msra.mxu0 %v1410
    %2009 = vmatprep.subr.bf16.mxu0 0
    %2010 = vmatpush2.bf16.msra.mxu0 %v1405
    %2011 = vmatprep.subr.bf16.mxu0 0
    %2012 = vmatpush2.bf16.msra.mxu0 %v1400
    %2013 = vmatprep.subr.bf16.mxu0 0
    %2014 = vmatpush2.bf16.msra.mxu0 %v1395
    %2015 = vmatprep.subr.bf16.mxu0 0
    %2016 = vmatpush2.bf16.msra.mxu0 %v1390
    %2017 = vmatprep.subr.bf16.mxu0 0
    %2018 = vmatpush2.bf16.msra.mxu0 %v1385
    %2019 = vmatprep.mubr.bf16.mxu0 %v406
    %2020 = vmatmul.mubr.bf16.gmra.mxu0 %v405
    %v2021 = vpop.f32.mrf.mxu0
    %v2022 = vadd.f32 %v1982, %v2021
    %v2023 = vpop.f32.mrf.mxu0
    %v2024 = vpop.f32.mrf.mxu0
    %v2025 = vpop.f32.mrf.mxu0
    %2026 = vdwg.mxu0
    %v2027 = vmax.f32 %v1778, 0.0
    %v2028 = vmax.f32 %v1780, 0.0
    %v2029 = vmax.f32 %v1901, 0.0
    %v2030 = vmax.f32 %v1903, 0.0
    %v2031 = vmax.f32 %v2022, 0.0
    %v2032 = vpack.c.bf16 %v2027, %v2027
    %v2033 = vpack.c.bf16 %v2028, %v2028
    %v2034 = vpack.c.bf16 %v2029, %v2029
    %v2035 = vpack.c.bf16 %v2030, %v2030
    %v2036 = vpack.c.bf16 %v2031, %v2031
    %v2037 = vld [vmem:[#allocation4] sm:$0xff]
    %v2038 = vld [vmem:[#allocation4 + $0x8] sm:$0xff]
    %v2039 = vld [vmem:[#allocation4 + $0x10] sm:$0xff]
    %v2040 = vld [vmem:[#allocation4 + $0x18] sm:$0xff]
    %v2041 = vld [vmem:[#allocation4 + $0x20] sm:$0xff]
    %v2042 = vld [vmem:[#allocation4 + $0x28] sm:$0xff]
    %v2043 = vld [vmem:[#allocation4 + $0x30] sm:$0xff]
    %v2044 = vld [vmem:[#allocation4 + $0x38] sm:$0xff]
    %v2045 = vld [vmem:[#allocation4 + $0x40] sm:$0xff]
    %v2046 = vld [vmem:[#allocation4 + $0x48] sm:$0xff]
    %v2047 = vld [vmem:[#allocation4 + $0x50] sm:$0xff]
    %v2048 = vld [vmem:[#allocation4 + $0x58] sm:$0xff]
    %v2049 = vld [vmem:[#allocation4 + $0x60] sm:$0xff]
    %v2050 = vld [vmem:[#allocation4 + $0x68] sm:$0xff]
    %v2051 = vld [vmem:[#allocation4 + $0x70] sm:$0xff]
    %v2052 = vld [vmem:[#allocation4 + $0x78] sm:$0xff]
    %v2053 = vld [vmem:[#allocation4 + $0x80] sm:$0xff]
    %v2054 = vld [vmem:[#allocation4 + $0x88] sm:$0xff]
    %v2055 = vld [vmem:[#allocation4 + $0x90] sm:$0xff]
    %v2056 = vld [vmem:[#allocation4 + $0x98] sm:$0xff]
    %v2057 = vld [vmem:[#allocation4 + $0xa0] sm:$0xff]
    %v2058 = vld [vmem:[#allocation4 + $0xa8] sm:$0xff]
    %v2059 = vld [vmem:[#allocation4 + $0xb0] sm:$0xff]
    %v2060 = vld [vmem:[#allocation4 + $0xb8] sm:$0xff]
    %v2061 = vld [vmem:[#allocation4 + $0xc0] sm:$0xff]
    %v2062 = vld [vmem:[#allocation4 + $0xc8] sm:$0xff]
    %v2063 = vld [vmem:[#allocation4 + $0xd0] sm:$0xff]
    %v2064 = vld [vmem:[#allocation4 + $0xd8] sm:$0xff]
    %v2065 = vld [vmem:[#allocation4 + $0xe0] sm:$0xff]
    %v2066 = vld [vmem:[#allocation4 + $0xe8] sm:$0xff]
    %v2067 = vld [vmem:[#allocation4 + $0xf0] sm:$0xff]
    %v2068 = vld [vmem:[#allocation4 + $0xf8] sm:$0xff]
    %v2069 = vld [vmem:[#allocation4 + $0x100] sm:$0xff]
    %v2070 = vld [vmem:[#allocation4 + $0x108] sm:$0xff]
    %v2071 = vld [vmem:[#allocation4 + $0x110] sm:$0xff]
    %v2072 = vld [vmem:[#allocation4 + $0x118] sm:$0xff]
    %v2073 = vld [vmem:[#allocation4 + $0x120] sm:$0xff]
    %v2074 = vld [vmem:[#allocation4 + $0x128] sm:$0xff]
    %v2075 = vld [vmem:[#allocation4 + $0x130] sm:$0xff]
    %v2076 = vld [vmem:[#allocation4 + $0x138] sm:$0xff]
    %v2077 = vld [vmem:[#allocation4 + $0x140] sm:$0xff]
    %v2078 = vld [vmem:[#allocation4 + $0x148] sm:$0xff]
    %v2079 = vld [vmem:[#allocation4 + $0x150] sm:$0xff]
    %v2080 = vld [vmem:[#allocation4 + $0x158] sm:$0xff]
    %v2081 = vld [vmem:[#allocation4 + $0x160] sm:$0xff]
    %v2082 = vld [vmem:[#allocation4 + $0x168] sm:$0xff]
    %v2083 = vld [vmem:[#allocation4 + $0x170] sm:$0xff]
    %v2084 = vld [vmem:[#allocation4 + $0x178] sm:$0xff]
    %v2085 = vld [vmem:[#allocation4 + $0x180] sm:$0xff]
    %v2086 = vld [vmem:[#allocation4 + $0x188] sm:$0xff]
    %v2087 = vld [vmem:[#allocation4 + $0x190] sm:$0xff]
    %v2088 = vld [vmem:[#allocation4 + $0x198] sm:$0xff]
    %v2089 = vld [vmem:[#allocation4 + $0x1a0] sm:$0xff]
    %v2090 = vld [vmem:[#allocation4 + $0x1a8] sm:$0xff]
    %v2091 = vld [vmem:[#allocation4 + $0x1b0] sm:$0xff]
    %v2092 = vld [vmem:[#allocation4 + $0x1b8] sm:$0xff]
    %v2093 = vld [vmem:[#allocation4 + $0x1c0] sm:$0xff]
    %v2094 = vld [vmem:[#allocation4 + $0x1c8] sm:$0xff]
    %v2095 = vld [vmem:[#allocation4 + $0x1d0] sm:$0xff]
    %v2096 = vld [vmem:[#allocation4 + $0x1d8] sm:$0xff]
    %v2097 = vld [vmem:[#allocation4 + $0x1e0] sm:$0xff]
    %v2098 = vld [vmem:[#allocation4 + $0x1e8] sm:$0xff]
    %v2099 = vld [vmem:[#allocation4 + $0x1f0] sm:$0xff]
    %v2100 = vld [vmem:[#allocation4 + $0x1f8] sm:$0xff]
    %v2101 = vld [vmem:[#allocation4 + $0x200] sm:$0xff]
    %v2102 = vld [vmem:[#allocation4 + $0x208] sm:$0xff]
    %v2103 = vld [vmem:[#allocation4 + $0x210] sm:$0xff]
    %v2104 = vld [vmem:[#allocation4 + $0x218] sm:$0xff]
    %v2105 = vld [vmem:[#allocation4 + $0x220] sm:$0xff]
    %v2106 = vld [vmem:[#allocation4 + $0x228] sm:$0xff]
    %v2107 = vld [vmem:[#allocation4 + $0x230] sm:$0xff]
    %v2108 = vld [vmem:[#allocation4 + $0x238] sm:$0xff]
    %v2109 = vld [vmem:[#allocation4 + $0x240] sm:$0xff]
    %v2110 = vld [vmem:[#allocation4 + $0x248] sm:$0xff]
    %v2111 = vld [vmem:[#allocation4 + $0x250] sm:$0xff]
    %v2112 = vld [vmem:[#allocation4 + $0x258] sm:$0xff]
    %v2113 = vld [vmem:[#allocation4 + $0x260] sm:$0xff]
    %v2114 = vld [vmem:[#allocation4 + $0x268] sm:$0xff]
    %v2115 = vld [vmem:[#allocation4 + $0x270] sm:$0xff]
    %v2116 = vld [vmem:[#allocation4 + $0x278] sm:$0xff]
    %v2117 = vld [vmem:[#allocation4 + $0x280] sm:$0xff]
    %v2118 = vld [vmem:[#allocation4 + $0x288] sm:$0xff]
    %v2119 = vld [vmem:[#allocation4 + $0x290] sm:$0xff]
    %v2120 = vld [vmem:[#allocation4 + $0x298] sm:$0xff]
    %v2121 = vld [vmem:[#allocation4 + $0x2a0] sm:$0xff]
    %v2122 = vld [vmem:[#allocation4 + $0x2a8] sm:$0xff]
    %v2123 = vld [vmem:[#allocation4 + $0x2b0] sm:$0xff]
    %v2124 = vld [vmem:[#allocation4 + $0x2b8] sm:$0xff]
    %v2125 = vld [vmem:[#allocation4 + $0x2c0] sm:$0xff]
    %v2126 = vld [vmem:[#allocation4 + $0x2c8] sm:$0xff]
    %v2127 = vld [vmem:[#allocation4 + $0x2d0] sm:$0xff]
    %v2128 = vld [vmem:[#allocation4 + $0x2d8] sm:$0xff]
    %v2129 = vld [vmem:[#allocation4 + $0x2e0] sm:$0xff]
    %v2130 = vld [vmem:[#allocation4 + $0x2e8] sm:$0xff]
    %v2131 = vld [vmem:[#allocation4 + $0x2f0] sm:$0xff]
    %v2132 = vld [vmem:[#allocation4 + $0x2f8] sm:$0xff]
    %v2133 = vld [vmem:[#allocation4 + $0x300] sm:$0xff]
    %v2134 = vld [vmem:[#allocation4 + $0x308] sm:$0xff]
    %v2135 = vld [vmem:[#allocation4 + $0x310] sm:$0xff]
    %v2136 = vld [vmem:[#allocation4 + $0x318] sm:$0xff]
    %v2137 = vld [vmem:[#allocation4 + $0x320] sm:$0xff]
    %v2138 = vld [vmem:[#allocation4 + $0x328] sm:$0xff]
    %v2139 = vld [vmem:[#allocation4 + $0x330] sm:$0xff]
    %v2140 = vld [vmem:[#allocation4 + $0x338] sm:$0xff]
    %v2141 = vld [vmem:[#allocation4 + $0x340] sm:$0xff]
    %v2142 = vld [vmem:[#allocation4 + $0x348] sm:$0xff]
    %v2143 = vld [vmem:[#allocation4 + $0x350] sm:$0xff]
    %v2144 = vld [vmem:[#allocation4 + $0x358] sm:$0xff]
    %v2145 = vld [vmem:[#allocation4 + $0x360] sm:$0xff]
    %v2146 = vld [vmem:[#allocation4 + $0x368] sm:$0xff]
    %v2147 = vld [vmem:[#allocation4 + $0x370] sm:$0xff]
    %v2148 = vld [vmem:[#allocation4 + $0x378] sm:$0xff]
    %v2149 = vld [vmem:[#allocation4 + $0x380] sm:$0xff]
    %v2150 = vld [vmem:[#allocation4 + $0x388] sm:$0xff]
    %v2151 = vld [vmem:[#allocation4 + $0x390] sm:$0xff]
    %v2152 = vld [vmem:[#allocation4 + $0x398] sm:$0xff]
    %v2153 = vld [vmem:[#allocation4 + $0x3a0] sm:$0xff]
    %v2154 = vld [vmem:[#allocation4 + $0x3a8] sm:$0xff]
    %v2155 = vld [vmem:[#allocation4 + $0x3b0] sm:$0xff]
    %v2156 = vld [vmem:[#allocation4 + $0x3b8] sm:$0xff]
    %v2157 = vld [vmem:[#allocation4 + $0x3c0] sm:$0xff]
    %v2158 = vld [vmem:[#allocation4 + $0x3c8] sm:$0xff]
    %v2159 = vld [vmem:[#allocation4 + $0x3d0] sm:$0xff]
    %v2160 = vld [vmem:[#allocation4 + $0x3d8] sm:$0xff]
    %v2161 = vld [vmem:[#allocation4 + $0x3e0] sm:$0xff]
    %v2162 = vld [vmem:[#allocation4 + $0x3e8] sm:$0xff]
    %v2163 = vld [vmem:[#allocation4 + $0x3f0] sm:$0xff]
    %v2164 = vld [vmem:[#allocation4 + $0x3f8] sm:$0xff]
    %v2165 = vld [vmem:[#allocation4 + $0x400] sm:$0xff]
    %v2166 = vld [vmem:[#allocation4 + $0x408] sm:$0xff]
    %v2167 = vld [vmem:[#allocation4 + $0x410] sm:$0xff]
    %v2168 = vld [vmem:[#allocation4 + $0x418] sm:$0xff]
    %v2169 = vld [vmem:[#allocation4 + $0x420] sm:$0xff]
    %v2170 = vld [vmem:[#allocation4 + $0x428] sm:$0xff]
    %v2171 = vld [vmem:[#allocation4 + $0x430] sm:$0xff]
    %v2172 = vld [vmem:[#allocation4 + $0x438] sm:$0xff]
    %v2173 = vld [vmem:[#allocation4 + $0x440] sm:$0xff]
    %v2174 = vld [vmem:[#allocation4 + $0x448] sm:$0xff]
    %v2175 = vld [vmem:[#allocation4 + $0x450] sm:$0xff]
    %v2176 = vld [vmem:[#allocation4 + $0x458] sm:$0xff]
    %v2177 = vld [vmem:[#allocation4 + $0x460] sm:$0xff]
    %v2178 = vld [vmem:[#allocation4 + $0x468] sm:$0xff]
    %v2179 = vld [vmem:[#allocation4 + $0x470] sm:$0xff]
    %v2180 = vld [vmem:[#allocation4 + $0x478] sm:$0xff]
    %v2181 = vld [vmem:[#allocation4 + $0x480] sm:$0xff]
    %v2182 = vld [vmem:[#allocation4 + $0x488] sm:$0xff]
    %v2183 = vld [vmem:[#allocation4 + $0x490] sm:$0xff]
    %v2184 = vld [vmem:[#allocation4 + $0x498] sm:$0xff]
    %v2185 = vld [vmem:[#allocation4 + $0x4a0] sm:$0xff]
    %v2186 = vld [vmem:[#allocation4 + $0x4a8] sm:$0xff]
    %v2187 = vld [vmem:[#allocation4 + $0x4b0] sm:$0xff]
    %v2188 = vld [vmem:[#allocation4 + $0x4b8] sm:$0xff]
    %v2189 = vld [vmem:[#allocation4 + $0x4c0] sm:$0xff]
    %v2190 = vld [vmem:[#allocation4 + $0x4c8] sm:$0xff]
    %v2191 = vld [vmem:[#allocation4 + $0x4d0] sm:$0xff]
    %v2192 = vld [vmem:[#allocation4 + $0x4d8] sm:$0xff]
    %v2193 = vld [vmem:[#allocation4 + $0x4e0] sm:$0xff]
    %v2194 = vld [vmem:[#allocation4 + $0x4e8] sm:$0xff]
    %v2195 = vld [vmem:[#allocation4 + $0x4f0] sm:$0xff]
    %v2196 = vld [vmem:[#allocation4 + $0x4f8] sm:$0xff]
    %v2197 = vld [vmem:[%s4] sm:$0xf]
    %v2199 = vlaneseq
    %v2200 = vshrl.u32 %v2199, 7
    %v2201 = vsub.s32 0, %v2200
    %v2202 = vrot.slane %v2197, %v2201
    %v2203 = vlaneseq
    %v2204 = vshrl.u32 %v2203, 7
    %v2205 = vsub.s32 1, %v2204
    %v2206 = vrot.slane %v2197, %v2205
    %v2207 = vlaneseq
    %v2208 = vshrl.u32 %v2207, 7
    %v2209 = vsub.s32 2, %v2208
    %v2210 = vrot.slane %v2197, %v2209
    %v2211 = vlaneseq
    %v2212 = vshrl.u32 %v2211, 7
    %v2213 = vsub.s32 3, %v2212
    %v2214 = vrot.slane %v2197, %v2213
    %v2379 = vunpack.c.l.b16 %v2037
    %v2380 = vunpack.c.h.b16 %v2037
    %v2381 = vunpack.c.l.b16 %v2038
    %v2382 = vunpack.c.h.b16 %v2038
    %v2383 = vunpack.c.l.b16 %v2039
    %v2384 = vunpack.c.h.b16 %v2039
    %v2385 = vunpack.c.l.b16 %v2040
    %v2386 = vunpack.c.h.b16 %v2040
    %v2387 = vunpack.c.l.b16 %v2041
    %v2388 = vunpack.c.h.b16 %v2041
    %v2389 = vunpack.c.l.b16 %v2042
    %v2390 = vunpack.c.h.b16 %v2042
    %v2391 = vunpack.c.l.b16 %v2043
    %v2392 = vunpack.c.h.b16 %v2043
    %v2393 = vunpack.c.l.b16 %v2044
    %v2394 = vunpack.c.h.b16 %v2044
    %v2395 = vunpack.c.l.b16 %v2045
    %v2396 = vunpack.c.h.b16 %v2045
    %v2397 = vunpack.c.l.b16 %v2046
    %v2398 = vunpack.c.h.b16 %v2046
    %v2399 = vunpack.c.l.b16 %v2047
    %v2400 = vunpack.c.h.b16 %v2047
    %v2401 = vunpack.c.l.b16 %v2048
    %v2402 = vunpack.c.h.b16 %v2048
    %v2403 = vunpack.c.l.b16 %v2049
    %v2404 = vunpack.c.h.b16 %v2049
    %v2405 = vunpack.c.l.b16 %v2050
    %v2406 = vunpack.c.h.b16 %v2050
    %v2407 = vunpack.c.l.b16 %v2051
    %v2408 = vunpack.c.h.b16 %v2051
    %v2409 = vunpack.c.l.b16 %v2052
    %v2410 = vunpack.c.h.b16 %v2052
    %v2411 = vunpack.c.l.b16 %v2053
    %v2412 = vunpack.c.h.b16 %v2053
    %v2413 = vunpack.c.l.b16 %v2054
    %v2414 = vunpack.c.h.b16 %v2054
    %v2415 = vunpack.c.l.b16 %v2055
    %v2416 = vunpack.c.h.b16 %v2055
    %v2417 = vunpack.c.l.b16 %v2056
    %v2418 = vunpack.c.h.b16 %v2056
    %v2419 = vunpack.c.l.b16 %v2057
    %v2420 = vunpack.c.h.b16 %v2057
    %v2421 = vunpack.c.l.b16 %v2058
    %v2422 = vunpack.c.h.b16 %v2058
    %v2423 = vunpack.c.l.b16 %v2059
    %v2424 = vunpack.c.h.b16 %v2059
    %v2425 = vunpack.c.l.b16 %v2060
    %v2426 = vunpack.c.h.b16 %v2060
    %v2427 = vunpack.c.l.b16 %v2061
    %v2428 = vunpack.c.h.b16 %v2061
    %v2429 = vunpack.c.l.b16 %v2062
    %v2430 = vunpack.c.h.b16 %v2062
    %v2431 = vunpack.c.l.b16 %v2063
    %v2432 = vunpack.c.h.b16 %v2063
    %v2433 = vunpack.c.l.b16 %v2064
    %v2434 = vunpack.c.h.b16 %v2064
    %v2435 = vunpack.c.l.b16 %v2065
    %v2436 = vunpack.c.h.b16 %v2065
    %v2437 = vunpack.c.l.b16 %v2066
    %v2438 = vunpack.c.h.b16 %v2066
    %v2439 = vunpack.c.l.b16 %v2067
    %v2440 = vunpack.c.h.b16 %v2067
    %v2441 = vunpack.c.l.b16 %v2068
    %v2442 = vunpack.c.h.b16 %v2068
    %v2443 = vunpack.c.l.b16 %v2069
    %v2444 = vunpack.c.h.b16 %v2069
    %v2445 = vunpack.c.l.b16 %v2070
    %v2446 = vunpack.c.h.b16 %v2070
    %v2447 = vunpack.c.l.b16 %v2071
    %v2448 = vunpack.c.h.b16 %v2071
    %v2449 = vunpack.c.l.b16 %v2072
    %v2450 = vunpack.c.h.b16 %v2072
    %v2451 = vunpack.c.l.b16 %v2073
    %v2452 = vunpack.c.h.b16 %v2073
    %v2453 = vunpack.c.l.b16 %v2074
    %v2454 = vunpack.c.h.b16 %v2074
    %v2455 = vunpack.c.l.b16 %v2075
    %v2456 = vunpack.c.h.b16 %v2075
    %v2457 = vunpack.c.l.b16 %v2076
    %v2458 = vunpack.c.h.b16 %v2076
    %v2459 = vunpack.c.l.b16 %v2077
    %v2460 = vunpack.c.h.b16 %v2077
    %v2461 = vunpack.c.l.b16 %v2078
    %v2462 = vunpack.c.h.b16 %v2078
    %v2463 = vunpack.c.l.b16 %v2079
    %v2464 = vunpack.c.h.b16 %v2079
    %v2465 = vunpack.c.l.b16 %v2080
    %v2466 = vunpack.c.h.b16 %v2080
    %v2467 = vunpack.c.l.b16 %v2081
    %v2468 = vunpack.c.h.b16 %v2081
    %v2469 = vunpack.c.l.b16 %v2082
    %v2470 = vunpack.c.h.b16 %v2082
    %v2471 = vunpack.c.l.b16 %v2083
    %v2472 = vunpack.c.h.b16 %v2083
    %v2473 = vunpack.c.l.b16 %v2084
    %v2474 = vunpack.c.h.b16 %v2084
    %v2475 = vunpack.c.l.b16 %v2085
    %v2476 = vunpack.c.h.b16 %v2085
    %v2477 = vunpack.c.l.b16 %v2086
    %v2478 = vunpack.c.h.b16 %v2086
    %v2479 = vunpack.c.l.b16 %v2087
    %v2480 = vunpack.c.h.b16 %v2087
    %v2481 = vunpack.c.l.b16 %v2088
    %v2482 = vunpack.c.h.b16 %v2088
    %v2483 = vunpack.c.l.b16 %v2089
    %v2484 = vunpack.c.h.b16 %v2089
    %v2485 = vunpack.c.l.b16 %v2090
    %v2486 = vunpack.c.h.b16 %v2090
    %v2487 = vunpack.c.l.b16 %v2091
    %v2488 = vunpack.c.h.b16 %v2091
    %v2489 = vunpack.c.l.b16 %v2092
    %v2490 = vunpack.c.h.b16 %v2092
    %v2491 = vunpack.c.l.b16 %v2093
    %v2492 = vunpack.c.h.b16 %v2093
    %v2493 = vunpack.c.l.b16 %v2094
    %v2494 = vunpack.c.h.b16 %v2094
    %v2495 = vunpack.c.l.b16 %v2095
    %v2496 = vunpack.c.h.b16 %v2095
    %v2497 = vunpack.c.l.b16 %v2096
    %v2498 = vunpack.c.h.b16 %v2096
    %v2499 = vunpack.c.l.b16 %v2097
    %v2500 = vunpack.c.h.b16 %v2097
    %v2501 = vunpack.c.l.b16 %v2098
    %v2502 = vunpack.c.h.b16 %v2098
    %v2503 = vunpack.c.l.b16 %v2099
    %v2504 = vunpack.c.h.b16 %v2099
    %v2505 = vunpack.c.l.b16 %v2100
    %v2506 = vunpack.c.h.b16 %v2100
    %v2507 = vunpack.c.l.b16 %v2101
    %v2508 = vunpack.c.h.b16 %v2101
    %v2509 = vunpack.c.l.b16 %v2102
    %v2510 = vunpack.c.h.b16 %v2102
    %v2511 = vunpack.c.l.b16 %v2103
    %v2512 = vunpack.c.h.b16 %v2103
    %v2513 = vunpack.c.l.b16 %v2104
    %v2514 = vunpack.c.h.b16 %v2104
    %v2515 = vunpack.c.l.b16 %v2105
    %v2516 = vunpack.c.h.b16 %v2105
    %v2517 = vunpack.c.l.b16 %v2106
    %v2518 = vunpack.c.h.b16 %v2106
    %v2519 = vunpack.c.l.b16 %v2107
    %v2520 = vunpack.c.h.b16 %v2107
    %v2521 = vunpack.c.l.b16 %v2108
    %v2522 = vunpack.c.h.b16 %v2108
    %v2523 = vunpack.c.l.b16 %v2109
    %v2524 = vunpack.c.h.b16 %v2109
    %v2525 = vunpack.c.l.b16 %v2110
    %v2526 = vunpack.c.h.b16 %v2110
    %v2527 = vunpack.c.l.b16 %v2111
    %v2528 = vunpack.c.h.b16 %v2111
    %v2529 = vunpack.c.l.b16 %v2112
    %v2530 = vunpack.c.h.b16 %v2112
    %v2531 = vunpack.c.l.b16 %v2113
    %v2532 = vunpack.c.h.b16 %v2113
    %v2533 = vunpack.c.l.b16 %v2114
    %v2534 = vunpack.c.h.b16 %v2114
    %v2535 = vunpack.c.l.b16 %v2115
    %v2536 = vunpack.c.h.b16 %v2115
    %v2537 = vunpack.c.l.b16 %v2116
    %v2538 = vunpack.c.h.b16 %v2116
    %v2539 = vunpack.c.l.b16 %v2117
    %v2540 = vunpack.c.h.b16 %v2117
    %v2541 = vunpack.c.l.b16 %v2118
    %v2542 = vunpack.c.h.b16 %v2118
    %v2543 = vunpack.c.l.b16 %v2119
    %v2544 = vunpack.c.h.b16 %v2119
    %v2545 = vunpack.c.l.b16 %v2120
    %v2546 = vunpack.c.h.b16 %v2120
    %v2547 = vunpack.c.l.b16 %v2121
    %v2548 = vunpack.c.h.b16 %v2121
    %v2549 = vunpack.c.l.b16 %v2122
    %v2550 = vunpack.c.h.b16 %v2122
    %v2551 = vunpack.c.l.b16 %v2123
    %v2552 = vunpack.c.h.b16 %v2123
    %v2553 = vunpack.c.l.b16 %v2124
    %v2554 = vunpack.c.h.b16 %v2124
    %v2555 = vunpack.c.l.b16 %v2125
    %v2556 = vunpack.c.h.b16 %v2125
    %v2557 = vunpack.c.l.b16 %v2126
    %v2558 = vunpack.c.h.b16 %v2126
    %v2559 = vunpack.c.l.b16 %v2127
    %v2560 = vunpack.c.h.b16 %v2127
    %v2561 = vunpack.c.l.b16 %v2128
    %v2562 = vunpack.c.h.b16 %v2128
    %v2563 = vunpack.c.l.b16 %v2129
    %v2564 = vunpack.c.h.b16 %v2129
    %v2565 = vunpack.c.l.b16 %v2130
    %v2566 = vunpack.c.h.b16 %v2130
    %v2567 = vunpack.c.l.b16 %v2131
    %v2568 = vunpack.c.h.b16 %v2131
    %v2569 = vunpack.c.l.b16 %v2132
    %v2570 = vunpack.c.h.b16 %v2132
    %v2571 = vunpack.c.l.b16 %v2133
    %v2572 = vunpack.c.h.b16 %v2133
    %v2573 = vunpack.c.l.b16 %v2134
    %v2574 = vunpack.c.h.b16 %v2134
    %v2575 = vunpack.c.l.b16 %v2135
    %v2576 = vunpack.c.h.b16 %v2135
    %v2577 = vunpack.c.l.b16 %v2136
    %v2578 = vunpack.c.h.b16 %v2136
    %v2579 = vunpack.c.l.b16 %v2137
    %v2580 = vunpack.c.h.b16 %v2137
    %v2581 = vunpack.c.l.b16 %v2138
    %v2582 = vunpack.c.h.b16 %v2138
    %v2583 = vunpack.c.l.b16 %v2139
    %v2584 = vunpack.c.h.b16 %v2139
    %v2585 = vunpack.c.l.b16 %v2140
    %v2586 = vunpack.c.h.b16 %v2140
    %v2587 = vunpack.c.l.b16 %v2141
    %v2588 = vunpack.c.h.b16 %v2141
    %v2589 = vunpack.c.l.b16 %v2142
    %v2590 = vunpack.c.h.b16 %v2142
    %v2591 = vunpack.c.l.b16 %v2143
    %v2592 = vunpack.c.h.b16 %v2143
    %v2593 = vunpack.c.l.b16 %v2144
    %v2594 = vunpack.c.h.b16 %v2144
    %v2595 = vunpack.c.l.b16 %v2145
    %v2596 = vunpack.c.h.b16 %v2145
    %v2597 = vunpack.c.l.b16 %v2146
    %v2598 = vunpack.c.h.b16 %v2146
    %v2599 = vunpack.c.l.b16 %v2147
    %v2600 = vunpack.c.h.b16 %v2147
    %v2601 = vunpack.c.l.b16 %v2148
    %v2602 = vunpack.c.h.b16 %v2148
    %v2603 = vunpack.c.l.b16 %v2149
    %v2604 = vunpack.c.h.b16 %v2149
    %v2605 = vunpack.c.l.b16 %v2150
    %v2606 = vunpack.c.h.b16 %v2150
    %v2607 = vunpack.c.l.b16 %v2151
    %v2608 = vunpack.c.h.b16 %v2151
    %v2609 = vunpack.c.l.b16 %v2152
    %v2610 = vunpack.c.h.b16 %v2152
    %v2611 = vunpack.c.l.b16 %v2153
    %v2612 = vunpack.c.h.b16 %v2153
    %v2613 = vunpack.c.l.b16 %v2154
    %v2614 = vunpack.c.h.b16 %v2154
    %v2615 = vunpack.c.l.b16 %v2155
    %v2616 = vunpack.c.h.b16 %v2155
    %v2617 = vunpack.c.l.b16 %v2156
    %v2618 = vunpack.c.h.b16 %v2156
    %v2619 = vunpack.c.l.b16 %v2157
    %v2620 = vunpack.c.h.b16 %v2157
    %v2621 = vunpack.c.l.b16 %v2158
    %v2622 = vunpack.c.h.b16 %v2158
    %v2623 = vunpack.c.l.b16 %v2159
    %v2624 = vunpack.c.h.b16 %v2159
    %v2625 = vunpack.c.l.b16 %v2160
    %v2626 = vunpack.c.h.b16 %v2160
    %v2627 = vunpack.c.l.b16 %v2161
    %v2628 = vunpack.c.h.b16 %v2161
    %v2629 = vunpack.c.l.b16 %v2162
    %v2630 = vunpack.c.h.b16 %v2162
    %v2631 = vunpack.c.l.b16 %v2163
    %v2632 = vunpack.c.h.b16 %v2163
    %v2633 = vunpack.c.l.b16 %v2164
    %v2634 = vunpack.c.h.b16 %v2164
    %v2635 = vunpack.c.l.b16 %v2165
    %v2636 = vunpack.c.h.b16 %v2165
    %v2637 = vunpack.c.l.b16 %v2166
    %v2638 = vunpack.c.h.b16 %v2166
    %v2639 = vunpack.c.l.b16 %v2167
    %v2640 = vunpack.c.h.b16 %v2167
    %v2641 = vunpack.c.l.b16 %v2168
    %v2642 = vunpack.c.h.b16 %v2168
    %v2643 = vunpack.c.l.b16 %v2169
    %v2644 = vunpack.c.h.b16 %v2169
    %v2645 = vunpack.c.l.b16 %v2170
    %v2646 = vunpack.c.h.b16 %v2170
    %v2647 = vunpack.c.l.b16 %v2171
    %v2648 = vunpack.c.h.b16 %v2171
    %v2649 = vunpack.c.l.b16 %v2172
    %v2650 = vunpack.c.h.b16 %v2172
    %v2651 = vunpack.c.l.b16 %v2173
    %v2652 = vunpack.c.h.b16 %v2173
    %v2653 = vunpack.c.l.b16 %v2174
    %v2654 = vunpack.c.h.b16 %v2174
    %v2655 = vunpack.c.l.b16 %v2175
    %v2656 = vunpack.c.h.b16 %v2175
    %v2657 = vunpack.c.l.b16 %v2176
    %v2658 = vunpack.c.h.b16 %v2176
    %v2659 = vunpack.c.l.b16 %v2177
    %v2660 = vunpack.c.h.b16 %v2177
    %v2661 = vunpack.c.l.b16 %v2178
    %v2662 = vunpack.c.h.b16 %v2178
    %v2663 = vunpack.c.l.b16 %v2179
    %v2664 = vunpack.c.h.b16 %v2179
    %v2665 = vunpack.c.l.b16 %v2180
    %v2666 = vunpack.c.h.b16 %v2180
    %v2667 = vunpack.c.l.b16 %v2181
    %v2668 = vunpack.c.h.b16 %v2181
    %v2669 = vunpack.c.l.b16 %v2182
    %v2670 = vunpack.c.h.b16 %v2182
    %v2671 = vunpack.c.l.b16 %v2183
    %v2672 = vunpack.c.h.b16 %v2183
    %v2673 = vunpack.c.l.b16 %v2184
    %v2674 = vunpack.c.h.b16 %v2184
    %v2675 = vunpack.c.l.b16 %v2185
    %v2676 = vunpack.c.h.b16 %v2185
    %v2677 = vunpack.c.l.b16 %v2186
    %v2678 = vunpack.c.h.b16 %v2186
    %v2679 = vunpack.c.l.b16 %v2187
    %v2680 = vunpack.c.h.b16 %v2187
    %v2681 = vunpack.c.l.b16 %v2188
    %v2682 = vunpack.c.h.b16 %v2188
    %v2683 = vunpack.c.l.b16 %v2189
    %v2684 = vunpack.c.h.b16 %v2189
    %v2685 = vunpack.c.l.b16 %v2190
    %v2686 = vunpack.c.h.b16 %v2190
    %v2687 = vunpack.c.l.b16 %v2191
    %v2688 = vunpack.c.h.b16 %v2191
    %v2689 = vunpack.c.l.b16 %v2192
    %v2690 = vunpack.c.h.b16 %v2192
    %v2691 = vunpack.c.l.b16 %v2193
    %v2692 = vunpack.c.h.b16 %v2193
    %v2693 = vunpack.c.l.b16 %v2194
    %v2694 = vunpack.c.h.b16 %v2194
    %v2695 = vunpack.c.l.b16 %v2195
    %v2696 = vunpack.c.h.b16 %v2195
    %v2697 = vunpack.c.l.b16 %v2196
    %v2698 = vunpack.c.h.b16 %v2196
    %v2699 = vpack.c.b16 %v2383, %v2379
    %v2700 = vpack.c.b16 %v2384, %v2380
    %v2701 = vpack.c.b16 %v2385, %v2381
    %v2702 = vpack.c.b16 %v2386, %v2382
    %v2703 = vpack.c.b16 %v2391, %v2387
    %v2704 = vpack.c.b16 %v2392, %v2388
    %v2705 = vpack.c.b16 %v2393, %v2389
    %v2706 = vpack.c.b16 %v2394, %v2390
    %v2707 = vpack.c.b16 %v2399, %v2395
    %v2708 = vpack.c.b16 %v2400, %v2396
    %v2709 = vpack.c.b16 %v2401, %v2397
    %v2710 = vpack.c.b16 %v2402, %v2398
    %v2711 = vpack.c.b16 %v2407, %v2403
    %v2712 = vpack.c.b16 %v2408, %v2404
    %v2713 = vpack.c.b16 %v2409, %v2405
    %v2714 = vpack.c.b16 %v2410, %v2406
    %v2715 = vpack.c.b16 %v2415, %v2411
    %v2716 = vpack.c.b16 %v2416, %v2412
    %v2717 = vpack.c.b16 %v2417, %v2413
    %v2718 = vpack.c.b16 %v2418, %v2414
    %v2719 = vpack.c.b16 %v2423, %v2419
    %v2720 = vpack.c.b16 %v2424, %v2420
    %v2721 = vpack.c.b16 %v2425, %v2421
    %v2722 = vpack.c.b16 %v2426, %v2422
    %v2723 = vpack.c.b16 %v2431, %v2427
    %v2724 = vpack.c.b16 %v2432, %v2428
    %v2725 = vpack.c.b16 %v2433, %v2429
    %v2726 = vpack.c.b16 %v2434, %v2430
    %v2727 = vpack.c.b16 %v2439, %v2435
    %v2728 = vpack.c.b16 %v2440, %v2436
    %v2729 = vpack.c.b16 %v2441, %v2437
    %v2730 = vpack.c.b16 %v2442, %v2438
    %v2731 = vpack.c.b16 %v2447, %v2443
    %v2732 = vpack.c.b16 %v2448, %v2444
    %v2733 = vpack.c.b16 %v2449, %v2445
    %v2734 = vpack.c.b16 %v2450, %v2446
    %v2735 = vpack.c.b16 %v2455, %v2451
    %v2736 = vpack.c.b16 %v2456, %v2452
    %v2737 = vpack.c.b16 %v2457, %v2453
    %v2738 = vpack.c.b16 %v2458, %v2454
    %v2739 = vpack.c.b16 %v2463, %v2459
    %v2740 = vpack.c.b16 %v2464, %v2460
    %v2741 = vpack.c.b16 %v2465, %v2461
    %v2742 = vpack.c.b16 %v2466, %v2462
    %v2743 = vpack.c.b16 %v2471, %v2467
    %v2744 = vpack.c.b16 %v2472, %v2468
    %v2745 = vpack.c.b16 %v2473, %v2469
    %v2746 = vpack.c.b16 %v2474, %v2470
    %v2747 = vpack.c.b16 %v2479, %v2475
    %v2748 = vpack.c.b16 %v2480, %v2476
    %v2749 = vpack.c.b16 %v2481, %v2477
    %v2750 = vpack.c.b16 %v2482, %v2478
    %v2751 = vpack.c.b16 %v2487, %v2483
    %v2752 = vpack.c.b16 %v2488, %v2484
    %v2753 = vpack.c.b16 %v2489, %v2485
    %v2754 = vpack.c.b16 %v2490, %v2486
    %v2755 = vpack.c.b16 %v2495, %v2491
    %v2756 = vpack.c.b16 %v2496, %v2492
    %v2757 = vpack.c.b16 %v2497, %v2493
    %v2758 = vpack.c.b16 %v2498, %v2494
    %v2759 = vpack.c.b16 %v2503, %v2499
    %v2760 = vpack.c.b16 %v2504, %v2500
    %v2761 = vpack.c.b16 %v2505, %v2501
    %v2762 = vpack.c.b16 %v2506, %v2502
    %v2763 = vpack.c.b16 %v2511, %v2507
    %v2764 = vpack.c.b16 %v2512, %v2508
    %v2765 = vpack.c.b16 %v2513, %v2509
    %v2766 = vpack.c.b16 %v2514, %v2510
    %v2767 = vpack.c.b16 %v2519, %v2515
    %v2768 = vpack.c.b16 %v2520, %v2516
    %v2769 = vpack.c.b16 %v2521, %v2517
    %v2770 = vpack.c.b16 %v2522, %v2518
    %v2771 = vpack.c.b16 %v2527, %v2523
    %v2772 = vpack.c.b16 %v2528, %v2524
    %v2773 = vpack.c.b16 %v2529, %v2525
    %v2774 = vpack.c.b16 %v2530, %v2526
    %v2775 = vpack.c.b16 %v2535, %v2531
    %v2776 = vpack.c.b16 %v2536, %v2532
    %v2777 = vpack.c.b16 %v2537, %v2533
    %v2778 = vpack.c.b16 %v2538, %v2534
    %v2779 = vpack.c.b16 %v2543, %v2539
    %v2780 = vpack.c.b16 %v2544, %v2540
    %v2781 = vpack.c.b16 %v2545, %v2541
    %v2782 = vpack.c.b16 %v2546, %v2542
    %v2783 = vpack.c.b16 %v2551, %v2547
    %v2784 = vpack.c.b16 %v2552, %v2548
    %v2785 = vpack.c.b16 %v2553, %v2549
    %v2786 = vpack.c.b16 %v2554, %v2550
    %v2787 = vpack.c.b16 %v2559, %v2555
    %v2788 = vpack.c.b16 %v2560, %v2556
    %v2789 = vpack.c.b16 %v2561, %v2557
    %v2790 = vpack.c.b16 %v2562, %v2558
    %v2791 = vpack.c.b16 %v2567, %v2563
    %v2792 = vpack.c.b16 %v2568, %v2564
    %v2793 = vpack.c.b16 %v2569, %v2565
    %v2794 = vpack.c.b16 %v2570, %v2566
    %v2795 = vpack.c.b16 %v2575, %v2571
    %v2796 = vpack.c.b16 %v2576, %v2572
    %v2797 = vpack.c.b16 %v2577, %v2573
    %v2798 = vpack.c.b16 %v2578, %v2574
    %v2799 = vpack.c.b16 %v2583, %v2579
    %v2800 = vpack.c.b16 %v2584, %v2580
    %v2801 = vpack.c.b16 %v2585, %v2581
    %v2802 = vpack.c.b16 %v2586, %v2582
    %v2803 = vpack.c.b16 %v2591, %v2587
    %v2804 = vpack.c.b16 %v2592, %v2588
    %v2805 = vpack.c.b16 %v2593, %v2589
    %v2806 = vpack.c.b16 %v2594, %v2590
    %v2807 = vpack.c.b16 %v2599, %v2595
    %v2808 = vpack.c.b16 %v2600, %v2596
    %v2809 = vpack.c.b16 %v2601, %v2597
    %v2810 = vpack.c.b16 %v2602, %v2598
    %v2811 = vpack.c.b16 %v2607, %v2603
    %v2812 = vpack.c.b16 %v2608, %v2604
    %v2813 = vpack.c.b16 %v2609, %v2605
    %v2814 = vpack.c.b16 %v2610, %v2606
    %v2815 = vpack.c.b16 %v2615, %v2611
    %v2816 = vpack.c.b16 %v2616, %v2612
    %v2817 = vpack.c.b16 %v2617, %v2613
    %v2818 = vpack.c.b16 %v2618, %v2614
    %v2819 = vpack.c.b16 %v2623, %v2619
    %v2820 = vpack.c.b16 %v2624, %v2620
    %v2821 = vpack.c.b16 %v2625, %v2621
    %v2822 = vpack.c.b16 %v2626, %v2622
    %v2823 = vpack.c.b16 %v2631, %v2627
    %v2824 = vpack.c.b16 %v2632, %v2628
    %v2825 = vpack.c.b16 %v2633, %v2629
    %v2826 = vpack.c.b16 %v2634, %v2630
    %v2827 = vpack.c.b16 %v2639, %v2635
    %v2828 = vpack.c.b16 %v2640, %v2636
    %v2829 = vpack.c.b16 %v2641, %v2637
    %v2830 = vpack.c.b16 %v2642, %v2638
    %v2831 = vpack.c.b16 %v2647, %v2643
    %v2832 = vpack.c.b16 %v2648, %v2644
    %v2833 = vpack.c.b16 %v2649, %v2645
    %v2834 = vpack.c.b16 %v2650, %v2646
    %v2835 = vpack.c.b16 %v2655, %v2651
    %v2836 = vpack.c.b16 %v2656, %v2652
    %v2837 = vpack.c.b16 %v2657, %v2653
    %v2838 = vpack.c.b16 %v2658, %v2654
    %v2839 = vpack.c.b16 %v2663, %v2659
    %v2840 = vpack.c.b16 %v2664, %v2660
    %v2841 = vpack.c.b16 %v2665, %v2661
    %v2842 = vpack.c.b16 %v2666, %v2662
    %v2843 = vpack.c.b16 %v2671, %v2667
    %v2844 = vpack.c.b16 %v2672, %v2668
    %v2845 = vpack.c.b16 %v2673, %v2669
    %v2846 = vpack.c.b16 %v2674, %v2670
    %v2847 = vpack.c.b16 %v2679, %v2675
    %v2848 = vpack.c.b16 %v2680, %v2676
    %v2849 = vpack.c.b16 %v2681, %v2677
    %v2850 = vpack.c.b16 %v2682, %v2678
    %v2851 = vpack.c.b16 %v2687, %v2683
    %v2852 = vpack.c.b16 %v2688, %v2684
    %v2853 = vpack.c.b16 %v2689, %v2685
    %v2854 = vpack.c.b16 %v2690, %v2686
    %v2855 = vpack.c.b16 %v2695, %v2691
    %v2856 = vpack.c.b16 %v2696, %v2692
    %v2857 = vpack.c.b16 %v2697, %v2693
    %v2858 = vpack.c.b16 %v2698, %v2694
    %3019 = vmatprep.subr.bf16.mxu0 %v2728
    %3020 = vmatpush1.bf16.msra.mxu0 %v2727
    %3021 = vmatprep.subr.bf16.mxu0 %v2724
    %3022 = vmatpush1.bf16.msra.mxu0 %v2723
    %3023 = vmatprep.subr.bf16.mxu0 %v2720
    %3024 = vmatpush1.bf16.msra.mxu0 %v2719
    %3025 = vmatprep.subr.bf16.mxu0 %v2716
    %3026 = vmatpush1.bf16.msra.mxu0 %v2715
    %3027 = vmatprep.subr.bf16.mxu0 %v2712
    %3028 = vmatpush1.bf16.msra.mxu0 %v2711
    %3029 = vmatprep.subr.bf16.mxu0 %v2708
    %3030 = vmatpush1.bf16.msra.mxu0 %v2707
    %3031 = vmatprep.subr.bf16.mxu0 %v2704
    %3032 = vmatpush1.bf16.msra.mxu0 %v2703
    %3033 = vmatprep.subr.bf16.mxu0 %v2700
    %3034 = vmatpush1.bf16.msra.mxu0 %v2699
    %3035 = vmatprep.subr.bf16.mxu0 %v2760
    %3036 = vmatpush2.bf16.msra.mxu0 %v2759
    %3037 = vmatprep.subr.bf16.mxu0 %v2756
    %3038 = vmatpush2.bf16.msra.mxu0 %v2755
    %3039 = vmatprep.subr.bf16.mxu0 %v2752
    %3040 = vmatpush2.bf16.msra.mxu0 %v2751
    %3041 = vmatprep.subr.bf16.mxu0 %v2748
    %3042 = vmatpush2.bf16.msra.mxu0 %v2747
    %3043 = vmatprep.subr.bf16.mxu0 %v2744
    %3044 = vmatpush2.bf16.msra.mxu0 %v2743
    %3045 = vmatprep.subr.bf16.mxu0 %v2740
    %3046 = vmatpush2.bf16.msra.mxu0 %v2739
    %3047 = vmatprep.subr.bf16.mxu0 %v2736
    %3048 = vmatpush2.bf16.msra.mxu0 %v2735
    %3049 = vmatprep.subr.bf16.mxu0 %v2732
    %3050 = vmatpush2.bf16.msra.mxu0 %v2731
    %3051 = vmatprep.mubr.bf16.mxu0 %v2033
    %3052 = vmatmul.mubr.bf16.gmra.mxu0 %v2032
    %v3053 = vpop.f32.mrf.mxu0
    %v3054 = vadd.f32 %v2202, %v3053
    %v3055 = vpop.f32.mrf.mxu0
    %v3056 = vadd.f32 %v2206, %v3055
    %v3057 = vpop.f32.mrf.mxu0
    %v3058 = vpop.f32.mrf.mxu0
    %3059 = vdwg.mxu0
    %3060 = vmatprep.subr.bf16.mxu0 %v2792
    %3061 = vmatpush1.bf16.msra.mxu0 %v2791
    %3062 = vmatprep.subr.bf16.mxu0 %v2788
    %3063 = vmatpush1.bf16.msra.mxu0 %v2787
    %3064 = vmatprep.subr.bf16.mxu0 %v2784
    %3065 = vmatpush1.bf16.msra.mxu0 %v2783
    %3066 = vmatprep.subr.bf16.mxu0 %v2780
    %3067 = vmatpush1.bf16.msra.mxu0 %v2779
    %3068 = vmatprep.subr.bf16.mxu0 %v2776
    %3069 = vmatpush1.bf16.msra.mxu0 %v2775
    %3070 = vmatprep.subr.bf16.mxu0 %v2772
    %3071 = vmatpush1.bf16.msra.mxu0 %v2771
    %3072 = vmatprep.subr.bf16.mxu0 %v2768
    %3073 = vmatpush1.bf16.msra.mxu0 %v2767
    %3074 = vmatprep.subr.bf16.mxu0 %v2764
    %3075 = vmatpush1.bf16.msra.mxu0 %v2763
    %3076 = vmatprep.subr.bf16.mxu0 %v2824
    %3077 = vmatpush2.bf16.msra.mxu0 %v2823
    %3078 = vmatprep.subr.bf16.mxu0 %v2820
    %3079 = vmatpush2.bf16.msra.mxu0 %v2819
    %3080 = vmatprep.subr.bf16.mxu0 %v2816
    %3081 = vmatpush2.bf16.msra.mxu0 %v2815
    %3082 = vmatprep.subr.bf16.mxu0 %v2812
    %3083 = vmatpush2.bf16.msra.mxu0 %v2811
    %3084 = vmatprep.subr.bf16.mxu0 %v2808
    %3085 = vmatpush2.bf16.msra.mxu0 %v2807
    %3086 = vmatprep.subr.bf16.mxu0 %v2804
    %3087 = vmatpush2.bf16.msra.mxu0 %v2803
    %3088 = vmatprep.subr.bf16.mxu0 %v2800
    %3089 = vmatpush2.bf16.msra.mxu0 %v2799
    %3090 = vmatprep.subr.bf16.mxu0 %v2796
    %3091 = vmatpush2.bf16.msra.mxu0 %v2795
    %3092 = vmatprep.mubr.bf16.mxu0 %v2035
    %3093 = vmatmul.mubr.bf16.gmra.mxu0 %v2034
    %v3094 = vpop.f32.mrf.mxu0
    %v3095 = vadd.f32 %v3054, %v3094
    %v3096 = vpop.f32.mrf.mxu0
    %v3097 = vadd.f32 %v3056, %v3096
    %v3098 = vpop.f32.mrf.mxu0
    %v3099 = vpop.f32.mrf.mxu0
    %3100 = vdwg.mxu0
    %3101 = vmatprep.subr.bf16.mxu0 %v2856
    %3102 = vmatpush1.bf16.msra.mxu0 %v2855
    %3103 = vmatprep.subr.bf16.mxu0 %v2852
    %3104 = vmatpush1.bf16.msra.mxu0 %v2851
    %3105 = vmatprep.subr.bf16.mxu0 %v2848
    %3106 = vmatpush1.bf16.msra.mxu0 %v2847
    %3107 = vmatprep.subr.bf16.mxu0 %v2844
    %3108 = vmatpush1.bf16.msra.mxu0 %v2843
    %3109 = vmatprep.subr.bf16.mxu0 %v2840
    %3110 = vmatpush1.bf16.msra.mxu0 %v2839
    %3111 = vmatprep.subr.bf16.mxu0 %v2836
    %3112 = vmatpush1.bf16.msra.mxu0 %v2835
    %3113 = vmatprep.subr.bf16.mxu0 %v2832
    %3114 = vmatpush1.bf16.msra.mxu0 %v2831
    %3115 = vmatprep.subr.bf16.mxu0 %v2828
    %3116 = vmatpush1.bf16.msra.mxu0 %v2827
    %3117 = vmatprep.subr.bf16.mxu0 0
    %3118 = vmatpush2.bf16.msra.mxu0 0
    %3119 = vmatprep.subr.bf16.mxu0 0
    %3120 = vmatpush2.bf16.msra.mxu0 0
    %3121 = vmatprep.subr.bf16.mxu0 0
    %3122 = vmatpush2.bf16.msra.mxu0 0
    %3123 = vmatprep.subr.bf16.mxu0 0
    %3124 = vmatpush2.bf16.msra.mxu0 0
    %3125 = vmatprep.subr.bf16.mxu0 0
    %3126 = vmatpush2.bf16.msra.mxu0 0
    %3127 = vmatprep.subr.bf16.mxu0 0
    %3128 = vmatpush2.bf16.msra.mxu0 0
    %3129 = vmatprep.subr.bf16.mxu0 0
    %3130 = vmatpush2.bf16.msra.mxu0 0
    %3131 = vmatprep.subr.bf16.mxu0 0
    %3132 = vmatpush2.bf16.msra.mxu0 0
    %3133 = vmatprep.mubr.bf16.mxu0 0
    %3134 = vmatmul.mubr.bf16.gmra.mxu0 %v2036
    %v3135 = vpop.f32.mrf.mxu0
    %v3136 = vadd.f32 %v3095, %v3135
    %v3137 = vpop.f32.mrf.mxu0
    %v3138 = vadd.f32 %v3097, %v3137
    %v3139 = vpop.f32.mrf.mxu0
    %v3140 = vpop.f32.mrf.mxu0
    %3141 = vdwg.mxu0
    %3142 = vmatprep.subr.bf16.mxu0 %v2730
    %3143 = vmatpush1.bf16.msra.mxu0 %v2729
    %3144 = vmatprep.subr.bf16.mxu0 %v2726
    %3145 = vmatpush1.bf16.msra.mxu0 %v2725
    %3146 = vmatprep.subr.bf16.mxu0 %v2722
    %3147 = vmatpush1.bf16.msra.mxu0 %v2721
    %3148 = vmatprep.subr.bf16.mxu0 %v2718
    %3149 = vmatpush1.bf16.msra.mxu0 %v2717
    %3150 = vmatprep.subr.bf16.mxu0 %v2714
    %3151 = vmatpush1.bf16.msra.mxu0 %v2713
    %3152 = vmatprep.subr.bf16.mxu0 %v2710
    %3153 = vmatpush1.bf16.msra.mxu0 %v2709
    %3154 = vmatprep.subr.bf16.mxu0 %v2706
    %3155 = vmatpush1.bf16.msra.mxu0 %v2705
    %3156 = vmatprep.subr.bf16.mxu0 %v2702
    %3157 = vmatpush1.bf16.msra.mxu0 %v2701
    %3158 = vmatprep.subr.bf16.mxu0 %v2762
    %3159 = vmatpush2.bf16.msra.mxu0 %v2761
    %3160 = vmatprep.subr.bf16.mxu0 %v2758
    %3161 = vmatpush2.bf16.msra.mxu0 %v2757
    %3162 = vmatprep.subr.bf16.mxu0 %v2754
    %3163 = vmatpush2.bf16.msra.mxu0 %v2753
    %3164 = vmatprep.subr.bf16.mxu0 %v2750
    %3165 = vmatpush2.bf16.msra.mxu0 %v2749
    %3166 = vmatprep.subr.bf16.mxu0 %v2746
    %3167 = vmatpush2.bf16.msra.mxu0 %v2745
    %3168 = vmatprep.subr.bf16.mxu0 %v2742
    %3169 = vmatpush2.bf16.msra.mxu0 %v2741
    %3170 = vmatprep.subr.bf16.mxu0 %v2738
    %3171 = vmatpush2.bf16.msra.mxu0 %v2737
    %3172 = vmatprep.subr.bf16.mxu0 %v2734
    %3173 = vmatpush2.bf16.msra.mxu0 %v2733
    %3174 = vmatprep.mubr.bf16.mxu0 %v2033
    %3175 = vmatmul.mubr.bf16.gmra.mxu0 %v2032
    %v3176 = vpop.f32.mrf.mxu0
    %v3177 = vadd.f32 %v2210, %v3176
    %v3178 = vpop.f32.mrf.mxu0
    %v3179 = vadd.f32 %v2214, %v3178
    %v3180 = vpop.f32.mrf.mxu0
    %v3181 = vpop.f32.mrf.mxu0
    %3182 = vdwg.mxu0
    %3183 = vmatprep.subr.bf16.mxu0 %v2794
    %3184 = vmatpush1.bf16.msra.mxu0 %v2793
    %3185 = vmatprep.subr.bf16.mxu0 %v2790
    %3186 = vmatpush1.bf16.msra.mxu0 %v2789
    %3187 = vmatprep.subr.bf16.mxu0 %v2786
    %3188 = vmatpush1.bf16.msra.mxu0 %v2785
    %3189 = vmatprep.subr.bf16.mxu0 %v2782
    %3190 = vmatpush1.bf16.msra.mxu0 %v2781
    %3191 = vmatprep.subr.bf16.mxu0 %v2778
    %3192 = vmatpush1.bf16.msra.mxu0 %v2777
    %3193 = vmatprep.subr.bf16.mxu0 %v2774
    %3194 = vmatpush1.bf16.msra.mxu0 %v2773
    %3195 = vmatprep.subr.bf16.mxu0 %v2770
    %3196 = vmatpush1.bf16.msra.mxu0 %v2769
    %3197 = vmatprep.subr.bf16.mxu0 %v2766
    %3198 = vmatpush1.bf16.msra.mxu0 %v2765
    %3199 = vmatprep.subr.bf16.mxu0 %v2826
    %3200 = vmatpush2.bf16.msra.mxu0 %v2825
    %3201 = vmatprep.subr.bf16.mxu0 %v2822
    %3202 = vmatpush2.bf16.msra.mxu0 %v2821
    %3203 = vmatprep.subr.bf16.mxu0 %v2818
    %3204 = vmatpush2.bf16.msra.mxu0 %v2817
    %3205 = vmatprep.subr.bf16.mxu0 %v2814
    %3206 = vmatpush2.bf16.msra.mxu0 %v2813
    %3207 = vmatprep.subr.bf16.mxu0 %v2810
    %3208 = vmatpush2.bf16.msra.mxu0 %v2809
    %3209 = vmatprep.subr.bf16.mxu0 %v2806
    %3210 = vmatpush2.bf16.msra.mxu0 %v2805
    %3211 = vmatprep.subr.bf16.mxu0 %v2802
    %3212 = vmatpush2.bf16.msra.mxu0 %v2801
    %3213 = vmatprep.subr.bf16.mxu0 %v2798
    %3214 = vmatpush2.bf16.msra.mxu0 %v2797
    %3215 = vmatprep.mubr.bf16.mxu0 %v2035
    %3216 = vmatmul.mubr.bf16.gmra.mxu0 %v2034
    %v3217 = vpop.f32.mrf.mxu0
    %v3218 = vadd.f32 %v3177, %v3217
    %v3219 = vpop.f32.mrf.mxu0
    %v3220 = vadd.f32 %v3179, %v3219
    %v3221 = vpop.f32.mrf.mxu0
    %v3222 = vpop.f32.mrf.mxu0
    %3223 = vdwg.mxu0
    %3224 = vmatprep.subr.bf16.mxu0 %v2858
    %3225 = vmatpush1.bf16.msra.mxu0 %v2857
    %3226 = vmatprep.subr.bf16.mxu0 %v2854
    %3227 = vmatpush1.bf16.msra.mxu0 %v2853
    %3228 = vmatprep.subr.bf16.mxu0 %v2850
    %3229 = vmatpush1.bf16.msra.mxu0 %v2849
    %3230 = vmatprep.subr.bf16.mxu0 %v2846
    %3231 = vmatpush1.bf16.msra.mxu0 %v2845
    %3232 = vmatprep.subr.bf16.mxu0 %v2842
    %3233 = vmatpush1.bf16.msra.mxu0 %v2841
    %3234 = vmatprep.subr.bf16.mxu0 %v2838
    %3235 = vmatpush1.bf16.msra.mxu0 %v2837
    %3236 = vmatprep.subr.bf16.mxu0 %v2834
    %3237 = vmatpush1.bf16.msra.mxu0 %v2833
    %3238 = vmatprep.subr.bf16.mxu0 %v2830
    %3239 = vmatpush1.bf16.msra.mxu0 %v2829
    %3240 = vmatprep.subr.bf16.mxu0 0
    %3241 = vmatpush2.bf16.msra.mxu0 0
    %3242 = vmatprep.subr.bf16.mxu0 0
    %3243 = vmatpush2.bf16.msra.mxu0 0
    %3244 = vmatprep.subr.bf16.mxu0 0
    %3245 = vmatpush2.bf16.msra.mxu0 0
    %3246 = vmatprep.subr.bf16.mxu0 0
    %3247 = vmatpush2.bf16.msra.mxu0 0
    %3248 = vmatprep.subr.bf16.mxu0 0
    %3249 = vmatpush2.bf16.msra.mxu0 0
    %3250 = vmatprep.subr.bf16.mxu0 0
    %3251 = vmatpush2.bf16.msra.mxu0 0
    %3252 = vmatprep.subr.bf16.mxu0 0
    %3253 = vmatpush2.bf16.msra.mxu0 0
    %3254 = vmatprep.subr.bf16.mxu0 0
    %3255 = vmatpush2.bf16.msra.mxu0 0
    %3256 = vmatprep.mubr.bf16.mxu0 0
    %3257 = vmatmul.mubr.bf16.gmra.mxu0 %v2036
    %v3258 = vpop.f32.mrf.mxu0
    %v3259 = vadd.f32 %v3218, %v3258
    %v3260 = vpop.f32.mrf.mxu0
    %v3261 = vadd.f32 %v3220, %v3260
    %v3262 = vpop.f32.mrf.mxu0
    %v3263 = vpop.f32.mrf.mxu0
    %3264 = vdwg.mxu0
    %v3265 = vmax.f32 %v3136, 0.0
    %v3266 = vmax.f32 %v3138, 0.0
    %v3267 = vmax.f32 %v3259, 0.0
    %v3268 = vmax.f32 %v3261, 0.0
    %v3269 = vpack.c.bf16 %v3265, %v3265
    %v3270 = vpack.c.bf16 %v3266, %v3266
    %v3271 = vpack.c.bf16 %v3267, %v3267
    %v3272 = vpack.c.bf16 %v3268, %v3268
    %v3273 = vld [vmem:[#allocation6] sm:$0xf]
    %v3274 = vld [vmem:[#allocation6 + $0x4] sm:$0xf]
    %v3275 = vld [vmem:[#allocation6 + $0x8] sm:$0xf]
    %v3276 = vld [vmem:[#allocation6 + $0xc] sm:$0xf]
    %v3277 = vld [vmem:[#allocation6 + $0x10] sm:$0xf]
    %v3278 = vld [vmem:[#allocation6 + $0x14] sm:$0xf]
    %v3279 = vld [vmem:[#allocation6 + $0x18] sm:$0xf]
    %v3280 = vld [vmem:[#allocation6 + $0x1c] sm:$0xf]
    %v3281 = vld [vmem:[#allocation6 + $0x20] sm:$0xf]
    %v3282 = vld [vmem:[#allocation6 + $0x24] sm:$0xf]
    %v3283 = vld [vmem:[#allocation6 + $0x28] sm:$0xf]
    %v3284 = vld [vmem:[#allocation6 + $0x2c] sm:$0xf]
    %v3285 = vld [vmem:[#allocation6 + $0x30] sm:$0xf]
    %v3286 = vld [vmem:[#allocation6 + $0x34] sm:$0xf]
    %v3287 = vld [vmem:[#allocation6 + $0x38] sm:$0xf]
    %v3288 = vld [vmem:[#allocation6 + $0x3c] sm:$0xf]
    %v3289 = vld [vmem:[#allocation6 + $0x40] sm:$0xf]
    %v3290 = vld [vmem:[#allocation6 + $0x44] sm:$0xf]
    %v3291 = vld [vmem:[#allocation6 + $0x48] sm:$0xf]
    %v3292 = vld [vmem:[#allocation6 + $0x4c] sm:$0xf]
    %v3293 = vld [vmem:[#allocation6 + $0x50] sm:$0xf]
    %v3294 = vld [vmem:[#allocation6 + $0x54] sm:$0xf]
    %v3295 = vld [vmem:[#allocation6 + $0x58] sm:$0xf]
    %v3296 = vld [vmem:[#allocation6 + $0x5c] sm:$0xf]
    %v3297 = vld [vmem:[#allocation6 + $0x60] sm:$0xf]
    %v3298 = vld [vmem:[#allocation6 + $0x64] sm:$0xf]
    %v3299 = vld [vmem:[#allocation6 + $0x68] sm:$0xf]
    %v3300 = vld [vmem:[#allocation6 + $0x6c] sm:$0xf]
    %v3301 = vld [vmem:[#allocation6 + $0x70] sm:$0xf]
    %v3302 = vld [vmem:[#allocation6 + $0x74] sm:$0xf]
    %v3303 = vld [vmem:[#allocation6 + $0x78] sm:$0xf]
    %v3304 = vld [vmem:[#allocation6 + $0x7c] sm:$0xf]
    %v3305 = vld [vmem:[#allocation6 + $0x80] sm:$0xf]
    %v3306 = vld [vmem:[#allocation6 + $0x84] sm:$0xf]
    %v3307 = vld [vmem:[#allocation6 + $0x88] sm:$0xf]
    %v3308 = vld [vmem:[#allocation6 + $0x8c] sm:$0xf]
    %v3309 = vld [vmem:[#allocation6 + $0x90] sm:$0xf]
    %v3310 = vld [vmem:[#allocation6 + $0x94] sm:$0xf]
    %v3311 = vld [vmem:[#allocation6 + $0x98] sm:$0xf]
    %v3312 = vld [vmem:[#allocation6 + $0x9c] sm:$0xf]
    %v3313 = vld [vmem:[#allocation6 + $0xa0] sm:$0xf]
    %v3314 = vld [vmem:[#allocation6 + $0xa4] sm:$0xf]
    %v3315 = vld [vmem:[#allocation6 + $0xa8] sm:$0xf]
    %v3316 = vld [vmem:[#allocation6 + $0xac] sm:$0xf]
    %v3317 = vld [vmem:[#allocation6 + $0xb0] sm:$0xf]
    %v3318 = vld [vmem:[#allocation6 + $0xb4] sm:$0xf]
    %v3319 = vld [vmem:[#allocation6 + $0xb8] sm:$0xf]
    %v3320 = vld [vmem:[#allocation6 + $0xbc] sm:$0xf]
    %v3321 = vld [vmem:[#allocation6 + $0xc0] sm:$0xf]
    %v3322 = vld [vmem:[#allocation6 + $0xc4] sm:$0xf]
    %v3323 = vld [vmem:[#allocation6 + $0xc8] sm:$0xf]
    %v3324 = vld [vmem:[#allocation6 + $0xcc] sm:$0xf]
    %v3325 = vld [vmem:[#allocation6 + $0xd0] sm:$0xf]
    %v3326 = vld [vmem:[#allocation6 + $0xd4] sm:$0xf]
    %v3327 = vld [vmem:[#allocation6 + $0xd8] sm:$0xf]
    %v3328 = vld [vmem:[#allocation6 + $0xdc] sm:$0xf]
    %v3329 = vld [vmem:[#allocation6 + $0xe0] sm:$0xf]
    %v3330 = vld [vmem:[#allocation6 + $0xe4] sm:$0xf]
    %v3331 = vld [vmem:[#allocation6 + $0xe8] sm:$0xf]
    %v3332 = vld [vmem:[#allocation6 + $0xec] sm:$0xf]
    %v3333 = vld [vmem:[#allocation6 + $0xf0] sm:$0xf]
    %v3334 = vld [vmem:[#allocation6 + $0xf4] sm:$0xf]
    %v3335 = vld [vmem:[#allocation6 + $0xf8] sm:$0xf]
    %v3336 = vld [vmem:[#allocation6 + $0xfc] sm:$0xf]
    %v3337 = vld [vmem:[%s6] sm:$0x1]
    %v3339 = vlaneseq
    %v3340 = vshrl.u32 %v3339, 7
    %v3341 = vsub.s32 0, %v3340
    %v3342 = vrot.slane %v3337, %v3341
    %v3408 = vunpack.c.l.b16 %v3273
    %v3409 = vunpack.c.l.b16 %v3274
    %v3410 = vunpack.c.l.b16 %v3275
    %v3411 = vunpack.c.l.b16 %v3276
    %v3412 = vunpack.c.l.b16 %v3277
    %v3413 = vunpack.c.l.b16 %v3278
    %v3414 = vunpack.c.l.b16 %v3279
    %v3415 = vunpack.c.l.b16 %v3280
    %v3416 = vunpack.c.l.b16 %v3281
    %v3417 = vunpack.c.l.b16 %v3282
    %v3418 = vunpack.c.l.b16 %v3283
    %v3419 = vunpack.c.l.b16 %v3284
    %v3420 = vunpack.c.l.b16 %v3285
    %v3421 = vunpack.c.l.b16 %v3286
    %v3422 = vunpack.c.l.b16 %v3287
    %v3423 = vunpack.c.l.b16 %v3288
    %v3424 = vunpack.c.l.b16 %v3289
    %v3425 = vunpack.c.l.b16 %v3290
    %v3426 = vunpack.c.l.b16 %v3291
    %v3427 = vunpack.c.l.b16 %v3292
    %v3428 = vunpack.c.l.b16 %v3293
    %v3429 = vunpack.c.l.b16 %v3294
    %v3430 = vunpack.c.l.b16 %v3295
    %v3431 = vunpack.c.l.b16 %v3296
    %v3432 = vunpack.c.l.b16 %v3297
    %v3433 = vunpack.c.l.b16 %v3298
    %v3434 = vunpack.c.l.b16 %v3299
    %v3435 = vunpack.c.l.b16 %v3300
    %v3436 = vunpack.c.l.b16 %v3301
    %v3437 = vunpack.c.l.b16 %v3302
    %v3438 = vunpack.c.l.b16 %v3303
    %v3439 = vunpack.c.l.b16 %v3304
    %v3440 = vunpack.c.l.b16 %v3305
    %v3441 = vunpack.c.l.b16 %v3306
    %v3442 = vunpack.c.l.b16 %v3307
    %v3443 = vunpack.c.l.b16 %v3308
    %v3444 = vunpack.c.l.b16 %v3309
    %v3445 = vunpack.c.l.b16 %v3310
    %v3446 = vunpack.c.l.b16 %v3311
    %v3447 = vunpack.c.l.b16 %v3312
    %v3448 = vunpack.c.l.b16 %v3313
    %v3449 = vunpack.c.l.b16 %v3314
    %v3450 = vunpack.c.l.b16 %v3315
    %v3451 = vunpack.c.l.b16 %v3316
    %v3452 = vunpack.c.l.b16 %v3317
    %v3453 = vunpack.c.l.b16 %v3318
    %v3454 = vunpack.c.l.b16 %v3319
    %v3455 = vunpack.c.l.b16 %v3320
    %v3456 = vunpack.c.l.b16 %v3321
    %v3457 = vunpack.c.l.b16 %v3322
    %v3458 = vunpack.c.l.b16 %v3323
    %v3459 = vunpack.c.l.b16 %v3324
    %v3460 = vunpack.c.l.b16 %v3325
    %v3461 = vunpack.c.l.b16 %v3326
    %v3462 = vunpack.c.l.b16 %v3327
    %v3463 = vunpack.c.l.b16 %v3328
    %v3464 = vunpack.c.l.b16 %v3329
    %v3465 = vunpack.c.l.b16 %v3330
    %v3466 = vunpack.c.l.b16 %v3331
    %v3467 = vunpack.c.l.b16 %v3332
    %v3468 = vunpack.c.l.b16 %v3333
    %v3469 = vunpack.c.l.b16 %v3334
    %v3470 = vunpack.c.l.b16 %v3335
    %v3471 = vunpack.c.l.b16 %v3336
    %v3472 = vpack.c.b16 %v3409, %v3408
    %v3473 = vpack.c.b16 %v3411, %v3410
    %v3474 = vpack.c.b16 %v3413, %v3412
    %v3475 = vpack.c.b16 %v3415, %v3414
    %v3476 = vpack.c.b16 %v3417, %v3416
    %v3477 = vpack.c.b16 %v3419, %v3418
    %v3478 = vpack.c.b16 %v3421, %v3420
    %v3479 = vpack.c.b16 %v3423, %v3422
    %v3480 = vpack.c.b16 %v3425, %v3424
    %v3481 = vpack.c.b16 %v3427, %v3426
    %v3482 = vpack.c.b16 %v3429, %v3428
    %v3483 = vpack.c.b16 %v3431, %v3430
    %v3484 = vpack.c.b16 %v3433, %v3432
    %v3485 = vpack.c.b16 %v3435, %v3434
    %v3486 = vpack.c.b16 %v3437, %v3436
    %v3487 = vpack.c.b16 %v3439, %v3438
    %v3488 = vpack.c.b16 %v3441, %v3440
    %v3489 = vpack.c.b16 %v3443, %v3442
    %v3490 = vpack.c.b16 %v3445, %v3444
    %v3491 = vpack.c.b16 %v3447, %v3446
    %v3492 = vpack.c.b16 %v3449, %v3448
    %v3493 = vpack.c.b16 %v3451, %v3450
    %v3494 = vpack.c.b16 %v3453, %v3452
    %v3495 = vpack.c.b16 %v3455, %v3454
    %v3496 = vpack.c.b16 %v3457, %v3456
    %v3497 = vpack.c.b16 %v3459, %v3458
    %v3498 = vpack.c.b16 %v3461, %v3460
    %v3499 = vpack.c.b16 %v3463, %v3462
    %v3500 = vpack.c.b16 %v3465, %v3464
    %v3501 = vpack.c.b16 %v3467, %v3466
    %v3502 = vpack.c.b16 %v3469, %v3468
    %v3503 = vpack.c.b16 %v3471, %v3470
    %3536 = vmatprep.subr.bf16.mxu0 0
    %3537 = vmatpush1.bf16.msra.mxu0 %v3479
    %3538 = vmatprep.subr.bf16.mxu0 0
    %3539 = vmatpush1.bf16.msra.mxu0 %v3478
    %3540 = vmatprep.subr.bf16.mxu0 0
    %3541 = vmatpush1.bf16.msra.mxu0 %v3477
    %3542 = vmatprep.subr.bf16.mxu0 0
    %3543 = vmatpush1.bf16.msra.mxu0 %v3476
    %3544 = vmatprep.subr.bf16.mxu0 0
    %3545 = vmatpush1.bf16.msra.mxu0 %v3475
    %3546 = vmatprep.subr.bf16.mxu0 0
    %3547 = vmatpush1.bf16.msra.mxu0 %v3474
    %3548 = vmatprep.subr.bf16.mxu0 0
    %3549 = vmatpush1.bf16.msra.mxu0 %v3473
    %3550 = vmatprep.subr.bf16.mxu0 0
    %3551 = vmatpush1.bf16.msra.mxu0 %v3472
    %3552 = vmatprep.subr.bf16.mxu0 0
    %3553 = vmatpush2.bf16.msra.mxu0 %v3487
    %3554 = vmatprep.subr.bf16.mxu0 0
    %3555 = vmatpush2.bf16.msra.mxu0 %v3486
    %3556 = vmatprep.subr.bf16.mxu0 0
    %3557 = vmatpush2.bf16.msra.mxu0 %v3485
    %3558 = vmatprep.subr.bf16.mxu0 0
    %3559 = vmatpush2.bf16.msra.mxu0 %v3484
    %3560 = vmatprep.subr.bf16.mxu0 0
    %3561 = vmatpush2.bf16.msra.mxu0 %v3483
    %3562 = vmatprep.subr.bf16.mxu0 0
    %3563 = vmatpush2.bf16.msra.mxu0 %v3482
    %3564 = vmatprep.subr.bf16.mxu0 0
    %3565 = vmatpush2.bf16.msra.mxu0 %v3481
    %3566 = vmatprep.subr.bf16.mxu0 0
    %3567 = vmatpush2.bf16.msra.mxu0 %v3480
    %3568 = vmatprep.mubr.bf16.mxu0 %v3270
    %3569 = vmatmul.mubr.bf16.gmra.mxu0 %v3269
    %v3570 = vpop.f32.mrf.mxu0
    %v3571 = vadd.f32 %v3342, %v3570
    %v3572 = vpop.f32.mrf.mxu0
    %v3573 = vpop.f32.mrf.mxu0
    %v3574 = vpop.f32.mrf.mxu0
    %3575 = vdwg.mxu0
    %3576 = vmatprep.subr.bf16.mxu0 0
    %3577 = vmatpush1.bf16.msra.mxu0 %v3495
    %3578 = vmatprep.subr.bf16.mxu0 0
    %3579 = vmatpush1.bf16.msra.mxu0 %v3494
    %3580 = vmatprep.subr.bf16.mxu0 0
    %3581 = vmatpush1.bf16.msra.mxu0 %v3493
    %3582 = vmatprep.subr.bf16.mxu0 0
    %3583 = vmatpush1.bf16.msra.mxu0 %v3492
    %3584 = vmatprep.subr.bf16.mxu0 0
    %3585 = vmatpush1.bf16.msra.mxu0 %v3491
    %3586 = vmatprep.subr.bf16.mxu0 0
    %3587 = vmatpush1.bf16.msra.mxu0 %v3490
    %3588 = vmatprep.subr.bf16.mxu0 0
    %3589 = vmatpush1.bf16.msra.mxu0 %v3489
    %3590 = vmatprep.subr.bf16.mxu0 0
    %3591 = vmatpush1.bf16.msra.mxu0 %v3488
    %3592 = vmatprep.subr.bf16.mxu0 0
    %3593 = vmatpush2.bf16.msra.mxu0 %v3503
    %3594 = vmatprep.subr.bf16.mxu0 0
    %3595 = vmatpush2.bf16.msra.mxu0 %v3502
    %3596 = vmatprep.subr.bf16.mxu0 0
    %3597 = vmatpush2.bf16.msra.mxu0 %v3501
    %3598 = vmatprep.subr.bf16.mxu0 0
    %3599 = vmatpush2.bf16.msra.mxu0 %v3500
    %3600 = vmatprep.subr.bf16.mxu0 0
    %3601 = vmatpush2.bf16.msra.mxu0 %v3499
    %3602 = vmatprep.subr.bf16.mxu0 0
    %3603 = vmatpush2.bf16.msra.mxu0 %v3498
    %3604 = vmatprep.subr.bf16.mxu0 0
    %3605 = vmatpush2.bf16.msra.mxu0 %v3497
    %3606 = vmatprep.subr.bf16.mxu0 0
    %3607 = vmatpush2.bf16.msra.mxu0 %v3496
    %3608 = vmatprep.mubr.bf16.mxu0 %v3272
    %3609 = vmatmul.mubr.bf16.gmra.mxu0 %v3271
    %v3610 = vpop.f32.mrf.mxu0
    %v3611 = vadd.f32 %v3571, %v3610
    %v3612 = vpop.f32.mrf.mxu0
    %v3613 = vpop.f32.mrf.mxu0
    %v3614 = vpop.f32.mrf.mxu0
    %3615 = vdwg.mxu0
    %v3616 = vmax.f32 %v3611, 0.0
    %v3617 = vpack.c.bf16 %v3616, %v3616
    %v3618 = vld [vmem:[%s7] sm:$0xf]
    %v3619 = vld [vmem:[%s7 + $0x4] sm:$0xf]
    %v3620 = vld [vmem:[%s7 + $0x8] sm:$0xf]
    %v3621 = vld [vmem:[%s7 + $0xc] sm:$0xf]
    %v3622 = vld [vmem:[%s7 + $0x10] sm:$0xf]
    %v3623 = vld [vmem:[%s7 + $0x14] sm:$0xf]
    %v3624 = vld [vmem:[%s7 + $0x18] sm:$0xf]
    %v3625 = vld [vmem:[%s7 + $0x1c] sm:$0xf]
    %v3626 = vld [vmem:[%s7 + $0x20] sm:$0xf]
    %v3627 = vld [vmem:[%s7 + $0x24] sm:$0xf]
    %v3628 = vld [vmem:[%s7 + $0x28] sm:$0xf]
    %v3629 = vld [vmem:[%s7 + $0x2c] sm:$0xf]
    %v3630 = vld [vmem:[%s7 + $0x30] sm:$0xf]
    %v3631 = vld [vmem:[%s7 + $0x34] sm:$0xf]
    %v3632 = vld [vmem:[%s7 + $0x38] sm:$0xf]
    %v3633 = vld [vmem:[%s7 + $0x3c] sm:$0xf]
    %v3634 = vld [vmem:[%s8] sm:$0x1]
    %v3636 = vlaneseq
    %v3637 = vshrl.u32 %v3636, 7
    %v3638 = vsub.s32 0, %v3637
    %v3639 = vrot.slane %v3634, %v3638
    %v3657 = vunpack.c.l.b16 %v3618
    %v3658 = vunpack.c.l.b16 %v3619
    %v3659 = vunpack.c.l.b16 %v3620
    %v3660 = vunpack.c.l.b16 %v3621
    %v3661 = vunpack.c.l.b16 %v3622
    %v3662 = vunpack.c.l.b16 %v3623
    %v3663 = vunpack.c.l.b16 %v3624
    %v3664 = vunpack.c.l.b16 %v3625
    %v3665 = vunpack.c.l.b16 %v3626
    %v3666 = vunpack.c.l.b16 %v3627
    %v3667 = vunpack.c.l.b16 %v3628
    %v3668 = vunpack.c.l.b16 %v3629
    %v3669 = vunpack.c.l.b16 %v3630
    %v3670 = vunpack.c.l.b16 %v3631
    %v3671 = vunpack.c.l.b16 %v3632
    %v3672 = vunpack.c.l.b16 %v3633
    %v3673 = vpack.c.b16 %v3658, %v3657
    %v3674 = vpack.c.b16 %v3660, %v3659
    %v3675 = vpack.c.b16 %v3662, %v3661
    %v3676 = vpack.c.b16 %v3664, %v3663
    %v3677 = vpack.c.b16 %v3666, %v3665
    %v3678 = vpack.c.b16 %v3668, %v3667
    %v3679 = vpack.c.b16 %v3670, %v3669
    %v3680 = vpack.c.b16 %v3672, %v3671
    %3689 = vmatprep.subr.bf16.mxu0 0
    %3690 = vmatpush1.bf16.msra.mxu0 %v3680
    %3691 = vmatprep.subr.bf16.mxu0 0
    %3692 = vmatpush1.bf16.msra.mxu0 %v3679
    %3693 = vmatprep.subr.bf16.mxu0 0
    %3694 = vmatpush1.bf16.msra.mxu0 %v3678
    %3695 = vmatprep.subr.bf16.mxu0 0
    %3696 = vmatpush1.bf16.msra.mxu0 %v3677
    %3697 = vmatprep.subr.bf16.mxu0 0
    %3698 = vmatpush1.bf16.msra.mxu0 %v3676
    %3699 = vmatprep.subr.bf16.mxu0 0
    %3700 = vmatpush1.bf16.msra.mxu0 %v3675
    %3701 = vmatprep.subr.bf16.mxu0 0
    %3702 = vmatpush1.bf16.msra.mxu0 %v3674
    %3703 = vmatprep.subr.bf16.mxu0 0
    %3704 = vmatpush1.bf16.msra.mxu0 %v3673
    %3705 = vmatprep.subr.bf16.mxu0 0
    %3706 = vmatpush2.bf16.msra.mxu0 0
    %3707 = vmatprep.subr.bf16.mxu0 0
    %3708 = vmatpush2.bf16.msra.mxu0 0
    %3709 = vmatprep.subr.bf16.mxu0 0
    %3710 = vmatpush2.bf16.msra.mxu0 0
    %3711 = vmatprep.subr.bf16.mxu0 0
    %3712 = vmatpush2.bf16.msra.mxu0 0
    %3713 = vmatprep.subr.bf16.mxu0 0
    %3714 = vmatpush2.bf16.msra.mxu0 0
    %3715 = vmatprep.subr.bf16.mxu0 0
    %3716 = vmatpush2.bf16.msra.mxu0 0
    %3717 = vmatprep.subr.bf16.mxu0 0
    %3718 = vmatpush2.bf16.msra.mxu0 0
    %3719 = vmatprep.subr.bf16.mxu0 0
    %3720 = vmatpush2.bf16.msra.mxu0 0
    %3721 = vmatprep.mubr.bf16.mxu0 0
    %3722 = vmatmul.mubr.bf16.gmra.mxu0 %v3617
    %v3723 = vpop.f32.mrf.mxu0
    %v3724 = vadd.f32 %v3639, %v3723
    %v3725 = vpop.f32.mrf.mxu0
    %v3726 = vpop.f32.mrf.mxu0
    %v3727 = vpop.f32.mrf.mxu0
    %3728 = vdwg.mxu0
    %v3729 = vmax.f32 %v3724, 0.0
    %3730 = vst [vmem:[%s9] sm:$0xff] %v3729
    // Predicated region
    $region50: #{conv_encoder_forward.1} parent=1 // pred_check
      _
    $region51: #{conv_encoder_forward.1} parent=1 // pred_check_branch
      %3732 = sbr.rel (0) target = $region53
    $region52: #{conv_encoder_forward.1} parent=1 // pred_region
      _
    $region53: #{conv_encoder_forward.1} parent=1 // pred_fallthru
      _
    // Predicated region
    $region54: #{conv_encoder_forward.1} parent=1 // pred_check
      _
    $region55: #{conv_encoder_forward.1} parent=1 // pred_check_branch
      %3734 = sbr.rel (0) target = $region57
    $region56: #{conv_encoder_forward.1} parent=1 // pred_region
      _
    $region57: #{conv_encoder_forward.1} parent=1 // pred_fallthru
      _
    %3735 = vsyncpa [#allocation3], 1
    %3736 = vsyncpa [#allocation5], 1

</llo_original>
